<compile_context>
chip_gen: v7x
topology: tpu7x:2x2x1
jax: 0.10.0
libtpu: 0.0.40
codegen_flags: <defaults>
</compile_context>

<pallas_src>
import jax
import jax.numpy as jnp
from jax.experimental import pallas as pl
from jax.experimental.pallas import tpu as pltpu


def _leaky_relu(x, slope=0.2):
    return jnp.where(x > 0, x, slope * x)


def _round_up(x, m):
    return ((x + m - 1) // m) * m


# --------------------------------------------------------------------------- #
# Kernel
# --------------------------------------------------------------------------- #
def discriminator_kernel(x_ref,
                         w1_ref, b1_ref,
                         w2_ref, b2_ref,
                         w3_ref, b3_ref,
                         w4_ref, b4_ref,
                         out_ref,
                         acc_ref):
    """Grid = (batch blocks, hidden-4096 blocks).  acc_ref: (bm, 1024) f32."""
    k = pl.program_id(1)

    @pl.when(k == 0)
    def _():
        acc_ref[...] = jnp.zeros_like(acc_ref)

    # Layer 1, this hidden block: (bm, dp) @ (dp, tk) -> (bm, tk), f32 acc.
    h1 = jnp.dot(x_ref[...], w1_ref[...], preferred_element_type=jnp.float32)
    h1 = _leaky_relu(h1 + b1_ref[...])            # bias/activation in f32 (VPU)

    # Layer 2 partial contraction: (bm, tk) @ (tk, 1024), accumulate in f32.
    acc_ref[...] += jnp.dot(h1.astype(jnp.bfloat16), w2_ref[...],
                            preferred_element_type=jnp.float32)

    @pl.when(k == pl.num_programs(1) - 1)
    def _():
        # Layer 2 finalize: bias + (eval-mode dropout identity) + LeakyReLU.
        h2 = _leaky_relu(acc_ref[...] + b2_ref[...])          # (bm, 1024) f32

        # Layer 3: (bm, 1024) @ (1024, 256) + bias, LeakyReLU.
        h3 = jnp.dot(h2.astype(jnp.bfloat16), w3_ref[...],
                     preferred_element_type=jnp.float32)
        h3 = _leaky_relu(h3 + b3_ref[...])                    # (bm, 256) f32

        # Layer 4: N=1 output -> VPU multiply + lane reduction (skip the MXU).
        v = jnp.sum(h3 * w4_ref[...], axis=-1, keepdims=True) + b4_ref[...]
        out_ref[...] = v.astype(out_ref.dtype)


# --------------------------------------------------------------------------- #
# Parameter preparation (done ONCE, hoisted out of the per-call path)
# --------------------------------------------------------------------------- #
def prepare_params(params, d_in):
    """Pad W1's input dim to a multiple of 16 and pre-cast streams to bf16."""
    (w1, b1), (w2, b2), (w3, b3), (w4, b4) = params
    dp = _round_up(d_in, 16)                      # bf16 sublane multiple
    w1_bf = jnp.pad(w1, ((0, dp - d_in), (0, 0))).astype(jnp.bfloat16)
    w2_bf = w2.astype(jnp.bfloat16)
    w3_bf = w3.astype(jnp.bfloat16)
    h3_dim = w3.shape[1]
    w4_row = w4.reshape(1, h3_dim).astype(jnp.float32)        # (1, 256)
    return (w1_bf, b1.astype(jnp.float32),
            w2_bf, b2.astype(jnp.float32),
            w3_bf, b3.astype(jnp.float32),
            w4_row, b4.reshape(1, 1).astype(jnp.float32))


def _pick_bm(bp_min):
    """Batch block size. Small batches: one block. Large: 256 (512 on v6e)."""
    if bp_min <= 256:
        return bp_min                              # already a multiple of 8
    try:
        kind = jax.devices()[0].device_kind.lower()
    except Exception:
        kind = ""
    # v6e's compute/BW roofline crossover is ~680 rows -> favour bigger blocks.
    big = 512 if ("v6" in kind or "trillium" in kind) else 256
    return big if bp_min >= big else 256


# --------------------------------------------------------------------------- #
# Forward wrapper
# --------------------------------------------------------------------------- #
def discriminator_forward(exp, stru, time, dose, prep, *, tk=1024):
    """Concat along last axis, then run the tiled/pipelined Pallas MLP kernel."""
    (w1_bf, b1_f, w2_bf, b2_f, w3_bf, b3_f, w4_row, b4_f) = prep

    x = jnp.concatenate([exp, stru, time, dose], axis=-1)
    B, d_in = x.shape
    dp = w1_bf.shape[0]
    h1_dim, h2_dim, h3_dim = w1_bf.shape[1], w2_bf.shape[1], w3_bf.shape[1]
    assert d_in <= dp
    assert h1_dim % tk == 0, "hidden tile must divide 4096"

    # Batch block: whole (padded) batch for small B; 256/512-row blocks when
    # large so weights are not re-streamed per tiny batch block and the
    # "parallel" axis can shard across TensorCores.  bp padded to multiple of bm.
    bp_min = _round_up(B, 8)
    bm = _pick_bm(bp_min)
    bp = _round_up(B, bm)

    # Per-call input prep is tiny (B x d_in); weights were prepped once already.
    x_bf = jnp.pad(x.astype(jnp.bfloat16), ((0, bp - B), (0, dp - d_in)))

    grid = (bp // bm, h1_dim // tk)

    grid_spec = pltpu.PrefetchScalarGridSpec(
        num_scalar_prefetch=0,
        grid=grid,
        in_specs=[
            pl.BlockSpec((bm, dp),         lambda i, k: (i, 0)),  # x (resident per i)
            pl.BlockSpec((dp, tk),         lambda i, k: (0, k)),  # W1 column block
            pl.BlockSpec((1, tk),          lambda i, k: (0, k)),  # b1 block
            pl.BlockSpec((tk, h2_dim),     lambda i, k: (k, 0)),  # W2 row block
            pl.BlockSpec((1, h2_dim),      lambda i, k: (0, 0)),  # b2
            pl.BlockSpec((h2_dim, h3_dim), lambda i, k: (0, 0)),  # W3 (resident)
            pl.BlockSpec((1, h3_dim),      lambda i, k: (0, 0)),  # b3
            pl.BlockSpec((1, h3_dim),      lambda i, k: (0, 0)),  # w4 as row vector
            pl.BlockSpec((1, 1),           lambda i, k: (0, 0)),  # b4
        ],
        out_specs=pl.BlockSpec((bm, 1), lambda i, k: (i, 0)),
        scratch_shapes=[pltpu.VMEM((bm, h2_dim), jnp.float32)],
    )

    out = pl.pallas_call(
        discriminator_kernel,
        out_shape=jax.ShapeDtypeStruct((bp, 1), jnp.float32),
        grid_spec=grid_spec,
        compiler_params=pltpu.CompilerParams(
            dimension_semantics=("parallel", "arbitrary"),
            vmem_limit_bytes=32 * 1024 * 1024,
        ),
    )(x_bf, w1_bf, b1_f, w2_bf, b2_f, w3_bf, b3_f, w4_row, b4_f)

    return out[:B]


# --------------------------------------------------------------------------- #
# Init + reference
# --------------------------------------------------------------------------- #
def init_params(key, d_in):
    """Deterministic synthetic init. Weights stored as (in, out) = PyTorch W^T."""
    dims = [d_in, 4096, 1024, 256, 1]
    params = []
    for l in range(4):
        key, kw, kb = jax.random.split(key, 3)
        fan_in, fan_out = dims[l], dims[l + 1]
        bound = 1.0 / jnp.sqrt(fan_in)
        w = jax.random.uniform(kw, (fan_in, fan_out), jnp.float32, -bound, bound)
        b = jax.random.uniform(kb, (1, fan_out), jnp.float32, -bound, bound)
        params.append((w, b))
    return params


def reference_forward(exp, stru, time, dose, params):
    """Plain-JAX reference with the same bf16-in / f32-accumulate numerics."""
    x = jnp.concatenate([exp, stru, time, dose], axis=-1).astype(jnp.float32)
    (w1, b1), (w2, b2), (w3, b3), (w4, b4) = params

    def mm(a, w):
        return jnp.dot(a.astype(jnp.bfloat16), w.astype(jnp.bfloat16),
                       preferred_element_type=jnp.float32)

    h = _leaky_relu(mm(x, w1) + b1)
    h = _leaky_relu(mm(h, w2) + b2)
    h = _leaky_relu(mm(h, w3) + b3)
    return jnp.dot(h, w4) + b4          # final layer kept in f32 (VPU path)


if __name__ == "__main__":
    # Small synthetic dims implied by the forward: opt.Exp_dim, opt.Stru_dim,
    # opt.Time_dim, opt.Dose_dim (Time/Dose are scalar features per sample).
    B, EXP_DIM, STRU_DIM, TIME_DIM, DOSE_DIM = 8, 32, 16, 1, 1
    D_IN = EXP_DIM + STRU_DIM + TIME_DIM + DOSE_DIM

    key = jax.random.PRNGKey(0)
    k_exp, k_stru, k_time, k_dose, k_param = jax.random.split(key, 5)

    exp = jax.random.normal(k_exp, (B, EXP_DIM), jnp.float32)
    stru = jax.random.normal(k_stru, (B, STRU_DIM), jnp.float32)
    time = jax.random.uniform(k_time, (B, TIME_DIM), jnp.float32)   # Time() in [3/28, 1]
    dose = jax.random.uniform(k_dose, (B, DOSE_DIM), jnp.float32)   # Dose() in {0.1,0.3,1}

    params = init_params(k_param, D_IN)
    prep = prepare_params(params, D_IN)            # one-time pad + bf16 cast

    fwd = jax.jit(discriminator_forward)           # per-call concat/pad/kernel
    validity = fwd(exp, stru, time, dose, prep)
    validity = jax.block_until_ready(validity)

    ref = reference_forward(exp, stru, time, dose, params)
    assert validity.shape == (B, 1)
    assert jnp.allclose(validity, ref, atol=2e-3, rtol=2e-3), (
        jnp.max(jnp.abs(validity - ref)))

    print("KERNEL_OK")
</pallas_src>

<mosaic_0001>
module attributes {stable_mosaic.version = 11 : i64} {
  func.func @discriminator_kernel(%arg0: i32, %arg1: i32, %arg2: memref<8x64xbf16, #tpu.memory_space<vmem>>, %arg3: memref<64x1024xbf16, #tpu.memory_space<vmem>>, %arg4: memref<1x1024xf32, #tpu.memory_space<vmem>>, %arg5: memref<1024x1024xbf16, #tpu.memory_space<vmem>>, %arg6: memref<1x1024xf32, #tpu.memory_space<vmem>>, %arg7: memref<1024x256xbf16, #tpu.memory_space<vmem>>, %arg8: memref<1x256xf32, #tpu.memory_space<vmem>>, %arg9: memref<1x256xf32, #tpu.memory_space<vmem>>, %arg10: memref<1x1xf32, #tpu.memory_space<vmem>>, %arg11: memref<8x1xf32, #tpu.memory_space<vmem>>, %arg12: memref<8x1024xf32, #tpu.memory_space<vmem>>) attributes {dimension_semantics = [#tpu.dimension_semantics<parallel>, #tpu.dimension_semantics<arbitrary>], iteration_bounds = array<i64: 1, 4>, scalar_prefetch = 0 : i64, scratch_operands = 1 : i64, tpu.core_type = #tpu.core_type<tc>, window_params = [{transform_indices = @transform_0, window_bounds = array<i64: 8, 64>}, {transform_indices = @transform_1, window_bounds = array<i64: 64, 1024>}, {transform_indices = @transform_2, window_bounds = array<i64: 1, 1024>}, {transform_indices = @transform_3, window_bounds = array<i64: 1024, 1024>}, {pipeline_mode = #tpu.pipeline_mode<synchronous>, transform_indices = @transform_4, window_bounds = array<i64: 1, 1024>}, {pipeline_mode = #tpu.pipeline_mode<synchronous>, transform_indices = @transform_5, window_bounds = array<i64: 1024, 256>}, {pipeline_mode = #tpu.pipeline_mode<synchronous>, transform_indices = @transform_6, window_bounds = array<i64: 1, 256>}, {pipeline_mode = #tpu.pipeline_mode<synchronous>, transform_indices = @transform_7, window_bounds = array<i64: 1, 256>}, {pipeline_mode = #tpu.pipeline_mode<synchronous>, transform_indices = @transform_8, window_bounds = array<i64: 1, 1>}, {transform_indices = @transform_9, window_bounds = array<i64: 8, 1>}]} {
    %c0_i32 = arith.constant 0 : i32
    %0 = arith.cmpi eq, %arg1, %c0_i32 : i32
    %1 = arith.extui %0 : i1 to i32
    %c0_i32_0 = arith.constant 0 : i32
    %2 = arith.cmpi ne, %1, %c0_i32_0 : i32
    scf.if %2 {
      %cst_16 = arith.constant 0.000000e+00 : f32
      %23 = vector.broadcast %cst_16 : f32 to vector<8x1024xf32>
      %c0_17 = arith.constant 0 : index
      %c0_18 = arith.constant 0 : index
      %24 = vector.load %arg12[%c0_17, %c0_18] : memref<8x1024xf32, #tpu.memory_space<vmem>>, vector<8x1024xf32>
      tpu.vector_store %arg12[%c0_17, %c0_18], %23 {strides = array<i32>} : memref<8x1024xf32, #tpu.memory_space<vmem>>, vector<8x1024xf32>,
    } else {
    }
    %c0 = arith.constant 0 : index
    %c0_1 = arith.constant 0 : index
    %3 = vector.load %arg2[%c0, %c0_1] : memref<8x64xbf16, #tpu.memory_space<vmem>>, vector<8x64xbf16>
    %c0_2 = arith.constant 0 : index
    %c0_3 = arith.constant 0 : index
    %4 = vector.load %arg3[%c0_2, %c0_3] : memref<64x1024xbf16, #tpu.memory_space<vmem>>, vector<64x1024xbf16>
    %cst = arith.constant dense<0.000000e+00> : vector<8x1024xf32>
    %5 = tpu.matmul %3, %4, %cst {dimension_numbers = #tpu.dot_dimension_numbers<[1], [0], [0], [1], [0, 0, 1, 1], [], []>} : vector<8x64xbf16>, vector<64x1024xbf16>, vector<8x1024xf32> -> vector<8x1024xf32>
    %c0_4 = arith.constant 0 : index
    %c0_5 = arith.constant 0 : index
    %6 = vector.load %arg4[%c0_4, %c0_5] : memref<1x1024xf32, #tpu.memory_space<vmem>>, vector<1x1024xf32>
    %7 = vector.broadcast %6 : vector<1x1024xf32> to vector<8x1024xf32>
    %8 = arith.addf %5, %7 : vector<8x1024xf32>
    %cst_6 = arith.constant 0.000000e+00 : f32
    %9 = vector.broadcast %cst_6 : f32 to vector<8x1024xf32>
    %10 = arith.cmpf ogt, %8, %9 : vector<8x1024xf32>
    %cst_7 = arith.constant 2.000000e-01 : f32
    %11 = vector.broadcast %cst_7 : f32 to vector<8x1024xf32>
    %12 = arith.mulf %11, %8 : vector<8x1024xf32>
    %13 = arith.select %10, %8, %12 : vector<8x1024xi1>, vector<8x1024xf32>
    %c0_8 = arith.constant 0 : index
    %c0_9 = arith.constant 0 : index
    %14 = vector.load %arg12[%c0_8, %c0_9] : memref<8x1024xf32, #tpu.memory_space<vmem>>, vector<8x1024xf32>
    %15 = arith.truncf %13 : vector<8x1024xf32> to vector<8x1024xbf16>
    %c0_10 = arith.constant 0 : index
    %c0_11 = arith.constant 0 : index
    %16 = vector.load %arg5[%c0_10, %c0_11] : memref<1024x1024xbf16, #tpu.memory_space<vmem>>, vector<1024x1024xbf16>
    %cst_12 = arith.constant dense<0.000000e+00> : vector<8x1024xf32>
    %17 = tpu.matmul %15, %16, %cst_12 {dimension_numbers = #tpu.dot_dimension_numbers<[1], [0], [0], [1], [0, 0, 1, 1], [], []>} : vector<8x1024xbf16>, vector<1024x1024xbf16>, vector<8x1024xf32> -> vector<8x1024xf32>
    %18 = arith.addf %14, %17 : vector<8x1024xf32>
    %c0_13 = arith.constant 0 : index
    %c0_14 = arith.constant 0 : index
    %19 = vector.load %arg12[%c0_13, %c0_14] : memref<8x1024xf32, #tpu.memory_space<vmem>>, vector<8x1024xf32>
    tpu.vector_store %arg12[%c0_13, %c0_14], %18 {strides = array<i32>} : memref<8x1024xf32, #tpu.memory_space<vmem>>, vector<8x1024xf32>,
    %c3_i32 = arith.constant 3 : i32
    %20 = arith.cmpi eq, %arg1, %c3_i32 : i32
    %21 = arith.extui %20 : i1 to i32
    %c0_i32_15 = arith.constant 0 : i32
    %22 = arith.cmpi ne, %21, %c0_i32_15 : i32
    scf.if %22 {
      %c0_16 = arith.constant 0 : index
      %c0_17 = arith.constant 0 : index
      %23 = vector.load %arg12[%c0_16, %c0_17] : memref<8x1024xf32, #tpu.memory_space<vmem>>, vector<8x1024xf32>
      %c0_18 = arith.constant 0 : index
      %c0_19 = arith.constant 0 : index
      %24 = vector.load %arg6[%c0_18, %c0_19] : memref<1x1024xf32, #tpu.memory_space<vmem>>, vector<1x1024xf32>
      %25 = vector.broadcast %24 : vector<1x1024xf32> to vector<8x1024xf32>
      %26 = arith.addf %23, %25 : vector<8x1024xf32>
      %cst_20 = arith.constant 0.000000e+00 : f32
      %27 = vector.broadcast %cst_20 : f32 to vector<8x1024xf32>
      %28 = arith.cmpf ogt, %26, %27 : vector<8x1024xf32>
      %cst_21 = arith.constant 2.000000e-01 : f32
      %29 = vector.broadcast %cst_21 : f32 to vector<8x1024xf32>
      %30 = arith.mulf %29, %26 : vector<8x1024xf32>
      %31 = arith.select %28, %26, %30 : vector<8x1024xi1>, vector<8x1024xf32>
      %32 = arith.truncf %31 : vector<8x1024xf32> to vector<8x1024xbf16>
      %c0_22 = arith.constant 0 : index
      %c0_23 = arith.constant 0 : index
      %33 = vector.load %arg7[%c0_22, %c0_23] : memref<1024x256xbf16, #tpu.memory_space<vmem>>, vector<1024x256xbf16>
      %cst_24 = arith.constant dense<0.000000e+00> : vector<8x256xf32>
      %34 = tpu.matmul %32, %33, %cst_24 {dimension_numbers = #tpu.dot_dimension_numbers<[1], [0], [0], [1], [0, 0, 1, 1], [], []>} : vector<8x1024xbf16>, vector<1024x256xbf16>, vector<8x256xf32> -> vector<8x256xf32>
      %c0_25 = arith.constant 0 : index
      %c0_26 = arith.constant 0 : index
      %35 = vector.load %arg8[%c0_25, %c0_26] : memref<1x256xf32, #tpu.memory_space<vmem>>, vector<1x256xf32>
      %36 = vector.broadcast %35 : vector<1x256xf32> to vector<8x256xf32>
      %37 = arith.addf %34, %36 : vector<8x256xf32>
      %cst_27 = arith.constant 0.000000e+00 : f32
      %38 = vector.broadcast %cst_27 : f32 to vector<8x256xf32>
      %39 = arith.cmpf ogt, %37, %38 : vector<8x256xf32>
      %cst_28 = arith.constant 2.000000e-01 : f32
      %40 = vector.broadcast %cst_28 : f32 to vector<8x256xf32>
      %41 = arith.mulf %40, %37 : vector<8x256xf32>
      %42 = arith.select %39, %37, %41 : vector<8x256xi1>, vector<8x256xf32>
      %c0_29 = arith.constant 0 : index
      %c0_30 = arith.constant 0 : index
      %43 = vector.load %arg9[%c0_29, %c0_30] : memref<1x256xf32, #tpu.memory_space<vmem>>, vector<1x256xf32>
      %44 = vector.broadcast %43 : vector<1x256xf32> to vector<8x256xf32>
      %45 = arith.mulf %42, %44 : vector<8x256xf32>
      %cst_31 = arith.constant dense<0.000000e+00> : vector<8xf32>
      %46 = vector.multi_reduction <add>, %45, %cst_31 [1] : vector<8x256xf32> to vector<8xf32>
      %47 = vector.shape_cast %46 : vector<8xf32> to vector<8x1xf32>
      %c0_32 = arith.constant 0 : index
      %c0_33 = arith.constant 0 : index
      %48 = vector.load %arg10[%c0_32, %c0_33] : memref<1x1xf32, #tpu.memory_space<vmem>>, vector<1x1xf32>
      %49 = vector.broadcast %48 : vector<1x1xf32> to vector<8x1xf32>
      %50 = arith.addf %47, %49 : vector<8x1xf32>
      %c0_34 = arith.constant 0 : index
      %c0_35 = arith.constant 0 : index
      %51 = vector.load %arg11[%c0_34, %c0_35] : memref<8x1xf32, #tpu.memory_space<vmem>>, vector<8x1xf32>
      tpu.vector_store %arg11[%c0_34, %c0_35], %50 {strides = array<i32>} : memref<8x1xf32, #tpu.memory_space<vmem>>, vector<8x1xf32>,
    } else {
    }
    return
  }
  func.func @transform_0(%arg0: i32, %arg1: i32) -> (i32, i32) {
    %c0_i32 = arith.constant 0 : i32
    %c0_i32_0 = arith.constant 0 : i32
    return %arg0, %c0_i32 : i32, i32
  }
  func.func @transform_1(%arg0: i32, %arg1: i32) -> (i32, i32) {
    %c0_i32 = arith.constant 0 : i32
    %c0_i32_0 = arith.constant 0 : i32
    return %c0_i32, %arg1 : i32, i32
  }
  func.func @transform_2(%arg0: i32, %arg1: i32) -> (i32, i32) {
    %c0_i32 = arith.constant 0 : i32
    %c0_i32_0 = arith.constant 0 : i32
    return %c0_i32, %arg1 : i32, i32
  }
  func.func @transform_3(%arg0: i32, %arg1: i32) -> (i32, i32) {
    %c0_i32 = arith.constant 0 : i32
    %c0_i32_0 = arith.constant 0 : i32
    return %arg1, %c0_i32 : i32, i32
  }
  func.func @transform_4(%arg0: i32, %arg1: i32) -> (i32, i32) {
    %c0_i32 = arith.constant 0 : i32
    %c0_i32_0 = arith.constant 0 : i32
    %c0_i32_1 = arith.constant 0 : i32
    return %c0_i32, %c0_i32_0 : i32, i32
  }
  func.func @transform_5(%arg0: i32, %arg1: i32) -> (i32, i32) {
    %c0_i32 = arith.constant 0 : i32
    %c0_i32_0 = arith.constant 0 : i32
    %c0_i32_1 = arith.constant 0 : i32
    return %c0_i32, %c0_i32_0 : i32, i32
  }
  func.func @transform_6(%arg0: i32, %arg1: i32) -> (i32, i32) {
    %c0_i32 = arith.constant 0 : i32
    %c0_i32_0 = arith.constant 0 : i32
    %c0_i32_1 = arith.constant 0 : i32
    return %c0_i32, %c0_i32_0 : i32, i32
  }
  func.func @transform_7(%arg0: i32, %arg1: i32) -> (i32, i32) {
    %c0_i32 = arith.constant 0 : i32
    %c0_i32_0 = arith.constant 0 : i32
    %c0_i32_1 = arith.constant 0 : i32
    return %c0_i32, %c0_i32_0 : i32, i32
  }
  func.func @transform_8(%arg0: i32, %arg1: i32) -> (i32, i32) {
    %c0_i32 = arith.constant 0 : i32
    %c0_i32_0 = arith.constant 0 : i32
    %c0_i32_1 = arith.constant 0 : i32
    return %c0_i32, %c0_i32_0 : i32, i32
  }
  func.func @transform_9(%arg0: i32, %arg1: i32) -> (i32, i32) {
    %c0_i32 = arith.constant 0 : i32
    %c0_i32_0 = arith.constant 0 : i32
    return %arg0, %c0_i32 : i32, i32
  }
}

</mosaic_0001>

<llo_original>
// kernel: discriminator_forward.1
$region0: #{discriminator_forward.1}
  #allocation0 [shape = 'u32[]', space=smem, size = 0x4, offset = 0x4, fixed_abs, tag = 'smem constant byte address 0x4 - core index']
  #allocation1 [shape = 'u32[144,128]{1,0:T(1,128)}', space=vmem, size = 0x12000, scoped, tag = 'internal scratch']
  #allocation2 [shape = 'f32[8,1024]{1,0:T(8,128)}', space=vmem, size = 0x8000, scoped, tag = 'scratch operand']
  #allocation3 [shape = 'f32[1,1]{1,0:T(1,128)S(1)}', space=vmem, size = 0x200, scoped, tag = 'scoped memory for discriminator_forward.1']
  %s0 = inlined_call_operand.vmem [shape: bf16[8,64], index: 0, kind: input, shape index: {}]
  %s1 = inlined_call_operand.hbm [shape: bf16[64,4096], index: 1, kind: input, shape index: {}]
  %s2 = inlined_call_operand.hbm [shape: f32[1,4096], index: 2, kind: input, shape index: {}]
  %s3 = inlined_call_operand.hbm [shape: bf16[4096,1024], index: 3, kind: input, shape index: {}]
  %s4 = inlined_call_operand.hbm [shape: f32[1,1024], index: 4, kind: input, shape index: {}]
  %s5 = inlined_call_operand.hbm [shape: bf16[1024,256], index: 5, kind: input, shape index: {}]
  %s6 = inlined_call_operand.hbm [shape: f32[1,256], index: 6, kind: input, shape index: {}]
  %s7 = inlined_call_operand.hbm [shape: f32[1,256], index: 7, kind: input, shape index: {}]
  %s8 = inlined_call_operand.<no memory space> [shape: f32[1,1], index: 8, kind: input, shape index: {}]
  %s9 = inlined_call_operand.vmem [shape: f32[8,1], index: 9, kind: output, shape index: {}]
  %s10 = sld [smem:[#allocation0]]
  $region105: #{discriminator_forward.1} parent=0
    _
  %s12 = ssub.s32 1, %s10
  %s13 = scalar_select 0, %s12, %s10
  %v14 = vstv %s8
  %15 = vst [vmem:[#allocation3] sm:$0x1] %v14
  $region1: #{discriminator_forward.1} parent=0
    #allocation4 [shape = 'u8[262144]{0}', space=vmem, size = 0x40000, scoped, tag = 'input window, operand 1']
    #allocation5 [shape = 's32[2]{0}', space=sflag, size = 0x8, scoped, tag = 'scoped memory for discriminator_forward.1']
    #allocation6 [shape = 'u8[8192]{0}', space=vmem, size = 0x2000, scoped, tag = 'input window, operand 2']
    #allocation7 [shape = 's32[2]{0}', space=sflag, size = 0x8, scoped, tag = 'scoped memory for discriminator_forward.1']
    #allocation8 [shape = 'u8[4194304]{0}', space=vmem, size = 0x400000, scoped, tag = 'input window, operand 3']
    #allocation9 [shape = 'u8[4096]{0}', space=vmem, size = 0x1000, scoped, tag = 'input window, operand 4, single buffered']
    #allocation10 [shape = 's32[1]{0}', space=sflag, size = 0x4, scoped, tag = 'scoped memory for discriminator_forward.1']
    #allocation11 [shape = 'u8[524288]{0}', space=vmem, size = 0x80000, scoped, tag = 'input window, operand 5, single buffered']
    #allocation12 [shape = 'u8[1024]{0}', space=vmem, size = 0x400, scoped, tag = 'input window, operand 6, single buffered']
    #allocation13 [shape = 's32[1]{0}', space=sflag, size = 0x4, scoped, tag = 'scoped memory for discriminator_forward.1']
    #allocation14 [shape = 'u8[1024]{0}', space=vmem, size = 0x400, scoped, tag = 'input window, operand 7, single buffered']
    %16 = vsyncpa [#allocation5], 0
    %s17 = scalar_lea.sflag [#allocation5], 1
    %18 = vsyncpa %s17, 0
    %19 = vsyncpa [#allocation7], 0
    %s20 = scalar_lea.sflag [#allocation7], 1
    %21 = vsyncpa %s20, 0
    %22 = vsyncpa [#allocation10], 0
    %23 = vsyncpa [#allocation13], 0
    loop: start=0, step=1, limit=6
    $region2: #{discriminator_forward.1} parent=1 // loop_pre_header
      _
    $region3: #{discriminator_forward.1} parent=1 // loop_header
      %s25 = sphi 0, %s29
      %p26 = scmp.ge.s32.totalorder %s25, 6
      %s32 = sphi 0, %s44
      %s33 = sphi 0, %s40
      %s34 = sphi 0, %s32
      %s35 = sphi 0, %s33
      %s36 = sphi 0, %s34
      %s37 = sphi 0, %s35
      %s47 = sphi 0, %s49
      %s50 = sphi 0, %s47
      %s51 = sphi 0, %s50
      %s67 = sphi 0, %s51
      %s73 = sphi 0, %s75
      %s76 = sphi 0, %s73
      %s77 = sphi 0, %s76
      %s93 = sphi 0, %s77
      %s99 = sphi 0, %s101
      %s102 = sphi 0, %s99
      %s103 = sphi 0, %s102
      %s119 = sphi 0, %s103
      %s125 = sphi 0, %s127
      %s128 = sphi 0, %s125
      %s129 = sphi 0, %s128
      %s145 = sphi 0, %s129
      %s149 = sphi 0, %s149
      %s151 = sphi 0, %s149
      %s152 = sphi 0, %s151
      %s166 = sphi 0, %s152
      %s170 = sphi 0, %s170
      %s172 = sphi 0, %s170
      %s173 = sphi 0, %s172
      %s187 = sphi 0, %s173
      %s191 = sphi 0, %s191
      %s193 = sphi 0, %s191
      %s194 = sphi 0, %s193
      %s208 = sphi 0, %s194
      %s212 = sphi 0, %s212
      %s214 = sphi 0, %s212
      %s215 = sphi 0, %s214
      %s229 = sphi 0, %s215
      %s233 = sphi 0, %s233
      %s235 = sphi 0, %s233
      %s236 = sphi 0, %s235
      %s250 = sphi 0, %s236
      %s256 = sphi 0, %s258
      %s259 = sphi 0, %s256
      %s260 = sphi 0, %s259
      %s276 = sphi 0, %s260
    $region4: #{discriminator_forward.1} parent=1 // loop_header_branch
      %28 = sbr.rel (%p26) target = $region8
    $region5: #{discriminator_forward.1} parent=1 // loop_body
      %s30 = ssub.s32 %s25, 1
      %s31 = ssub.s32 %s25, 2
      %s38 = sadd.s32 1, %s33
      %p39 = scmp.ge.s32.totalorder %s38, 4
      %s40 = scalar_select %p39, 0, %s38
      %s41 = sadd.s32 1, %s32
      %s42 = scalar_select %p39, %s41, %s32
      %p43 = scmp.ge.s32.totalorder %s42, 1
      %s44 = scalar_select %p43, 0, %s42
      %s45 = ssub.s32 %s32, %s44
      %p46 = scmp.eq.s32.totalorder %s45, 0
      %s48 = sadd.s32 %s47, 1
      %s49 = scalar_select %p46, %s47, %s48
      %p52 = pneg %p46
      %p53 = scmp.eq.s32.totalorder %s25, 3
      %p54 = por %p52, %p53
      %p55 = scmp.ne.s32.totalorder %s47, %s50
      %p56 = scmp.eq.s32.totalorder %s25, 0
      %p57 = por %p55, %p56
      %p58 = scmp.ne.s32.totalorder %s47, %s50
      %p59 = scmp.eq.s32.totalorder %s30, 3
      %p60 = por %p58, %p59
      %p61 = scmp.ne.s32.totalorder %s50, %s51
      %p62 = scmp.eq.s32.totalorder %s30, 0
      %p63 = por %p61, %p62
      %p64 = scmp.ne.s32.totalorder %s50, %s51
      %p65 = scmp.eq.s32.totalorder %s31, 3
      %p66 = por %p64, %p65
      %p68 = scmp.ne.s32.totalorder %s51, %s67
      %p69 = scmp.eq.s32.totalorder %s31, 0
      %p70 = por %p68, %p69
      %s71 = ssub.s32 %s33, %s40
      %p72 = scmp.eq.s32.totalorder %s71, 0
      %s74 = sadd.s32 %s73, 1
      %s75 = scalar_select %p72, %s73, %s74
      %p78 = pneg %p72
      %p79 = scmp.eq.s32.totalorder %s25, 3
      %p80 = por %p78, %p79
      %p81 = scmp.ne.s32.totalorder %s73, %s76
      %p82 = scmp.eq.s32.totalorder %s25, 0
      %p83 = por %p81, %p82
      %p84 = scmp.ne.s32.totalorder %s73, %s76
      %p85 = scmp.eq.s32.totalorder %s30, 3
      %p86 = por %p84, %p85
      %p87 = scmp.ne.s32.totalorder %s76, %s77
      %p88 = scmp.eq.s32.totalorder %s30, 0
      %p89 = por %p87, %p88
      %p90 = scmp.ne.s32.totalorder %s76, %s77
      %p91 = scmp.eq.s32.totalorder %s31, 3
      %p92 = por %p90, %p91
      %p94 = scmp.ne.s32.totalorder %s77, %s93
      %p95 = scmp.eq.s32.totalorder %s31, 0
      %p96 = por %p94, %p95
      %s97 = ssub.s32 %s33, %s40
      %p98 = scmp.eq.s32.totalorder %s97, 0
      %s100 = sadd.s32 %s99, 1
      %s101 = scalar_select %p98, %s99, %s100
      %p104 = pneg %p98
      %p105 = scmp.eq.s32.totalorder %s25, 3
      %p106 = por %p104, %p105
      %p107 = scmp.ne.s32.totalorder %s99, %s102
      %p108 = scmp.eq.s32.totalorder %s25, 0
      %p109 = por %p107, %p108
      %p110 = scmp.ne.s32.totalorder %s99, %s102
      %p111 = scmp.eq.s32.totalorder %s30, 3
      %p112 = por %p110, %p111
      %p113 = scmp.ne.s32.totalorder %s102, %s103
      %p114 = scmp.eq.s32.totalorder %s30, 0
      %p115 = por %p113, %p114
      %p116 = scmp.ne.s32.totalorder %s102, %s103
      %p117 = scmp.eq.s32.totalorder %s31, 3
      %p118 = por %p116, %p117
      %p120 = scmp.ne.s32.totalorder %s103, %s119
      %p121 = scmp.eq.s32.totalorder %s31, 0
      %p122 = por %p120, %p121
      %s123 = ssub.s32 %s33, %s40
      %p124 = scmp.eq.s32.totalorder %s123, 0
      %s126 = sadd.s32 %s125, 1
      %s127 = scalar_select %p124, %s125, %s126
      %p130 = pneg %p124
      %p131 = scmp.eq.s32.totalorder %s25, 3
      %p132 = por %p130, %p131
      %p133 = scmp.ne.s32.totalorder %s125, %s128
      %p134 = scmp.eq.s32.totalorder %s25, 0
      %p135 = por %p133, %p134
      %p136 = scmp.ne.s32.totalorder %s125, %s128
      %p137 = scmp.eq.s32.totalorder %s30, 3
      %p138 = por %p136, %p137
      %p139 = scmp.ne.s32.totalorder %s128, %s129
      %p140 = scmp.eq.s32.totalorder %s30, 0
      %p141 = por %p139, %p140
      %p142 = scmp.ne.s32.totalorder %s128, %s129
      %p143 = scmp.eq.s32.totalorder %s31, 3
      %p144 = por %p142, %p143
      %p146 = scmp.ne.s32.totalorder %s129, %s145
      %p147 = scmp.eq.s32.totalorder %s31, 0
      %p148 = por %p146, %p147
      %s150 = sadd.s32 %s149, 1
      %p153 = scmp.eq.s32.totalorder %s25, 3
      %p154 = scmp.ne.s32.totalorder %s149, %s151
      %p155 = scmp.eq.s32.totalorder %s25, 0
      %p156 = por %p154, %p155
      %p157 = scmp.ne.s32.totalorder %s149, %s151
      %p158 = scmp.eq.s32.totalorder %s30, 3
      %p159 = por %p157, %p158
      %p160 = scmp.ne.s32.totalorder %s151, %s152
      %p161 = scmp.eq.s32.totalorder %s30, 0
      %p162 = por %p160, %p161
      %p163 = scmp.ne.s32.totalorder %s151, %s152
      %p164 = scmp.eq.s32.totalorder %s31, 3
      %p165 = por %p163, %p164
      %p167 = scmp.ne.s32.totalorder %s152, %s166
      %p168 = scmp.eq.s32.totalorder %s31, 0
      %p169 = por %p167, %p168
      %s171 = sadd.s32 %s170, 1
      %p174 = scmp.eq.s32.totalorder %s25, 3
      %p175 = scmp.ne.s32.totalorder %s170, %s172
      %p176 = scmp.eq.s32.totalorder %s25, 0
      %p177 = por %p175, %p176
      %p178 = scmp.ne.s32.totalorder %s170, %s172
      %p179 = scmp.eq.s32.totalorder %s30, 3
      %p180 = por %p178, %p179
      %p181 = scmp.ne.s32.totalorder %s172, %s173
      %p182 = scmp.eq.s32.totalorder %s30, 0
      %p183 = por %p181, %p182
      %p184 = scmp.ne.s32.totalorder %s172, %s173
      %p185 = scmp.eq.s32.totalorder %s31, 3
      %p186 = por %p184, %p185
      %p188 = scmp.ne.s32.totalorder %s173, %s187
      %p189 = scmp.eq.s32.totalorder %s31, 0
      %p190 = por %p188, %p189
      %s192 = sadd.s32 %s191, 1
      %p195 = scmp.eq.s32.totalorder %s25, 3
      %p196 = scmp.ne.s32.totalorder %s191, %s193
      %p197 = scmp.eq.s32.totalorder %s25, 0
      %p198 = por %p196, %p197
      %p199 = scmp.ne.s32.totalorder %s191, %s193
      %p200 = scmp.eq.s32.totalorder %s30, 3
      %p201 = por %p199, %p200
      %p202 = scmp.ne.s32.totalorder %s193, %s194
      %p203 = scmp.eq.s32.totalorder %s30, 0
      %p204 = por %p202, %p203
      %p205 = scmp.ne.s32.totalorder %s193, %s194
      %p206 = scmp.eq.s32.totalorder %s31, 3
      %p207 = por %p205, %p206
      %p209 = scmp.ne.s32.totalorder %s194, %s208
      %p210 = scmp.eq.s32.totalorder %s31, 0
      %p211 = por %p209, %p210
      %s213 = sadd.s32 %s212, 1
      %p216 = scmp.eq.s32.totalorder %s25, 3
      %p217 = scmp.ne.s32.totalorder %s212, %s214
      %p218 = scmp.eq.s32.totalorder %s25, 0
      %p219 = por %p217, %p218
      %p220 = scmp.ne.s32.totalorder %s212, %s214
      %p221 = scmp.eq.s32.totalorder %s30, 3
      %p222 = por %p220, %p221
      %p223 = scmp.ne.s32.totalorder %s214, %s215
      %p224 = scmp.eq.s32.totalorder %s30, 0
      %p225 = por %p223, %p224
      %p226 = scmp.ne.s32.totalorder %s214, %s215
      %p227 = scmp.eq.s32.totalorder %s31, 3
      %p228 = por %p226, %p227
      %p230 = scmp.ne.s32.totalorder %s215, %s229
      %p231 = scmp.eq.s32.totalorder %s31, 0
      %p232 = por %p230, %p231
      %s234 = sadd.s32 %s233, 1
      %p237 = scmp.eq.s32.totalorder %s25, 3
      %p238 = scmp.ne.s32.totalorder %s233, %s235
      %p239 = scmp.eq.s32.totalorder %s25, 0
      %p240 = por %p238, %p239
      %p241 = scmp.ne.s32.totalorder %s233, %s235
      %p242 = scmp.eq.s32.totalorder %s30, 3
      %p243 = por %p241, %p242
      %p244 = scmp.ne.s32.totalorder %s235, %s236
      %p245 = scmp.eq.s32.totalorder %s30, 0
      %p246 = por %p244, %p245
      %p247 = scmp.ne.s32.totalorder %s235, %s236
      %p248 = scmp.eq.s32.totalorder %s31, 3
      %p249 = por %p247, %p248
      %p251 = scmp.ne.s32.totalorder %s236, %s250
      %p252 = scmp.eq.s32.totalorder %s31, 0
      %p253 = por %p251, %p252
      %s254 = ssub.s32 %s32, %s44
      %p255 = scmp.eq.s32.totalorder %s254, 0
      %s257 = sadd.s32 %s256, 1
      %s258 = scalar_select %p255, %s256, %s257
      %p261 = pneg %p255
      %p262 = scmp.eq.s32.totalorder %s25, 3
      %p263 = por %p261, %p262
      %p264 = scmp.ne.s32.totalorder %s256, %s259
      %p265 = scmp.eq.s32.totalorder %s25, 0
      %p266 = por %p264, %p265
      %p267 = scmp.ne.s32.totalorder %s256, %s259
      %p268 = scmp.eq.s32.totalorder %s30, 3
      %p269 = por %p267, %p268
      %p270 = scmp.ne.s32.totalorder %s259, %s260
      %p271 = scmp.eq.s32.totalorder %s30, 0
      %p272 = por %p270, %p271
      %p273 = scmp.ne.s32.totalorder %s259, %s260
      %p274 = scmp.eq.s32.totalorder %s31, 3
      %p275 = por %p273, %p274
      %p277 = scmp.ne.s32.totalorder %s260, %s276
      %p278 = scmp.eq.s32.totalorder %s31, 0
      %p279 = por %p277, %p278
      %p280 = scmp.le.s32.totalorder 1, %s25
      %p281 = scmp.lt.s32.totalorder %s25, 5
      %p282 = pnand %p280, %p281
      %p283 = pneg %p282
      // Predicated region
      $region9: #{discriminator_forward.1} parent=5 // pred_check
        _
      $region10: #{discriminator_forward.1} parent=5 // pred_check_branch
        %285 = sbr.rel (%p282) target = $region12
      $region11: #{discriminator_forward.1} parent=5 // pred_region
        %s286 = ssub.s32 %s25, 1
        // Predicated region
        $region13: #{discriminator_forward.1} parent=11 // pred_check
          %p287 = pneg %p63
        $region14: #{discriminator_forward.1} parent=11 // pred_check_branch
          %289 = sbr.rel (%p287) target = $region16
        $region15: #{discriminator_forward.1} parent=11 // pred_region
          %p290 = scmp.lt.s32.totalorder %s34, 0
          %s291 = scalar_select %p290, %s34, 0
          %s292 = smul.addr %s291, 4
          %s293 = scalar_lea.vmem %s0, %s292
        $region16: #{discriminator_forward.1} parent=11 // pred_fallthru
          _
        // Predicated region
        $region17: #{discriminator_forward.1} parent=11 // pred_check
          %p294 = pneg %p162
        $region18: #{discriminator_forward.1} parent=11 // pred_check_branch
          %296 = sbr.rel (%p294) target = $region20
        $region19: #{discriminator_forward.1} parent=11 // pred_region
          %s298 = ssub.s32 128, 128
          %299 = vsyncadd [#allocation10], %s298
          %s301 = sshll.u32 [#allocation9], 4
          %s302 = int_to_ptr.vmem [resolvable:$true] %s301
          %304 = dma.hbm_to_vmem [thread:$0]  %s4, 128, %s302, [#allocation10]
        $region20: #{discriminator_forward.1} parent=11 // pred_fallthru
          _
        // Predicated region
        $region21: #{discriminator_forward.1} parent=11 // pred_check
          %p305 = pneg %p183
        $region22: #{discriminator_forward.1} parent=11 // pred_check_branch
          %307 = sbr.rel (%p305) target = $region24
        $region23: #{discriminator_forward.1} parent=11 // pred_region
          %s309 = ssub.s32 16384, 16384
          %310 = vsyncadd [#allocation10], %s309
          %s311 = sshll.u32 [#allocation11], 4
          %s312 = int_to_ptr.vmem [resolvable:$true] %s311
          %317 = dma.hbm_to_vmem [thread:$0]  %s5, 16384, %s312, [#allocation10], 128, 128, 8
        $region24: #{discriminator_forward.1} parent=11 // pred_fallthru
          _
        // Predicated region
        $region25: #{discriminator_forward.1} parent=11 // pred_check
          %p318 = pneg %p204
        $region26: #{discriminator_forward.1} parent=11 // pred_check_branch
          %320 = sbr.rel (%p318) target = $region28
        $region27: #{discriminator_forward.1} parent=11 // pred_region
          %s322 = ssub.s32 32, 32
          %323 = vsyncadd [#allocation13], %s322
          %s325 = sshll.u32 [#allocation12], 4
          %s326 = int_to_ptr.vmem [resolvable:$true] %s325
          %328 = dma.hbm_to_vmem [thread:$0]  %s6, 32, %s326, [#allocation13]
        $region28: #{discriminator_forward.1} parent=11 // pred_fallthru
          _
        // Predicated region
        $region29: #{discriminator_forward.1} parent=11 // pred_check
          %p329 = pneg %p225
        $region30: #{discriminator_forward.1} parent=11 // pred_check_branch
          %331 = sbr.rel (%p329) target = $region32
        $region31: #{discriminator_forward.1} parent=11 // pred_region
          %s333 = ssub.s32 32, 32
          %334 = vsyncadd [#allocation13], %s333
          %s336 = sshll.u32 [#allocation14], 4
          %s337 = int_to_ptr.vmem [resolvable:$true] %s336
          %339 = dma.hbm_to_vmem [thread:$0]  %s7, 32, %s337, [#allocation13]
        $region32: #{discriminator_forward.1} parent=11 // pred_fallthru
          _
        // Predicated region
        $region33: #{discriminator_forward.1} parent=11 // pred_check
          %p340 = pneg %p246
        $region34: #{discriminator_forward.1} parent=11 // pred_check_branch
          %342 = sbr.rel (%p340) target = $region36
        $region35: #{discriminator_forward.1} parent=11 // pred_region
          _
        $region36: #{discriminator_forward.1} parent=11 // pred_fallthru
          _
      $region12: #{discriminator_forward.1} parent=5 // pred_fallthru
        _
      %p343 = scmp.lt.s32.totalorder %s25, 4
      // Predicated region
      $region37: #{discriminator_forward.1} parent=5 // pred_check
        %p344 = pneg %p343
      $region38: #{discriminator_forward.1} parent=5 // pred_check_branch
        %346 = sbr.rel (%p344) target = $region40
      $region39: #{discriminator_forward.1} parent=5 // pred_region
        // Predicated region
        $region41: #{discriminator_forward.1} parent=39 // pred_check
          %p347 = pneg %p83
        $region42: #{discriminator_forward.1} parent=39 // pred_check_branch
          %349 = sbr.rel (%p347) target = $region44
        $region43: #{discriminator_forward.1} parent=39 // pred_region
          %s350 = sand.u32 %s73, 1
          %s351 = scalar_lea.sflag [#allocation5], %s350
          %s352 = sand.u32 %s73, 1
          %s353 = smul.addr %s352, 256
          %s354 = scalar_lea.vmem [#allocation4], %s353
          %s355 = smul.u32 8, %s33
          %s357 = ssub.s32 4096, 4096
          %358 = vsyncadd %s351, %s357
          %s359 = smul.addr %s355, 64
          %s360 = scalar_lea.hbm %s1, %s359
          %s361 = sshll.u32 %s354, 4
          %s362 = int_to_ptr.vmem [resolvable:$true] %s361
          %367 = dma.hbm_to_vmem [thread:$0]  %s360, 4096, %s362, %s351, 2048, 512, 32
        $region44: #{discriminator_forward.1} parent=39 // pred_fallthru
          _
        // Predicated region
        $region45: #{discriminator_forward.1} parent=39 // pred_check
          %p368 = pneg %p109
        $region46: #{discriminator_forward.1} parent=39 // pred_check_branch
          %370 = sbr.rel (%p368) target = $region48
        $region47: #{discriminator_forward.1} parent=39 // pred_region
          %s371 = sand.u32 %s25, 1
          %s372 = scalar_lea.sflag [#allocation7], %s371
          %s373 = sand.u32 %s99, 1
          %s374 = smul.addr %s373, 8
          %s375 = scalar_lea.vmem [#allocation6], %s374
          %s376 = smul.u32 8, %s33
          %s378 = ssub.s32 128, 128
          %379 = vsyncadd %s372, %s378
          %s380 = smul.addr %s376, 16
          %s381 = scalar_lea.hbm %s2, %s380
          %s383 = sshll.u32 %s375, 4
          %s384 = int_to_ptr.vmem [resolvable:$true] %s383
          %386 = dma.hbm_to_vmem [thread:$0]  %s381, 128, %s384, %s372
        $region48: #{discriminator_forward.1} parent=39 // pred_fallthru
          _
        // Predicated region
        $region49: #{discriminator_forward.1} parent=39 // pred_check
          %p387 = pneg %p135
        $region50: #{discriminator_forward.1} parent=39 // pred_check_branch
          %389 = sbr.rel (%p387) target = $region52
        $region51: #{discriminator_forward.1} parent=39 // pred_region
          %s390 = sand.u32 %s25, 1
          %s391 = scalar_lea.sflag [#allocation7], %s390
          %s392 = sand.u32 %s125, 1
          %s393 = smul.addr %s392, 4096
          %s394 = scalar_lea.vmem [#allocation8], %s393
          %s395 = smul.u32 128, %s33
          %s397 = ssub.s32 65536, 65536
          %398 = vsyncadd %s391, %s397
          %s399 = smul.addr %s395, 8
          %s400 = smul.addr %s399, 64
          %s401 = scalar_lea.hbm %s3, %s400
          %s402 = sshll.u32 %s394, 4
          %s403 = int_to_ptr.vmem [resolvable:$true] %s402
          %408 = dma.hbm_to_vmem [thread:$0]  %s401, 65536, %s403, %s391, 512, 512, 32
        $region52: #{discriminator_forward.1} parent=39 // pred_fallthru
          _
      $region40: #{discriminator_forward.1} parent=5 // pred_fallthru
        _
      %p409 = scmp.le.s32.totalorder 1, %s25
      %p410 = scmp.lt.s32.totalorder %s25, 5
      %p411 = pnand %p409, %p410
      %p412 = pneg %p411
      // Predicated region
      $region53: #{discriminator_forward.1} parent=5 // pred_check
        _
      $region54: #{discriminator_forward.1} parent=5 // pred_check_branch
        %414 = sbr.rel (%p411) target = $region56
      $region55: #{discriminator_forward.1} parent=5 // pred_region
        %s415 = ssub.s32 %s25, 1
        %s416 = sand.u32 %s76, 1
        %s417 = scalar_lea.sflag [#allocation5], %s416
        %s418 = sand.u32 %s76, 1
        %s419 = smul.addr %s418, 256
        %s420 = scalar_lea.vmem [#allocation4], %s419
        // Predicated region
        $region57: #{discriminator_forward.1} parent=55 // pred_check
          %p421 = pneg %p89
        $region58: #{discriminator_forward.1} parent=55 // pred_check_branch
          %423 = sbr.rel (%p421) target = $region60
        $region59: #{discriminator_forward.1} parent=55 // pred_region
          %424 = dma.done %s417, 4096
        $region60: #{discriminator_forward.1} parent=55 // pred_fallthru
          _
        %s425 = sand.u32 %s30, 1
        %s426 = scalar_lea.sflag [#allocation7], %s425
        %s427 = sand.u32 %s102, 1
        %s428 = smul.addr %s427, 8
        %s429 = scalar_lea.vmem [#allocation6], %s428
        // Predicated region
        $region61: #{discriminator_forward.1} parent=55 // pred_check
          %p430 = pneg %p115
        $region62: #{discriminator_forward.1} parent=55 // pred_check_branch
          %432 = sbr.rel (%p430) target = $region64
        $region63: #{discriminator_forward.1} parent=55 // pred_region
          %433 = dma.done %s426, 128
        $region64: #{discriminator_forward.1} parent=55 // pred_fallthru
          _
        %s434 = sand.u32 %s30, 1
        %s435 = scalar_lea.sflag [#allocation7], %s434
        %s436 = sand.u32 %s128, 1
        %s437 = smul.addr %s436, 4096
        %s438 = scalar_lea.vmem [#allocation8], %s437
        // Predicated region
        $region65: #{discriminator_forward.1} parent=55 // pred_check
          %p439 = pneg %p141
        $region66: #{discriminator_forward.1} parent=55 // pred_check_branch
          %441 = sbr.rel (%p439) target = $region68
        $region67: #{discriminator_forward.1} parent=55 // pred_region
          %442 = dma.done %s435, 65536
        $region68: #{discriminator_forward.1} parent=55 // pred_fallthru
          _
        // Predicated region
        $region69: #{discriminator_forward.1} parent=55 // pred_check
          %p443 = pneg %p162
        $region70: #{discriminator_forward.1} parent=55 // pred_check_branch
          %445 = sbr.rel (%p443) target = $region72
        $region71: #{discriminator_forward.1} parent=55 // pred_region
          %446 = dma.done [#allocation10], 128
        $region72: #{discriminator_forward.1} parent=55 // pred_fallthru
          _
        // Predicated region
        $region73: #{discriminator_forward.1} parent=55 // pred_check
          %p447 = pneg %p183
        $region74: #{discriminator_forward.1} parent=55 // pred_check_branch
          %449 = sbr.rel (%p447) target = $region76
        $region75: #{discriminator_forward.1} parent=55 // pred_region
          %450 = dma.done [#allocation10], 16384
        $region76: #{discriminator_forward.1} parent=55 // pred_fallthru
          _
        // Predicated region
        $region77: #{discriminator_forward.1} parent=55 // pred_check
          %p451 = pneg %p204
        $region78: #{discriminator_forward.1} parent=55 // pred_check_branch
          %453 = sbr.rel (%p451) target = $region80
        $region79: #{discriminator_forward.1} parent=55 // pred_region
          %454 = dma.done [#allocation13], 32
        $region80: #{discriminator_forward.1} parent=55 // pred_fallthru
          _
        // Predicated region
        $region81: #{discriminator_forward.1} parent=55 // pred_check
          %p455 = pneg %p225
        $region82: #{discriminator_forward.1} parent=55 // pred_check_branch
          %457 = sbr.rel (%p455) target = $region84
        $region83: #{discriminator_forward.1} parent=55 // pred_region
          %458 = dma.done [#allocation13], 32
        $region84: #{discriminator_forward.1} parent=55 // pred_fallthru
          _
        %p459 = scmp.lt.s32.totalorder %s34, 0
        %s460 = scalar_select %p459, %s34, 0
        %s461 = smul.addr %s460, 4
        %s462 = scalar_lea.vmem %s0, %s461
        %p463 = pneg %p63
        %p464 = pneg %p60
        %s465 = sand.u32 %s76, 1
        %s466 = scalar_lea.sflag [#allocation5], %s465
        %s467 = sand.u32 %s76, 1
        %s468 = smul.addr %s467, 256
        %s469 = scalar_lea.vmem [#allocation4], %s468
        %p470 = pneg %p89
        %p471 = pneg %p86
        %s472 = sand.u32 %s30, 1
        %s473 = scalar_lea.sflag [#allocation7], %s472
        %s474 = sand.u32 %s102, 1
        %s475 = smul.addr %s474, 8
        %s476 = scalar_lea.vmem [#allocation6], %s475
        %p477 = pneg %p115
        %p478 = pneg %p112
        %s479 = sand.u32 %s30, 1
        %s480 = scalar_lea.sflag [#allocation7], %s479
        %s481 = sand.u32 %s128, 1
        %s482 = smul.addr %s481, 4096
        %s483 = scalar_lea.vmem [#allocation8], %s482
        %p484 = pneg %p141
        %p485 = pneg %p138
        %p486 = pneg %p162
        %p487 = pneg %p159
        %p488 = pneg %p183
        %p489 = pneg %p180
        %p490 = pneg %p204
        %p491 = pneg %p201
        %p492 = pneg %p225
        %p493 = pneg %p222
        %p494 = pneg %p246
        %p495 = pneg %p243
        %p496 = pneg %p272
        %p497 = pneg %p269
        %p498 = scmp.lt.s32.totalorder %s34, 0
        %s499 = scalar_select %p498, %s34, 0
        %s500 = smul.addr %s499, 8
        %s501 = scalar_lea.vmem %s9, %s500
        %p502 = scmp.lt.s32.totalorder %s34, 0
        %s503 = scalar_select %p502, %s34, 0
        %s504 = smul.addr %s503, 4
        %s505 = scalar_lea.vmem %s0, %s504
        %s506 = smul.u32 8, %s35
        %s507 = smul.u32 8, %s35
        %s508 = smul.u32 128, %s35
        %p509 = scmp.lt.s32.totalorder %s34, 0
        %s510 = scalar_select %p509, %s34, 0
        %s511 = smul.addr %s510, 8
        %s512 = scalar_lea.vmem %s9, %s511
        %p514 = scmp.eq.s32.totalorder %s35, 0
        // Predicated region
        $region85: #{discriminator_forward.1} parent=55 // pred_check
          %p515 = pneg %p514
        $region86: #{discriminator_forward.1} parent=55 // pred_check_branch
          %517 = sbr.rel (%p515) target = $region88
        $region87: #{discriminator_forward.1} parent=55 // pred_region
          %518 = vst [vmem:[#allocation2] sm:$0xff] 0.0
          %519 = vst [vmem:[#allocation2 + $0x8] sm:$0xff] 0.0
          %520 = vst [vmem:[#allocation2 + $0x10] sm:$0xff] 0.0
          %521 = vst [vmem:[#allocation2 + $0x18] sm:$0xff] 0.0
          %522 = vst [vmem:[#allocation2 + $0x20] sm:$0xff] 0.0
          %523 = vst [vmem:[#allocation2 + $0x28] sm:$0xff] 0.0
          %524 = vst [vmem:[#allocation2 + $0x30] sm:$0xff] 0.0
          %525 = vst [vmem:[#allocation2 + $0x38] sm:$0xff] 0.0
        $region88: #{discriminator_forward.1} parent=55 // pred_fallthru
          _
        %v526 = vld [vmem:[%s505] sm:$0xf]
        %v527 = vld [vmem:[%s420] sm:$0xff]
        %v528 = vld [vmem:[%s420 + $0x8] sm:$0xff]
        %v529 = vld [vmem:[%s420 + $0x10] sm:$0xff]
        %v530 = vld [vmem:[%s420 + $0x18] sm:$0xff]
        %v531 = vld [vmem:[%s420 + $0x20] sm:$0xff]
        %v532 = vld [vmem:[%s420 + $0x28] sm:$0xff]
        %v533 = vld [vmem:[%s420 + $0x30] sm:$0xff]
        %v534 = vld [vmem:[%s420 + $0x38] sm:$0xff]
        %v535 = vld [vmem:[%s420 + $0x40] sm:$0xff]
        %v536 = vld [vmem:[%s420 + $0x48] sm:$0xff]
        %v537 = vld [vmem:[%s420 + $0x50] sm:$0xff]
        %v538 = vld [vmem:[%s420 + $0x58] sm:$0xff]
        %v539 = vld [vmem:[%s420 + $0x60] sm:$0xff]
        %v540 = vld [vmem:[%s420 + $0x68] sm:$0xff]
        %v541 = vld [vmem:[%s420 + $0x70] sm:$0xff]
        %v542 = vld [vmem:[%s420 + $0x78] sm:$0xff]
        %v543 = vld [vmem:[%s420 + $0x80] sm:$0xff]
        %v544 = vld [vmem:[%s420 + $0x88] sm:$0xff]
        %v545 = vld [vmem:[%s420 + $0x90] sm:$0xff]
        %v546 = vld [vmem:[%s420 + $0x98] sm:$0xff]
        %v547 = vld [vmem:[%s420 + $0xa0] sm:$0xff]
        %v548 = vld [vmem:[%s420 + $0xa8] sm:$0xff]
        %v549 = vld [vmem:[%s420 + $0xb0] sm:$0xff]
        %v550 = vld [vmem:[%s420 + $0xb8] sm:$0xff]
        %v551 = vld [vmem:[%s420 + $0xc0] sm:$0xff]
        %v552 = vld [vmem:[%s420 + $0xc8] sm:$0xff]
        %v553 = vld [vmem:[%s420 + $0xd0] sm:$0xff]
        %v554 = vld [vmem:[%s420 + $0xd8] sm:$0xff]
        %v555 = vld [vmem:[%s420 + $0xe0] sm:$0xff]
        %v556 = vld [vmem:[%s420 + $0xe8] sm:$0xff]
        %v557 = vld [vmem:[%s420 + $0xf0] sm:$0xff]
        %v558 = vld [vmem:[%s420 + $0xf8] sm:$0xff]
        %v559 = vld [vmem:[%s429] sm:$0xff]
        %v561 = vlaneseq
        %v562 = vshrl.u32 %v561, 7
        %v563 = vsub.s32 0, %v562
        %v564 = vrot.slane %v559, %v563
        %v565 = vlaneseq
        %v566 = vshrl.u32 %v565, 7
        %v567 = vsub.s32 1, %v566
        %v568 = vrot.slane %v559, %v567
        %v569 = vlaneseq
        %v570 = vshrl.u32 %v569, 7
        %v571 = vsub.s32 2, %v570
        %v572 = vrot.slane %v559, %v571
        %v573 = vlaneseq
        %v574 = vshrl.u32 %v573, 7
        %v575 = vsub.s32 3, %v574
        %v576 = vrot.slane %v559, %v575
        %v577 = vlaneseq
        %v578 = vshrl.u32 %v577, 7
        %v579 = vsub.s32 4, %v578
        %v580 = vrot.slane %v559, %v579
        %v581 = vlaneseq
        %v582 = vshrl.u32 %v581, 7
        %v583 = vsub.s32 5, %v582
        %v584 = vrot.slane %v559, %v583
        %v585 = vlaneseq
        %v586 = vshrl.u32 %v585, 7
        %v587 = vsub.s32 6, %v586
        %v588 = vrot.slane %v559, %v587
        %v589 = vlaneseq
        %v590 = vshrl.u32 %v589, 7
        %v591 = vsub.s32 7, %v590
        %v592 = vrot.slane %v559, %v591
        %v633 = vunpack.c.l.b16 %v527
        %v634 = vunpack.c.h.b16 %v527
        %v635 = vunpack.c.l.b16 %v528
        %v636 = vunpack.c.h.b16 %v528
        %v637 = vunpack.c.l.b16 %v529
        %v638 = vunpack.c.h.b16 %v529
        %v639 = vunpack.c.l.b16 %v530
        %v640 = vunpack.c.h.b16 %v530
        %v641 = vunpack.c.l.b16 %v531
        %v642 = vunpack.c.h.b16 %v531
        %v643 = vunpack.c.l.b16 %v532
        %v644 = vunpack.c.h.b16 %v532
        %v645 = vunpack.c.l.b16 %v533
        %v646 = vunpack.c.h.b16 %v533
        %v647 = vunpack.c.l.b16 %v534
        %v648 = vunpack.c.h.b16 %v534
        %v649 = vunpack.c.l.b16 %v535
        %v650 = vunpack.c.h.b16 %v535
        %v651 = vunpack.c.l.b16 %v536
        %v652 = vunpack.c.h.b16 %v536
        %v653 = vunpack.c.l.b16 %v537
        %v654 = vunpack.c.h.b16 %v537
        %v655 = vunpack.c.l.b16 %v538
        %v656 = vunpack.c.h.b16 %v538
        %v657 = vunpack.c.l.b16 %v539
        %v658 = vunpack.c.h.b16 %v539
        %v659 = vunpack.c.l.b16 %v540
        %v660 = vunpack.c.h.b16 %v540
        %v661 = vunpack.c.l.b16 %v541
        %v662 = vunpack.c.h.b16 %v541
        %v663 = vunpack.c.l.b16 %v542
        %v664 = vunpack.c.h.b16 %v542
        %v665 = vunpack.c.l.b16 %v543
        %v666 = vunpack.c.h.b16 %v543
        %v667 = vunpack.c.l.b16 %v544
        %v668 = vunpack.c.h.b16 %v544
        %v669 = vunpack.c.l.b16 %v545
        %v670 = vunpack.c.h.b16 %v545
        %v671 = vunpack.c.l.b16 %v546
        %v672 = vunpack.c.h.b16 %v546
        %v673 = vunpack.c.l.b16 %v547
        %v674 = vunpack.c.h.b16 %v547
        %v675 = vunpack.c.l.b16 %v548
        %v676 = vunpack.c.h.b16 %v548
        %v677 = vunpack.c.l.b16 %v549
        %v678 = vunpack.c.h.b16 %v549
        %v679 = vunpack.c.l.b16 %v550
        %v680 = vunpack.c.h.b16 %v550
        %v681 = vunpack.c.l.b16 %v551
        %v682 = vunpack.c.h.b16 %v551
        %v683 = vunpack.c.l.b16 %v552
        %v684 = vunpack.c.h.b16 %v552
        %v685 = vunpack.c.l.b16 %v553
        %v686 = vunpack.c.h.b16 %v553
        %v687 = vunpack.c.l.b16 %v554
        %v688 = vunpack.c.h.b16 %v554
        %v689 = vunpack.c.l.b16 %v555
        %v690 = vunpack.c.h.b16 %v555
        %v691 = vunpack.c.l.b16 %v556
        %v692 = vunpack.c.h.b16 %v556
        %v693 = vunpack.c.l.b16 %v557
        %v694 = vunpack.c.h.b16 %v557
        %v695 = vunpack.c.l.b16 %v558
        %v696 = vunpack.c.h.b16 %v558
        %v697 = vpack.c.b16 %v641, %v633
        %v698 = vpack.c.b16 %v642, %v634
        %v699 = vpack.c.b16 %v643, %v635
        %v700 = vpack.c.b16 %v644, %v636
        %v701 = vpack.c.b16 %v645, %v637
        %v702 = vpack.c.b16 %v646, %v638
        %v703 = vpack.c.b16 %v647, %v639
        %v704 = vpack.c.b16 %v648, %v640
        %v705 = vpack.c.b16 %v657, %v649
        %v706 = vpack.c.b16 %v658, %v650
        %v707 = vpack.c.b16 %v659, %v651
        %v708 = vpack.c.b16 %v660, %v652
        %v709 = vpack.c.b16 %v661, %v653
        %v710 = vpack.c.b16 %v662, %v654
        %v711 = vpack.c.b16 %v663, %v655
        %v712 = vpack.c.b16 %v664, %v656
        %v713 = vpack.c.b16 %v673, %v665
        %v714 = vpack.c.b16 %v674, %v666
        %v715 = vpack.c.b16 %v675, %v667
        %v716 = vpack.c.b16 %v676, %v668
        %v717 = vpack.c.b16 %v677, %v669
        %v718 = vpack.c.b16 %v678, %v670
        %v719 = vpack.c.b16 %v679, %v671
        %v720 = vpack.c.b16 %v680, %v672
        %v721 = vpack.c.b16 %v689, %v681
        %v722 = vpack.c.b16 %v690, %v682
        %v723 = vpack.c.b16 %v691, %v683
        %v724 = vpack.c.b16 %v692, %v684
        %v725 = vpack.c.b16 %v693, %v685
        %v726 = vpack.c.b16 %v694, %v686
        %v727 = vpack.c.b16 %v695, %v687
        %v728 = vpack.c.b16 %v696, %v688
        %vm761 = vcmask 523264
        %v763 = vsel %vm761, %v526, 0
        %765 = vmatprep.subr.bf16.mxu0 %v698
        %766 = vmatpush1.bf16.msra.mxu0 %v697
        %767 = vmatprep.subr.bf16.mxu0 %v706
        %768 = vmatpush1.bf16.msra.mxu0 %v705
        %769 = vmatprep.subr.bf16.mxu0 %v714
        %770 = vmatpush1.bf16.msra.mxu0 %v713
        %771 = vmatprep.subr.bf16.mxu0 %v722
        %772 = vmatpush1.bf16.msra.mxu0 %v721
        %773 = vmatprep.subr.bf16.mxu0 0
        %774 = vmatpush1.bf16.msra.mxu0 0
        %775 = vmatprep.subr.bf16.mxu0 0
        %776 = vmatpush1.bf16.msra.mxu0 0
        %777 = vmatprep.subr.bf16.mxu0 0
        %778 = vmatpush1.bf16.msra.mxu0 0
        %779 = vmatprep.subr.bf16.mxu0 0
        %780 = vmatpush1.bf16.msra.mxu0 0
        %781 = vmatprep.subr.bf16.mxu0 0
        %782 = vmatpush1.bf16.msra.mxu0 0
        %783 = vmatprep.subr.bf16.mxu0 0
        %784 = vmatpush1.bf16.msra.mxu0 0
        %785 = vmatprep.subr.bf16.mxu0 0
        %786 = vmatpush1.bf16.msra.mxu0 0
        %787 = vmatprep.subr.bf16.mxu0 0
        %788 = vmatpush1.bf16.msra.mxu0 0
        %789 = vmatprep.subr.bf16.mxu0 0
        %790 = vmatpush1.bf16.msra.mxu0 0
        %791 = vmatprep.subr.bf16.mxu0 0
        %792 = vmatpush1.bf16.msra.mxu0 0
        %793 = vmatprep.subr.bf16.mxu0 0
        %794 = vmatpush1.bf16.msra.mxu0 0
        %795 = vmatprep.subr.bf16.mxu0 0
        %796 = vmatpush1.bf16.msra.mxu0 0
        %797 = vmatprep.mubr.bf16.mxu0 0
        %798 = vmatmul.mubr.bf16.gmra.mrb[0].mxu0 %v763
        %v799 = vpop.f32.mrb[0].mxu0
        %v800 = vadd.f32 %v564, %v799
        %v801 = vpop.f32.mrb[0].mxu0
        %v802 = vadd.f32 %v568, %v801
        %v803 = vpop.f32.mrb[0].mxu0
        %v804 = vpop.f32.mrb[0].mxu0
        %805 = vdwg.mxu0
        %806 = vmatprep.subr.bf16.mxu0 %v700
        %807 = vmatpush1.bf16.msra.mxu0 %v699
        %808 = vmatprep.subr.bf16.mxu0 %v708
        %809 = vmatpush1.bf16.msra.mxu0 %v707
        %810 = vmatprep.subr.bf16.mxu0 %v716
        %811 = vmatpush1.bf16.msra.mxu0 %v715
        %812 = vmatprep.subr.bf16.mxu0 %v724
        %813 = vmatpush1.bf16.msra.mxu0 %v723
        %814 = vmatprep.subr.bf16.mxu0 0
        %815 = vmatpush1.bf16.msra.mxu0 0
        %816 = vmatprep.subr.bf16.mxu0 0
        %817 = vmatpush1.bf16.msra.mxu0 0
        %818 = vmatprep.subr.bf16.mxu0 0
        %819 = vmatpush1.bf16.msra.mxu0 0
        %820 = vmatprep.subr.bf16.mxu0 0
        %821 = vmatpush1.bf16.msra.mxu0 0
        %822 = vmatprep.subr.bf16.mxu0 0
        %823 = vmatpush1.bf16.msra.mxu0 0
        %824 = vmatprep.subr.bf16.mxu0 0
        %825 = vmatpush1.bf16.msra.mxu0 0
        %826 = vmatprep.subr.bf16.mxu0 0
        %827 = vmatpush1.bf16.msra.mxu0 0
        %828 = vmatprep.subr.bf16.mxu0 0
        %829 = vmatpush1.bf16.msra.mxu0 0
        %830 = vmatprep.subr.bf16.mxu0 0
        %831 = vmatpush1.bf16.msra.mxu0 0
        %832 = vmatprep.subr.bf16.mxu0 0
        %833 = vmatpush1.bf16.msra.mxu0 0
        %834 = vmatprep.subr.bf16.mxu0 0
        %835 = vmatpush1.bf16.msra.mxu0 0
        %836 = vmatprep.subr.bf16.mxu0 0
        %837 = vmatpush1.bf16.msra.mxu0 0
        %838 = vmatprep.mubr.bf16.mxu0 0
        %839 = vmatmul.mubr.bf16.gmra.mrb[0].mxu0 %v763
        %v840 = vpop.f32.mrb[0].mxu0
        %v841 = vadd.f32 %v572, %v840
        %v842 = vpop.f32.mrb[0].mxu0
        %v843 = vadd.f32 %v576, %v842
        %v844 = vpop.f32.mrb[0].mxu0
        %v845 = vpop.f32.mrb[0].mxu0
        %846 = vdwg.mxu0
        %847 = vmatprep.subr.bf16.mxu0 %v702
        %848 = vmatpush1.bf16.msra.mxu0 %v701
        %849 = vmatprep.subr.bf16.mxu0 %v710
        %850 = vmatpush1.bf16.msra.mxu0 %v709
        %851 = vmatprep.subr.bf16.mxu0 %v718
        %852 = vmatpush1.bf16.msra.mxu0 %v717
        %853 = vmatprep.subr.bf16.mxu0 %v726
        %854 = vmatpush1.bf16.msra.mxu0 %v725
        %855 = vmatprep.subr.bf16.mxu0 0
        %856 = vmatpush1.bf16.msra.mxu0 0
        %857 = vmatprep.subr.bf16.mxu0 0
        %858 = vmatpush1.bf16.msra.mxu0 0
        %859 = vmatprep.subr.bf16.mxu0 0
        %860 = vmatpush1.bf16.msra.mxu0 0
        %861 = vmatprep.subr.bf16.mxu0 0
        %862 = vmatpush1.bf16.msra.mxu0 0
        %863 = vmatprep.subr.bf16.mxu0 0
        %864 = vmatpush1.bf16.msra.mxu0 0
        %865 = vmatprep.subr.bf16.mxu0 0
        %866 = vmatpush1.bf16.msra.mxu0 0
        %867 = vmatprep.subr.bf16.mxu0 0
        %868 = vmatpush1.bf16.msra.mxu0 0
        %869 = vmatprep.subr.bf16.mxu0 0
        %870 = vmatpush1.bf16.msra.mxu0 0
        %871 = vmatprep.subr.bf16.mxu0 0
        %872 = vmatpush1.bf16.msra.mxu0 0
        %873 = vmatprep.subr.bf16.mxu0 0
        %874 = vmatpush1.bf16.msra.mxu0 0
        %875 = vmatprep.subr.bf16.mxu0 0
        %876 = vmatpush1.bf16.msra.mxu0 0
        %877 = vmatprep.subr.bf16.mxu0 0
        %878 = vmatpush1.bf16.msra.mxu0 0
        %879 = vmatprep.mubr.bf16.mxu0 0
        %880 = vmatmul.mubr.bf16.gmra.mrb[0].mxu0 %v763
        %v881 = vpop.f32.mrb[0].mxu0
        %v882 = vadd.f32 %v580, %v881
        %v883 = vpop.f32.mrb[0].mxu0
        %v884 = vadd.f32 %v584, %v883
        %v885 = vpop.f32.mrb[0].mxu0
        %v886 = vpop.f32.mrb[0].mxu0
        %887 = vdwg.mxu0
        %888 = vmatprep.subr.bf16.mxu0 %v704
        %889 = vmatpush1.bf16.msra.mxu0 %v703
        %890 = vmatprep.subr.bf16.mxu0 %v712
        %891 = vmatpush1.bf16.msra.mxu0 %v711
        %892 = vmatprep.subr.bf16.mxu0 %v720
        %893 = vmatpush1.bf16.msra.mxu0 %v719
        %894 = vmatprep.subr.bf16.mxu0 %v728
        %895 = vmatpush1.bf16.msra.mxu0 %v727
        %896 = vmatprep.subr.bf16.mxu0 0
        %897 = vmatpush1.bf16.msra.mxu0 0
        %898 = vmatprep.subr.bf16.mxu0 0
        %899 = vmatpush1.bf16.msra.mxu0 0
        %900 = vmatprep.subr.bf16.mxu0 0
        %901 = vmatpush1.bf16.msra.mxu0 0
        %902 = vmatprep.subr.bf16.mxu0 0
        %903 = vmatpush1.bf16.msra.mxu0 0
        %904 = vmatprep.subr.bf16.mxu0 0
        %905 = vmatpush1.bf16.msra.mxu0 0
        %906 = vmatprep.subr.bf16.mxu0 0
        %907 = vmatpush1.bf16.msra.mxu0 0
        %908 = vmatprep.subr.bf16.mxu0 0
        %909 = vmatpush1.bf16.msra.mxu0 0
        %910 = vmatprep.subr.bf16.mxu0 0
        %911 = vmatpush1.bf16.msra.mxu0 0
        %912 = vmatprep.subr.bf16.mxu0 0
        %913 = vmatpush1.bf16.msra.mxu0 0
        %914 = vmatprep.subr.bf16.mxu0 0
        %915 = vmatpush1.bf16.msra.mxu0 0
        %916 = vmatprep.subr.bf16.mxu0 0
        %917 = vmatpush1.bf16.msra.mxu0 0
        %918 = vmatprep.subr.bf16.mxu0 0
        %919 = vmatpush1.bf16.msra.mxu0 0
        %920 = vmatprep.mubr.bf16.mxu0 0
        %921 = vmatmul.mubr.bf16.gmra.mrb[0].mxu0 %v763
        %v922 = vpop.f32.mrb[0].mxu0
        %v923 = vadd.f32 %v588, %v922
        %v924 = vpop.f32.mrb[0].mxu0
        %v925 = vadd.f32 %v592, %v924
        %v926 = vpop.f32.mrb[0].mxu0
        %v927 = vpop.f32.mrb[0].mxu0
        %928 = vdwg.mxu0
        %vm929 = vcmp.gt.f32.partialorder %v800, 0.0
        %vm930 = vcmp.gt.f32.partialorder %v802, 0.0
        %vm931 = vcmp.gt.f32.partialorder %v841, 0.0
        %vm932 = vcmp.gt.f32.partialorder %v843, 0.0
        %vm933 = vcmp.gt.f32.partialorder %v882, 0.0
        %vm934 = vcmp.gt.f32.partialorder %v884, 0.0
        %vm935 = vcmp.gt.f32.partialorder %v923, 0.0
        %vm936 = vcmp.gt.f32.partialorder %v925, 0.0
        %v937 = vmul.f32 %v800, 0.2
        %v938 = vmul.f32 %v802, 0.2
        %v939 = vmul.f32 %v841, 0.2
        %v940 = vmul.f32 %v843, 0.2
        %v941 = vmul.f32 %v882, 0.2
        %v942 = vmul.f32 %v884, 0.2
        %v943 = vmul.f32 %v923, 0.2
        %v944 = vmul.f32 %v925, 0.2
        %v945 = vsel %vm929, %v800, %v937
        %v946 = vsel %vm930, %v802, %v938
        %v947 = vsel %vm931, %v841, %v939
        %v948 = vsel %vm932, %v843, %v940
        %v949 = vsel %vm933, %v882, %v941
        %v950 = vsel %vm934, %v884, %v942
        %v951 = vsel %vm935, %v923, %v943
        %v952 = vsel %vm936, %v925, %v944
        %v953 = vld [vmem:[#allocation2] sm:$0xff]
        %v954 = vld [vmem:[#allocation2 + $0x8] sm:$0xff]
        %v955 = vld [vmem:[#allocation2 + $0x10] sm:$0xff]
        %v956 = vld [vmem:[#allocation2 + $0x18] sm:$0xff]
        %v957 = vld [vmem:[#allocation2 + $0x20] sm:$0xff]
        %v958 = vld [vmem:[#allocation2 + $0x28] sm:$0xff]
        %v959 = vld [vmem:[#allocation2 + $0x30] sm:$0xff]
        %v960 = vld [vmem:[#allocation2 + $0x38] sm:$0xff]
        %v961 = vpack.c.bf16 %v945, %v945
        %v962 = vpack.c.bf16 %v946, %v946
        %v963 = vpack.c.bf16 %v947, %v947
        %v964 = vpack.c.bf16 %v948, %v948
        %v965 = vpack.c.bf16 %v949, %v949
        %v966 = vpack.c.bf16 %v950, %v950
        %v967 = vpack.c.bf16 %v951, %v951
        %v968 = vpack.c.bf16 %v952, %v952
        %v969 = vld [vmem:[%s438] sm:$0xff]
        %v970 = vld [vmem:[%s438 + $0x8] sm:$0xff]
        %v971 = vld [vmem:[%s438 + $0x10] sm:$0xff]
        %v972 = vld [vmem:[%s438 + $0x18] sm:$0xff]
        %v973 = vld [vmem:[%s438 + $0x20] sm:$0xff]
        %v974 = vld [vmem:[%s438 + $0x28] sm:$0xff]
        %v975 = vld [vmem:[%s438 + $0x30] sm:$0xff]
        %v976 = vld [vmem:[%s438 + $0x38] sm:$0xff]
        %v977 = vld [vmem:[%s438 + $0x40] sm:$0xff]
        %v978 = vld [vmem:[%s438 + $0x48] sm:$0xff]
        %v979 = vld [vmem:[%s438 + $0x50] sm:$0xff]
        %v980 = vld [vmem:[%s438 + $0x58] sm:$0xff]
        %v981 = vld [vmem:[%s438 + $0x60] sm:$0xff]
        %v982 = vld [vmem:[%s438 + $0x68] sm:$0xff]
        %v983 = vld [vmem:[%s438 + $0x70] sm:$0xff]
        %v984 = vld [vmem:[%s438 + $0x78] sm:$0xff]
        %v985 = vld [vmem:[%s438 + $0x80] sm:$0xff]
        %v986 = vld [vmem:[%s438 + $0x88] sm:$0xff]
        %v987 = vld [vmem:[%s438 + $0x90] sm:$0xff]
        %v988 = vld [vmem:[%s438 + $0x98] sm:$0xff]
        %v989 = vld [vmem:[%s438 + $0xa0] sm:$0xff]
        %v990 = vld [vmem:[%s438 + $0xa8] sm:$0xff]
        %v991 = vld [vmem:[%s438 + $0xb0] sm:$0xff]
        %v992 = vld [vmem:[%s438 + $0xb8] sm:$0xff]
        %v993 = vld [vmem:[%s438 + $0xc0] sm:$0xff]
        %v994 = vld [vmem:[%s438 + $0xc8] sm:$0xff]
        %v995 = vld [vmem:[%s438 + $0xd0] sm:$0xff]
        %v996 = vld [vmem:[%s438 + $0xd8] sm:$0xff]
        %v997 = vld [vmem:[%s438 + $0xe0] sm:$0xff]
        %v998 = vld [vmem:[%s438 + $0xe8] sm:$0xff]
        %v999 = vld [vmem:[%s438 + $0xf0] sm:$0xff]
        %v1000 = vld [vmem:[%s438 + $0xf8] sm:$0xff]
        %v1001 = vld [vmem:[%s438 + $0x100] sm:$0xff]
        %v1002 = vld [vmem:[%s438 + $0x108] sm:$0xff]
        %v1003 = vld [vmem:[%s438 + $0x110] sm:$0xff]
        %v1004 = vld [vmem:[%s438 + $0x118] sm:$0xff]
        %v1005 = vld [vmem:[%s438 + $0x120] sm:$0xff]
        %v1006 = vld [vmem:[%s438 + $0x128] sm:$0xff]
        %v1007 = vld [vmem:[%s438 + $0x130] sm:$0xff]
        %v1008 = vld [vmem:[%s438 + $0x138] sm:$0xff]
        %v1009 = vld [vmem:[%s438 + $0x140] sm:$0xff]
        %v1010 = vld [vmem:[%s438 + $0x148] sm:$0xff]
        %v1011 = vld [vmem:[%s438 + $0x150] sm:$0xff]
        %v1012 = vld [vmem:[%s438 + $0x158] sm:$0xff]
        %v1013 = vld [vmem:[%s438 + $0x160] sm:$0xff]
        %v1014 = vld [vmem:[%s438 + $0x168] sm:$0xff]
        %v1015 = vld [vmem:[%s438 + $0x170] sm:$0xff]
        %v1016 = vld [vmem:[%s438 + $0x178] sm:$0xff]
        %v1017 = vld [vmem:[%s438 + $0x180] sm:$0xff]
        %v1018 = vld [vmem:[%s438 + $0x188] sm:$0xff]
        %v1019 = vld [vmem:[%s438 + $0x190] sm:$0xff]
        %v1020 = vld [vmem:[%s438 + $0x198] sm:$0xff]
        %v1021 = vld [vmem:[%s438 + $0x1a0] sm:$0xff]
        %v1022 = vld [vmem:[%s438 + $0x1a8] sm:$0xff]
        %v1023 = vld [vmem:[%s438 + $0x1b0] sm:$0xff]
        %v1024 = vld [vmem:[%s438 + $0x1b8] sm:$0xff]
        %v1025 = vld [vmem:[%s438 + $0x1c0] sm:$0xff]
        %v1026 = vld [vmem:[%s438 + $0x1c8] sm:$0xff]
        %v1027 = vld [vmem:[%s438 + $0x1d0] sm:$0xff]
        %v1028 = vld [vmem:[%s438 + $0x1d8] sm:$0xff]
        %v1029 = vld [vmem:[%s438 + $0x1e0] sm:$0xff]
        %v1030 = vld [vmem:[%s438 + $0x1e8] sm:$0xff]
        %v1031 = vld [vmem:[%s438 + $0x1f0] sm:$0xff]
        %v1032 = vld [vmem:[%s438 + $0x1f8] sm:$0xff]
        %v1033 = vld [vmem:[%s438 + $0x200] sm:$0xff]
        %v1034 = vld [vmem:[%s438 + $0x208] sm:$0xff]
        %v1035 = vld [vmem:[%s438 + $0x210] sm:$0xff]
        %v1036 = vld [vmem:[%s438 + $0x218] sm:$0xff]
        %v1037 = vld [vmem:[%s438 + $0x220] sm:$0xff]
        %v1038 = vld [vmem:[%s438 + $0x228] sm:$0xff]
        %v1039 = vld [vmem:[%s438 + $0x230] sm:$0xff]
        %v1040 = vld [vmem:[%s438 + $0x238] sm:$0xff]
        %v1041 = vld [vmem:[%s438 + $0x240] sm:$0xff]
        %v1042 = vld [vmem:[%s438 + $0x248] sm:$0xff]
        %v1043 = vld [vmem:[%s438 + $0x250] sm:$0xff]
        %v1044 = vld [vmem:[%s438 + $0x258] sm:$0xff]
        %v1045 = vld [vmem:[%s438 + $0x260] sm:$0xff]
        %v1046 = vld [vmem:[%s438 + $0x268] sm:$0xff]
        %v1047 = vld [vmem:[%s438 + $0x270] sm:$0xff]
        %v1048 = vld [vmem:[%s438 + $0x278] sm:$0xff]
        %v1049 = vld [vmem:[%s438 + $0x280] sm:$0xff]
        %v1050 = vld [vmem:[%s438 + $0x288] sm:$0xff]
        %v1051 = vld [vmem:[%s438 + $0x290] sm:$0xff]
        %v1052 = vld [vmem:[%s438 + $0x298] sm:$0xff]
        %v1053 = vld [vmem:[%s438 + $0x2a0] sm:$0xff]
        %v1054 = vld [vmem:[%s438 + $0x2a8] sm:$0xff]
        %v1055 = vld [vmem:[%s438 + $0x2b0] sm:$0xff]
        %v1056 = vld [vmem:[%s438 + $0x2b8] sm:$0xff]
        %v1057 = vld [vmem:[%s438 + $0x2c0] sm:$0xff]
        %v1058 = vld [vmem:[%s438 + $0x2c8] sm:$0xff]
        %v1059 = vld [vmem:[%s438 + $0x2d0] sm:$0xff]
        %v1060 = vld [vmem:[%s438 + $0x2d8] sm:$0xff]
        %v1061 = vld [vmem:[%s438 + $0x2e0] sm:$0xff]
        %v1062 = vld [vmem:[%s438 + $0x2e8] sm:$0xff]
        %v1063 = vld [vmem:[%s438 + $0x2f0] sm:$0xff]
        %v1064 = vld [vmem:[%s438 + $0x2f8] sm:$0xff]
        %v1065 = vld [vmem:[%s438 + $0x300] sm:$0xff]
        %v1066 = vld [vmem:[%s438 + $0x308] sm:$0xff]
        %v1067 = vld [vmem:[%s438 + $0x310] sm:$0xff]
        %v1068 = vld [vmem:[%s438 + $0x318] sm:$0xff]
        %v1069 = vld [vmem:[%s438 + $0x320] sm:$0xff]
        %v1070 = vld [vmem:[%s438 + $0x328] sm:$0xff]
        %v1071 = vld [vmem:[%s438 + $0x330] sm:$0xff]
        %v1072 = vld [vmem:[%s438 + $0x338] sm:$0xff]
        %v1073 = vld [vmem:[%s438 + $0x340] sm:$0xff]
        %v1074 = vld [vmem:[%s438 + $0x348] sm:$0xff]
        %v1075 = vld [vmem:[%s438 + $0x350] sm:$0xff]
        %v1076 = vld [vmem:[%s438 + $0x358] sm:$0xff]
        %v1077 = vld [vmem:[%s438 + $0x360] sm:$0xff]
        %v1078 = vld [vmem:[%s438 + $0x368] sm:$0xff]
        %v1079 = vld [vmem:[%s438 + $0x370] sm:$0xff]
        %v1080 = vld [vmem:[%s438 + $0x378] sm:$0xff]
        %v1081 = vld [vmem:[%s438 + $0x380] sm:$0xff]
        %v1082 = vld [vmem:[%s438 + $0x388] sm:$0xff]
        %v1083 = vld [vmem:[%s438 + $0x390] sm:$0xff]
        %v1084 = vld [vmem:[%s438 + $0x398] sm:$0xff]
        %v1085 = vld [vmem:[%s438 + $0x3a0] sm:$0xff]
        %v1086 = vld [vmem:[%s438 + $0x3a8] sm:$0xff]
        %v1087 = vld [vmem:[%s438 + $0x3b0] sm:$0xff]
        %v1088 = vld [vmem:[%s438 + $0x3b8] sm:$0xff]
        %v1089 = vld [vmem:[%s438 + $0x3c0] sm:$0xff]
        %v1090 = vld [vmem:[%s438 + $0x3c8] sm:$0xff]
        %v1091 = vld [vmem:[%s438 + $0x3d0] sm:$0xff]
        %v1092 = vld [vmem:[%s438 + $0x3d8] sm:$0xff]
        %v1093 = vld [vmem:[%s438 + $0x3e0] sm:$0xff]
        %v1094 = vld [vmem:[%s438 + $0x3e8] sm:$0xff]
        %v1095 = vld [vmem:[%s438 + $0x3f0] sm:$0xff]
        %v1096 = vld [vmem:[%s438 + $0x3f8] sm:$0xff]
        %v1097 = vld [vmem:[%s438 + $0x400] sm:$0xff]
        %v1098 = vld [vmem:[%s438 + $0x408] sm:$0xff]
        %v1099 = vld [vmem:[%s438 + $0x410] sm:$0xff]
        %v1100 = vld [vmem:[%s438 + $0x418] sm:$0xff]
        %v1101 = vld [vmem:[%s438 + $0x420] sm:$0xff]
        %v1102 = vld [vmem:[%s438 + $0x428] sm:$0xff]
        %v1103 = vld [vmem:[%s438 + $0x430] sm:$0xff]
        %v1104 = vld [vmem:[%s438 + $0x438] sm:$0xff]
        %v1105 = vld [vmem:[%s438 + $0x440] sm:$0xff]
        %v1106 = vld [vmem:[%s438 + $0x448] sm:$0xff]
        %v1107 = vld [vmem:[%s438 + $0x450] sm:$0xff]
        %v1108 = vld [vmem:[%s438 + $0x458] sm:$0xff]
        %v1109 = vld [vmem:[%s438 + $0x460] sm:$0xff]
        %v1110 = vld [vmem:[%s438 + $0x468] sm:$0xff]
        %v1111 = vld [vmem:[%s438 + $0x470] sm:$0xff]
        %v1112 = vld [vmem:[%s438 + $0x478] sm:$0xff]
        %v1113 = vld [vmem:[%s438 + $0x480] sm:$0xff]
        %v1114 = vld [vmem:[%s438 + $0x488] sm:$0xff]
        %v1115 = vld [vmem:[%s438 + $0x490] sm:$0xff]
        %v1116 = vld [vmem:[%s438 + $0x498] sm:$0xff]
        %v1117 = vld [vmem:[%s438 + $0x4a0] sm:$0xff]
        %v1118 = vld [vmem:[%s438 + $0x4a8] sm:$0xff]
        %v1119 = vld [vmem:[%s438 + $0x4b0] sm:$0xff]
        %v1120 = vld [vmem:[%s438 + $0x4b8] sm:$0xff]
        %v1121 = vld [vmem:[%s438 + $0x4c0] sm:$0xff]
        %v1122 = vld [vmem:[%s438 + $0x4c8] sm:$0xff]
        %v1123 = vld [vmem:[%s438 + $0x4d0] sm:$0xff]
        %v1124 = vld [vmem:[%s438 + $0x4d8] sm:$0xff]
        %v1125 = vld [vmem:[%s438 + $0x4e0] sm:$0xff]
        %v1126 = vld [vmem:[%s438 + $0x4e8] sm:$0xff]
        %v1127 = vld [vmem:[%s438 + $0x4f0] sm:$0xff]
        %v1128 = vld [vmem:[%s438 + $0x4f8] sm:$0xff]
        %v1129 = vld [vmem:[%s438 + $0x500] sm:$0xff]
        %v1130 = vld [vmem:[%s438 + $0x508] sm:$0xff]
        %v1131 = vld [vmem:[%s438 + $0x510] sm:$0xff]
        %v1132 = vld [vmem:[%s438 + $0x518] sm:$0xff]
        %v1133 = vld [vmem:[%s438 + $0x520] sm:$0xff]
        %v1134 = vld [vmem:[%s438 + $0x528] sm:$0xff]
        %v1135 = vld [vmem:[%s438 + $0x530] sm:$0xff]
        %v1136 = vld [vmem:[%s438 + $0x538] sm:$0xff]
        %v1137 = vld [vmem:[%s438 + $0x540] sm:$0xff]
        %v1138 = vld [vmem:[%s438 + $0x548] sm:$0xff]
        %v1139 = vld [vmem:[%s438 + $0x550] sm:$0xff]
        %v1140 = vld [vmem:[%s438 + $0x558] sm:$0xff]
        %v1141 = vld [vmem:[%s438 + $0x560] sm:$0xff]
        %v1142 = vld [vmem:[%s438 + $0x568] sm:$0xff]
        %v1143 = vld [vmem:[%s438 + $0x570] sm:$0xff]
        %v1144 = vld [vmem:[%s438 + $0x578] sm:$0xff]
        %v1145 = vld [vmem:[%s438 + $0x580] sm:$0xff]
        %v1146 = vld [vmem:[%s438 + $0x588] sm:$0xff]
        %v1147 = vld [vmem:[%s438 + $0x590] sm:$0xff]
        %v1148 = vld [vmem:[%s438 + $0x598] sm:$0xff]
        %v1149 = vld [vmem:[%s438 + $0x5a0] sm:$0xff]
        %v1150 = vld [vmem:[%s438 + $0x5a8] sm:$0xff]
        %v1151 = vld [vmem:[%s438 + $0x5b0] sm:$0xff]
        %v1152 = vld [vmem:[%s438 + $0x5b8] sm:$0xff]
        %v1153 = vld [vmem:[%s438 + $0x5c0] sm:$0xff]
        %v1154 = vld [vmem:[%s438 + $0x5c8] sm:$0xff]
        %v1155 = vld [vmem:[%s438 + $0x5d0] sm:$0xff]
        %v1156 = vld [vmem:[%s438 + $0x5d8] sm:$0xff]
        %v1157 = vld [vmem:[%s438 + $0x5e0] sm:$0xff]
        %v1158 = vld [vmem:[%s438 + $0x5e8] sm:$0xff]
        %v1159 = vld [vmem:[%s438 + $0x5f0] sm:$0xff]
        %v1160 = vld [vmem:[%s438 + $0x5f8] sm:$0xff]
        %v1161 = vld [vmem:[%s438 + $0x600] sm:$0xff]
        %v1162 = vld [vmem:[%s438 + $0x608] sm:$0xff]
        %v1163 = vld [vmem:[%s438 + $0x610] sm:$0xff]
        %v1164 = vld [vmem:[%s438 + $0x618] sm:$0xff]
        %v1165 = vld [vmem:[%s438 + $0x620] sm:$0xff]
        %v1166 = vld [vmem:[%s438 + $0x628] sm:$0xff]
        %v1167 = vld [vmem:[%s438 + $0x630] sm:$0xff]
        %v1168 = vld [vmem:[%s438 + $0x638] sm:$0xff]
        %v1169 = vld [vmem:[%s438 + $0x640] sm:$0xff]
        %v1170 = vld [vmem:[%s438 + $0x648] sm:$0xff]
        %v1171 = vld [vmem:[%s438 + $0x650] sm:$0xff]
        %v1172 = vld [vmem:[%s438 + $0x658] sm:$0xff]
        %v1173 = vld [vmem:[%s438 + $0x660] sm:$0xff]
        %v1174 = vld [vmem:[%s438 + $0x668] sm:$0xff]
        %v1175 = vld [vmem:[%s438 + $0x670] sm:$0xff]
        %v1176 = vld [vmem:[%s438 + $0x678] sm:$0xff]
        %v1177 = vld [vmem:[%s438 + $0x680] sm:$0xff]
        %v1178 = vld [vmem:[%s438 + $0x688] sm:$0xff]
        %v1179 = vld [vmem:[%s438 + $0x690] sm:$0xff]
        %v1180 = vld [vmem:[%s438 + $0x698] sm:$0xff]
        %v1181 = vld [vmem:[%s438 + $0x6a0] sm:$0xff]
        %v1182 = vld [vmem:[%s438 + $0x6a8] sm:$0xff]
        %v1183 = vld [vmem:[%s438 + $0x6b0] sm:$0xff]
        %v1184 = vld [vmem:[%s438 + $0x6b8] sm:$0xff]
        %v1185 = vld [vmem:[%s438 + $0x6c0] sm:$0xff]
        %v1186 = vld [vmem:[%s438 + $0x6c8] sm:$0xff]
        %v1187 = vld [vmem:[%s438 + $0x6d0] sm:$0xff]
        %v1188 = vld [vmem:[%s438 + $0x6d8] sm:$0xff]
        %v1189 = vld [vmem:[%s438 + $0x6e0] sm:$0xff]
        %v1190 = vld [vmem:[%s438 + $0x6e8] sm:$0xff]
        %v1191 = vld [vmem:[%s438 + $0x6f0] sm:$0xff]
        %v1192 = vld [vmem:[%s438 + $0x6f8] sm:$0xff]
        %v1193 = vld [vmem:[%s438 + $0x700] sm:$0xff]
        %v1194 = vld [vmem:[%s438 + $0x708] sm:$0xff]
        %v1195 = vld [vmem:[%s438 + $0x710] sm:$0xff]
        %v1196 = vld [vmem:[%s438 + $0x718] sm:$0xff]
        %v1197 = vld [vmem:[%s438 + $0x720] sm:$0xff]
        %v1198 = vld [vmem:[%s438 + $0x728] sm:$0xff]
        %v1199 = vld [vmem:[%s438 + $0x730] sm:$0xff]
        %v1200 = vld [vmem:[%s438 + $0x738] sm:$0xff]
        %v1201 = vld [vmem:[%s438 + $0x740] sm:$0xff]
        %v1202 = vld [vmem:[%s438 + $0x748] sm:$0xff]
        %v1203 = vld [vmem:[%s438 + $0x750] sm:$0xff]
        %v1204 = vld [vmem:[%s438 + $0x758] sm:$0xff]
        %v1205 = vld [vmem:[%s438 + $0x760] sm:$0xff]
        %v1206 = vld [vmem:[%s438 + $0x768] sm:$0xff]
        %v1207 = vld [vmem:[%s438 + $0x770] sm:$0xff]
        %v1208 = vld [vmem:[%s438 + $0x778] sm:$0xff]
        %v1209 = vld [vmem:[%s438 + $0x780] sm:$0xff]
        %v1210 = vld [vmem:[%s438 + $0x788] sm:$0xff]
        %v1211 = vld [vmem:[%s438 + $0x790] sm:$0xff]
        %v1212 = vld [vmem:[%s438 + $0x798] sm:$0xff]
        %v1213 = vld [vmem:[%s438 + $0x7a0] sm:$0xff]
        %v1214 = vld [vmem:[%s438 + $0x7a8] sm:$0xff]
        %v1215 = vld [vmem:[%s438 + $0x7b0] sm:$0xff]
        %v1216 = vld [vmem:[%s438 + $0x7b8] sm:$0xff]
        %v1217 = vld [vmem:[%s438 + $0x7c0] sm:$0xff]
        %v1218 = vld [vmem:[%s438 + $0x7c8] sm:$0xff]
        %v1219 = vld [vmem:[%s438 + $0x7d0] sm:$0xff]
        %v1220 = vld [vmem:[%s438 + $0x7d8] sm:$0xff]
        %v1221 = vld [vmem:[%s438 + $0x7e0] sm:$0xff]
        %v1222 = vld [vmem:[%s438 + $0x7e8] sm:$0xff]
        %v1223 = vld [vmem:[%s438 + $0x7f0] sm:$0xff]
        %v1224 = vld [vmem:[%s438 + $0x7f8] sm:$0xff]
        %v1225 = vld [vmem:[%s438 + $0x800] sm:$0xff]
        %v1226 = vld [vmem:[%s438 + $0x808] sm:$0xff]
        %v1227 = vld [vmem:[%s438 + $0x810] sm:$0xff]
        %v1228 = vld [vmem:[%s438 + $0x818] sm:$0xff]
        %v1229 = vld [vmem:[%s438 + $0x820] sm:$0xff]
        %v1230 = vld [vmem:[%s438 + $0x828] sm:$0xff]
        %v1231 = vld [vmem:[%s438 + $0x830] sm:$0xff]
        %v1232 = vld [vmem:[%s438 + $0x838] sm:$0xff]
        %v1233 = vld [vmem:[%s438 + $0x840] sm:$0xff]
        %v1234 = vld [vmem:[%s438 + $0x848] sm:$0xff]
        %v1235 = vld [vmem:[%s438 + $0x850] sm:$0xff]
        %v1236 = vld [vmem:[%s438 + $0x858] sm:$0xff]
        %v1237 = vld [vmem:[%s438 + $0x860] sm:$0xff]
        %v1238 = vld [vmem:[%s438 + $0x868] sm:$0xff]
        %v1239 = vld [vmem:[%s438 + $0x870] sm:$0xff]
        %v1240 = vld [vmem:[%s438 + $0x878] sm:$0xff]
        %v1241 = vld [vmem:[%s438 + $0x880] sm:$0xff]
        %v1242 = vld [vmem:[%s438 + $0x888] sm:$0xff]
        %v1243 = vld [vmem:[%s438 + $0x890] sm:$0xff]
        %v1244 = vld [vmem:[%s438 + $0x898] sm:$0xff]
        %v1245 = vld [vmem:[%s438 + $0x8a0] sm:$0xff]
        %v1246 = vld [vmem:[%s438 + $0x8a8] sm:$0xff]
        %v1247 = vld [vmem:[%s438 + $0x8b0] sm:$0xff]
        %v1248 = vld [vmem:[%s438 + $0x8b8] sm:$0xff]
        %v1249 = vld [vmem:[%s438 + $0x8c0] sm:$0xff]
        %v1250 = vld [vmem:[%s438 + $0x8c8] sm:$0xff]
        %v1251 = vld [vmem:[%s438 + $0x8d0] sm:$0xff]
        %v1252 = vld [vmem:[%s438 + $0x8d8] sm:$0xff]
        %v1253 = vld [vmem:[%s438 + $0x8e0] sm:$0xff]
        %v1254 = vld [vmem:[%s438 + $0x8e8] sm:$0xff]
        %v1255 = vld [vmem:[%s438 + $0x8f0] sm:$0xff]
        %v1256 = vld [vmem:[%s438 + $0x8f8] sm:$0xff]
        %v1257 = vld [vmem:[%s438 + $0x900] sm:$0xff]
        %v1258 = vld [vmem:[%s438 + $0x908] sm:$0xff]
        %v1259 = vld [vmem:[%s438 + $0x910] sm:$0xff]
        %v1260 = vld [vmem:[%s438 + $0x918] sm:$0xff]
        %v1261 = vld [vmem:[%s438 + $0x920] sm:$0xff]
        %v1262 = vld [vmem:[%s438 + $0x928] sm:$0xff]
        %v1263 = vld [vmem:[%s438 + $0x930] sm:$0xff]
        %v1264 = vld [vmem:[%s438 + $0x938] sm:$0xff]
        %v1265 = vld [vmem:[%s438 + $0x940] sm:$0xff]
        %v1266 = vld [vmem:[%s438 + $0x948] sm:$0xff]
        %v1267 = vld [vmem:[%s438 + $0x950] sm:$0xff]
        %v1268 = vld [vmem:[%s438 + $0x958] sm:$0xff]
        %v1269 = vld [vmem:[%s438 + $0x960] sm:$0xff]
        %v1270 = vld [vmem:[%s438 + $0x968] sm:$0xff]
        %v1271 = vld [vmem:[%s438 + $0x970] sm:$0xff]
        %v1272 = vld [vmem:[%s438 + $0x978] sm:$0xff]
        %v1273 = vld [vmem:[%s438 + $0x980] sm:$0xff]
        %v1274 = vld [vmem:[%s438 + $0x988] sm:$0xff]
        %v1275 = vld [vmem:[%s438 + $0x990] sm:$0xff]
        %v1276 = vld [vmem:[%s438 + $0x998] sm:$0xff]
        %v1277 = vld [vmem:[%s438 + $0x9a0] sm:$0xff]
        %v1278 = vld [vmem:[%s438 + $0x9a8] sm:$0xff]
        %v1279 = vld [vmem:[%s438 + $0x9b0] sm:$0xff]
        %v1280 = vld [vmem:[%s438 + $0x9b8] sm:$0xff]
        %v1281 = vld [vmem:[%s438 + $0x9c0] sm:$0xff]
        %v1282 = vld [vmem:[%s438 + $0x9c8] sm:$0xff]
        %v1283 = vld [vmem:[%s438 + $0x9d0] sm:$0xff]
        %v1284 = vld [vmem:[%s438 + $0x9d8] sm:$0xff]
        %v1285 = vld [vmem:[%s438 + $0x9e0] sm:$0xff]
        %v1286 = vld [vmem:[%s438 + $0x9e8] sm:$0xff]
        %v1287 = vld [vmem:[%s438 + $0x9f0] sm:$0xff]
        %v1288 = vld [vmem:[%s438 + $0x9f8] sm:$0xff]
        %v1289 = vld [vmem:[%s438 + $0xa00] sm:$0xff]
        %v1290 = vld [vmem:[%s438 + $0xa08] sm:$0xff]
        %v1291 = vld [vmem:[%s438 + $0xa10] sm:$0xff]
        %v1292 = vld [vmem:[%s438 + $0xa18] sm:$0xff]
        %v1293 = vld [vmem:[%s438 + $0xa20] sm:$0xff]
        %v1294 = vld [vmem:[%s438 + $0xa28] sm:$0xff]
        %v1295 = vld [vmem:[%s438 + $0xa30] sm:$0xff]
        %v1296 = vld [vmem:[%s438 + $0xa38] sm:$0xff]
        %v1297 = vld [vmem:[%s438 + $0xa40] sm:$0xff]
        %v1298 = vld [vmem:[%s438 + $0xa48] sm:$0xff]
        %v1299 = vld [vmem:[%s438 + $0xa50] sm:$0xff]
        %v1300 = vld [vmem:[%s438 + $0xa58] sm:$0xff]
        %v1301 = vld [vmem:[%s438 + $0xa60] sm:$0xff]
        %v1302 = vld [vmem:[%s438 + $0xa68] sm:$0xff]
        %v1303 = vld [vmem:[%s438 + $0xa70] sm:$0xff]
        %v1304 = vld [vmem:[%s438 + $0xa78] sm:$0xff]
        %v1305 = vld [vmem:[%s438 + $0xa80] sm:$0xff]
        %v1306 = vld [vmem:[%s438 + $0xa88] sm:$0xff]
        %v1307 = vld [vmem:[%s438 + $0xa90] sm:$0xff]
        %v1308 = vld [vmem:[%s438 + $0xa98] sm:$0xff]
        %v1309 = vld [vmem:[%s438 + $0xaa0] sm:$0xff]
        %v1310 = vld [vmem:[%s438 + $0xaa8] sm:$0xff]
        %v1311 = vld [vmem:[%s438 + $0xab0] sm:$0xff]
        %v1312 = vld [vmem:[%s438 + $0xab8] sm:$0xff]
        %v1313 = vld [vmem:[%s438 + $0xac0] sm:$0xff]
        %v1314 = vld [vmem:[%s438 + $0xac8] sm:$0xff]
        %v1315 = vld [vmem:[%s438 + $0xad0] sm:$0xff]
        %v1316 = vld [vmem:[%s438 + $0xad8] sm:$0xff]
        %v1317 = vld [vmem:[%s438 + $0xae0] sm:$0xff]
        %v1318 = vld [vmem:[%s438 + $0xae8] sm:$0xff]
        %v1319 = vld [vmem:[%s438 + $0xaf0] sm:$0xff]
        %v1320 = vld [vmem:[%s438 + $0xaf8] sm:$0xff]
        %v1321 = vld [vmem:[%s438 + $0xb00] sm:$0xff]
        %v1322 = vld [vmem:[%s438 + $0xb08] sm:$0xff]
        %v1323 = vld [vmem:[%s438 + $0xb10] sm:$0xff]
        %v1324 = vld [vmem:[%s438 + $0xb18] sm:$0xff]
        %v1325 = vld [vmem:[%s438 + $0xb20] sm:$0xff]
        %v1326 = vld [vmem:[%s438 + $0xb28] sm:$0xff]
        %v1327 = vld [vmem:[%s438 + $0xb30] sm:$0xff]
        %v1328 = vld [vmem:[%s438 + $0xb38] sm:$0xff]
        %v1329 = vld [vmem:[%s438 + $0xb40] sm:$0xff]
        %v1330 = vld [vmem:[%s438 + $0xb48] sm:$0xff]
        %v1331 = vld [vmem:[%s438 + $0xb50] sm:$0xff]
        %v1332 = vld [vmem:[%s438 + $0xb58] sm:$0xff]
        %v1333 = vld [vmem:[%s438 + $0xb60] sm:$0xff]
        %v1334 = vld [vmem:[%s438 + $0xb68] sm:$0xff]
        %v1335 = vld [vmem:[%s438 + $0xb70] sm:$0xff]
        %v1336 = vld [vmem:[%s438 + $0xb78] sm:$0xff]
        %v1337 = vld [vmem:[%s438 + $0xb80] sm:$0xff]
        %v1338 = vld [vmem:[%s438 + $0xb88] sm:$0xff]
        %v1339 = vld [vmem:[%s438 + $0xb90] sm:$0xff]
        %v1340 = vld [vmem:[%s438 + $0xb98] sm:$0xff]
        %v1341 = vld [vmem:[%s438 + $0xba0] sm:$0xff]
        %v1342 = vld [vmem:[%s438 + $0xba8] sm:$0xff]
        %v1343 = vld [vmem:[%s438 + $0xbb0] sm:$0xff]
        %v1344 = vld [vmem:[%s438 + $0xbb8] sm:$0xff]
        %v1345 = vld [vmem:[%s438 + $0xbc0] sm:$0xff]
        %v1346 = vld [vmem:[%s438 + $0xbc8] sm:$0xff]
        %v1347 = vld [vmem:[%s438 + $0xbd0] sm:$0xff]
        %v1348 = vld [vmem:[%s438 + $0xbd8] sm:$0xff]
        %v1349 = vld [vmem:[%s438 + $0xbe0] sm:$0xff]
        %v1350 = vld [vmem:[%s438 + $0xbe8] sm:$0xff]
        %v1351 = vld [vmem:[%s438 + $0xbf0] sm:$0xff]
        %v1352 = vld [vmem:[%s438 + $0xbf8] sm:$0xff]
        %v1353 = vld [vmem:[%s438 + $0xc00] sm:$0xff]
        %v1354 = vld [vmem:[%s438 + $0xc08] sm:$0xff]
        %v1355 = vld [vmem:[%s438 + $0xc10] sm:$0xff]
        %v1356 = vld [vmem:[%s438 + $0xc18] sm:$0xff]
        %v1357 = vld [vmem:[%s438 + $0xc20] sm:$0xff]
        %v1358 = vld [vmem:[%s438 + $0xc28] sm:$0xff]
        %v1359 = vld [vmem:[%s438 + $0xc30] sm:$0xff]
        %v1360 = vld [vmem:[%s438 + $0xc38] sm:$0xff]
        %v1361 = vld [vmem:[%s438 + $0xc40] sm:$0xff]
        %v1362 = vld [vmem:[%s438 + $0xc48] sm:$0xff]
        %v1363 = vld [vmem:[%s438 + $0xc50] sm:$0xff]
        %v1364 = vld [vmem:[%s438 + $0xc58] sm:$0xff]
        %v1365 = vld [vmem:[%s438 + $0xc60] sm:$0xff]
        %v1366 = vld [vmem:[%s438 + $0xc68] sm:$0xff]
        %v1367 = vld [vmem:[%s438 + $0xc70] sm:$0xff]
        %v1368 = vld [vmem:[%s438 + $0xc78] sm:$0xff]
        %v1369 = vld [vmem:[%s438 + $0xc80] sm:$0xff]
        %v1370 = vld [vmem:[%s438 + $0xc88] sm:$0xff]
        %v1371 = vld [vmem:[%s438 + $0xc90] sm:$0xff]
        %v1372 = vld [vmem:[%s438 + $0xc98] sm:$0xff]
        %v1373 = vld [vmem:[%s438 + $0xca0] sm:$0xff]
        %v1374 = vld [vmem:[%s438 + $0xca8] sm:$0xff]
        %v1375 = vld [vmem:[%s438 + $0xcb0] sm:$0xff]
        %v1376 = vld [vmem:[%s438 + $0xcb8] sm:$0xff]
        %v1377 = vld [vmem:[%s438 + $0xcc0] sm:$0xff]
        %v1378 = vld [vmem:[%s438 + $0xcc8] sm:$0xff]
        %v1379 = vld [vmem:[%s438 + $0xcd0] sm:$0xff]
        %v1380 = vld [vmem:[%s438 + $0xcd8] sm:$0xff]
        %v1381 = vld [vmem:[%s438 + $0xce0] sm:$0xff]
        %v1382 = vld [vmem:[%s438 + $0xce8] sm:$0xff]
        %v1383 = vld [vmem:[%s438 + $0xcf0] sm:$0xff]
        %v1384 = vld [vmem:[%s438 + $0xcf8] sm:$0xff]
        %v1385 = vld [vmem:[%s438 + $0xd00] sm:$0xff]
        %v1386 = vld [vmem:[%s438 + $0xd08] sm:$0xff]
        %v1387 = vld [vmem:[%s438 + $0xd10] sm:$0xff]
        %v1388 = vld [vmem:[%s438 + $0xd18] sm:$0xff]
        %v1389 = vld [vmem:[%s438 + $0xd20] sm:$0xff]
        %v1390 = vld [vmem:[%s438 + $0xd28] sm:$0xff]
        %v1391 = vld [vmem:[%s438 + $0xd30] sm:$0xff]
        %v1392 = vld [vmem:[%s438 + $0xd38] sm:$0xff]
        %v1393 = vld [vmem:[%s438 + $0xd40] sm:$0xff]
        %v1394 = vld [vmem:[%s438 + $0xd48] sm:$0xff]
        %v1395 = vld [vmem:[%s438 + $0xd50] sm:$0xff]
        %v1396 = vld [vmem:[%s438 + $0xd58] sm:$0xff]
        %v1397 = vld [vmem:[%s438 + $0xd60] sm:$0xff]
        %v1398 = vld [vmem:[%s438 + $0xd68] sm:$0xff]
        %v1399 = vld [vmem:[%s438 + $0xd70] sm:$0xff]
        %v1400 = vld [vmem:[%s438 + $0xd78] sm:$0xff]
        %v1401 = vld [vmem:[%s438 + $0xd80] sm:$0xff]
        %v1402 = vld [vmem:[%s438 + $0xd88] sm:$0xff]
        %v1403 = vld [vmem:[%s438 + $0xd90] sm:$0xff]
        %v1404 = vld [vmem:[%s438 + $0xd98] sm:$0xff]
        %v1405 = vld [vmem:[%s438 + $0xda0] sm:$0xff]
        %v1406 = vld [vmem:[%s438 + $0xda8] sm:$0xff]
        %v1407 = vld [vmem:[%s438 + $0xdb0] sm:$0xff]
        %v1408 = vld [vmem:[%s438 + $0xdb8] sm:$0xff]
        %v1409 = vld [vmem:[%s438 + $0xdc0] sm:$0xff]
        %v1410 = vld [vmem:[%s438 + $0xdc8] sm:$0xff]
        %v1411 = vld [vmem:[%s438 + $0xdd0] sm:$0xff]
        %v1412 = vld [vmem:[%s438 + $0xdd8] sm:$0xff]
        %v1413 = vld [vmem:[%s438 + $0xde0] sm:$0xff]
        %v1414 = vld [vmem:[%s438 + $0xde8] sm:$0xff]
        %v1415 = vld [vmem:[%s438 + $0xdf0] sm:$0xff]
        %v1416 = vld [vmem:[%s438 + $0xdf8] sm:$0xff]
        %v1417 = vld [vmem:[%s438 + $0xe00] sm:$0xff]
        %v1418 = vld [vmem:[%s438 + $0xe08] sm:$0xff]
        %v1419 = vld [vmem:[%s438 + $0xe10] sm:$0xff]
        %v1420 = vld [vmem:[%s438 + $0xe18] sm:$0xff]
        %v1421 = vld [vmem:[%s438 + $0xe20] sm:$0xff]
        %v1422 = vld [vmem:[%s438 + $0xe28] sm:$0xff]
        %v1423 = vld [vmem:[%s438 + $0xe30] sm:$0xff]
        %v1424 = vld [vmem:[%s438 + $0xe38] sm:$0xff]
        %v1425 = vld [vmem:[%s438 + $0xe40] sm:$0xff]
        %v1426 = vld [vmem:[%s438 + $0xe48] sm:$0xff]
        %v1427 = vld [vmem:[%s438 + $0xe50] sm:$0xff]
        %v1428 = vld [vmem:[%s438 + $0xe58] sm:$0xff]
        %v1429 = vld [vmem:[%s438 + $0xe60] sm:$0xff]
        %v1430 = vld [vmem:[%s438 + $0xe68] sm:$0xff]
        %v1431 = vld [vmem:[%s438 + $0xe70] sm:$0xff]
        %v1432 = vld [vmem:[%s438 + $0xe78] sm:$0xff]
        %v1433 = vld [vmem:[%s438 + $0xe80] sm:$0xff]
        %v1434 = vld [vmem:[%s438 + $0xe88] sm:$0xff]
        %v1435 = vld [vmem:[%s438 + $0xe90] sm:$0xff]
        %v1436 = vld [vmem:[%s438 + $0xe98] sm:$0xff]
        %v1437 = vld [vmem:[%s438 + $0xea0] sm:$0xff]
        %v1438 = vld [vmem:[%s438 + $0xea8] sm:$0xff]
        %v1439 = vld [vmem:[%s438 + $0xeb0] sm:$0xff]
        %v1440 = vld [vmem:[%s438 + $0xeb8] sm:$0xff]
        %v1441 = vld [vmem:[%s438 + $0xec0] sm:$0xff]
        %v1442 = vld [vmem:[%s438 + $0xec8] sm:$0xff]
        %v1443 = vld [vmem:[%s438 + $0xed0] sm:$0xff]
        %v1444 = vld [vmem:[%s438 + $0xed8] sm:$0xff]
        %v1445 = vld [vmem:[%s438 + $0xee0] sm:$0xff]
        %v1446 = vld [vmem:[%s438 + $0xee8] sm:$0xff]
        %v1447 = vld [vmem:[%s438 + $0xef0] sm:$0xff]
        %v1448 = vld [vmem:[%s438 + $0xef8] sm:$0xff]
        %v1449 = vld [vmem:[%s438 + $0xf00] sm:$0xff]
        %v1450 = vld [vmem:[%s438 + $0xf08] sm:$0xff]
        %v1451 = vld [vmem:[%s438 + $0xf10] sm:$0xff]
        %v1452 = vld [vmem:[%s438 + $0xf18] sm:$0xff]
        %v1453 = vld [vmem:[%s438 + $0xf20] sm:$0xff]
        %v1454 = vld [vmem:[%s438 + $0xf28] sm:$0xff]
        %v1455 = vld [vmem:[%s438 + $0xf30] sm:$0xff]
        %v1456 = vld [vmem:[%s438 + $0xf38] sm:$0xff]
        %v1457 = vld [vmem:[%s438 + $0xf40] sm:$0xff]
        %v1458 = vld [vmem:[%s438 + $0xf48] sm:$0xff]
        %v1459 = vld [vmem:[%s438 + $0xf50] sm:$0xff]
        %v1460 = vld [vmem:[%s438 + $0xf58] sm:$0xff]
        %v1461 = vld [vmem:[%s438 + $0xf60] sm:$0xff]
        %v1462 = vld [vmem:[%s438 + $0xf68] sm:$0xff]
        %v1463 = vld [vmem:[%s438 + $0xf70] sm:$0xff]
        %v1464 = vld [vmem:[%s438 + $0xf78] sm:$0xff]
        %v1465 = vld [vmem:[%s438 + $0xf80] sm:$0xff]
        %v1466 = vld [vmem:[%s438 + $0xf88] sm:$0xff]
        %v1467 = vld [vmem:[%s438 + $0xf90] sm:$0xff]
        %v1468 = vld [vmem:[%s438 + $0xf98] sm:$0xff]
        %v1469 = vld [vmem:[%s438 + $0xfa0] sm:$0xff]
        %v1470 = vld [vmem:[%s438 + $0xfa8] sm:$0xff]
        %v1471 = vld [vmem:[%s438 + $0xfb0] sm:$0xff]
        %v1472 = vld [vmem:[%s438 + $0xfb8] sm:$0xff]
        %v1473 = vld [vmem:[%s438 + $0xfc0] sm:$0xff]
        %v1474 = vld [vmem:[%s438 + $0xfc8] sm:$0xff]
        %v1475 = vld [vmem:[%s438 + $0xfd0] sm:$0xff]
        %v1476 = vld [vmem:[%s438 + $0xfd8] sm:$0xff]
        %v1477 = vld [vmem:[%s438 + $0xfe0] sm:$0xff]
        %v1478 = vld [vmem:[%s438 + $0xfe8] sm:$0xff]
        %v1479 = vld [vmem:[%s438 + $0xff0] sm:$0xff]
        %v1480 = vld [vmem:[%s438 + $0xff8] sm:$0xff]
        %v1993 = vunpack.c.l.b16 %v969
        %v1994 = vunpack.c.h.b16 %v969
        %v1995 = vunpack.c.l.b16 %v970
        %v1996 = vunpack.c.h.b16 %v970
        %v1997 = vunpack.c.l.b16 %v971
        %v1998 = vunpack.c.h.b16 %v971
        %v1999 = vunpack.c.l.b16 %v972
        %v2000 = vunpack.c.h.b16 %v972
        %v2001 = vunpack.c.l.b16 %v973
        %v2002 = vunpack.c.h.b16 %v973
        %v2003 = vunpack.c.l.b16 %v974
        %v2004 = vunpack.c.h.b16 %v974
        %v2005 = vunpack.c.l.b16 %v975
        %v2006 = vunpack.c.h.b16 %v975
        %v2007 = vunpack.c.l.b16 %v976
        %v2008 = vunpack.c.h.b16 %v976
        %v2009 = vunpack.c.l.b16 %v977
        %v2010 = vunpack.c.h.b16 %v977
        %v2011 = vunpack.c.l.b16 %v978
        %v2012 = vunpack.c.h.b16 %v978
        %v2013 = vunpack.c.l.b16 %v979
        %v2014 = vunpack.c.h.b16 %v979
        %v2015 = vunpack.c.l.b16 %v980
        %v2016 = vunpack.c.h.b16 %v980
        %v2017 = vunpack.c.l.b16 %v981
        %v2018 = vunpack.c.h.b16 %v981
        %v2019 = vunpack.c.l.b16 %v982
        %v2020 = vunpack.c.h.b16 %v982
        %v2021 = vunpack.c.l.b16 %v983
        %v2022 = vunpack.c.h.b16 %v983
        %v2023 = vunpack.c.l.b16 %v984
        %v2024 = vunpack.c.h.b16 %v984
        %v2025 = vunpack.c.l.b16 %v985
        %v2026 = vunpack.c.h.b16 %v985
        %v2027 = vunpack.c.l.b16 %v986
        %v2028 = vunpack.c.h.b16 %v986
        %v2029 = vunpack.c.l.b16 %v987
        %v2030 = vunpack.c.h.b16 %v987
        %v2031 = vunpack.c.l.b16 %v988
        %v2032 = vunpack.c.h.b16 %v988
        %v2033 = vunpack.c.l.b16 %v989
        %v2034 = vunpack.c.h.b16 %v989
        %v2035 = vunpack.c.l.b16 %v990
        %v2036 = vunpack.c.h.b16 %v990
        %v2037 = vunpack.c.l.b16 %v991
        %v2038 = vunpack.c.h.b16 %v991
        %v2039 = vunpack.c.l.b16 %v992
        %v2040 = vunpack.c.h.b16 %v992
        %v2041 = vunpack.c.l.b16 %v993
        %v2042 = vunpack.c.h.b16 %v993
        %v2043 = vunpack.c.l.b16 %v994
        %v2044 = vunpack.c.h.b16 %v994
        %v2045 = vunpack.c.l.b16 %v995
        %v2046 = vunpack.c.h.b16 %v995
        %v2047 = vunpack.c.l.b16 %v996
        %v2048 = vunpack.c.h.b16 %v996
        %v2049 = vunpack.c.l.b16 %v997
        %v2050 = vunpack.c.h.b16 %v997
        %v2051 = vunpack.c.l.b16 %v998
        %v2052 = vunpack.c.h.b16 %v998
        %v2053 = vunpack.c.l.b16 %v999
        %v2054 = vunpack.c.h.b16 %v999
        %v2055 = vunpack.c.l.b16 %v1000
        %v2056 = vunpack.c.h.b16 %v1000
        %v2057 = vunpack.c.l.b16 %v1001
        %v2058 = vunpack.c.h.b16 %v1001
        %v2059 = vunpack.c.l.b16 %v1002
        %v2060 = vunpack.c.h.b16 %v1002
        %v2061 = vunpack.c.l.b16 %v1003
        %v2062 = vunpack.c.h.b16 %v1003
        %v2063 = vunpack.c.l.b16 %v1004
        %v2064 = vunpack.c.h.b16 %v1004
        %v2065 = vunpack.c.l.b16 %v1005
        %v2066 = vunpack.c.h.b16 %v1005
        %v2067 = vunpack.c.l.b16 %v1006
        %v2068 = vunpack.c.h.b16 %v1006
        %v2069 = vunpack.c.l.b16 %v1007
        %v2070 = vunpack.c.h.b16 %v1007
        %v2071 = vunpack.c.l.b16 %v1008
        %v2072 = vunpack.c.h.b16 %v1008
        %v2073 = vunpack.c.l.b16 %v1009
        %v2074 = vunpack.c.h.b16 %v1009
        %v2075 = vunpack.c.l.b16 %v1010
        %v2076 = vunpack.c.h.b16 %v1010
        %v2077 = vunpack.c.l.b16 %v1011
        %v2078 = vunpack.c.h.b16 %v1011
        %v2079 = vunpack.c.l.b16 %v1012
        %v2080 = vunpack.c.h.b16 %v1012
        %v2081 = vunpack.c.l.b16 %v1013
        %v2082 = vunpack.c.h.b16 %v1013
        %v2083 = vunpack.c.l.b16 %v1014
        %v2084 = vunpack.c.h.b16 %v1014
        %v2085 = vunpack.c.l.b16 %v1015
        %v2086 = vunpack.c.h.b16 %v1015
        %v2087 = vunpack.c.l.b16 %v1016
        %v2088 = vunpack.c.h.b16 %v1016
        %v2089 = vunpack.c.l.b16 %v1017
        %v2090 = vunpack.c.h.b16 %v1017
        %v2091 = vunpack.c.l.b16 %v1018
        %v2092 = vunpack.c.h.b16 %v1018
        %v2093 = vunpack.c.l.b16 %v1019
        %v2094 = vunpack.c.h.b16 %v1019
        %v2095 = vunpack.c.l.b16 %v1020
        %v2096 = vunpack.c.h.b16 %v1020
        %v2097 = vunpack.c.l.b16 %v1021
        %v2098 = vunpack.c.h.b16 %v1021
        %v2099 = vunpack.c.l.b16 %v1022
        %v2100 = vunpack.c.h.b16 %v1022
        %v2101 = vunpack.c.l.b16 %v1023
        %v2102 = vunpack.c.h.b16 %v1023
        %v2103 = vunpack.c.l.b16 %v1024
        %v2104 = vunpack.c.h.b16 %v1024
        %v2105 = vunpack.c.l.b16 %v1025
        %v2106 = vunpack.c.h.b16 %v1025
        %v2107 = vunpack.c.l.b16 %v1026
        %v2108 = vunpack.c.h.b16 %v1026
        %v2109 = vunpack.c.l.b16 %v1027
        %v2110 = vunpack.c.h.b16 %v1027
        %v2111 = vunpack.c.l.b16 %v1028
        %v2112 = vunpack.c.h.b16 %v1028
        %v2113 = vunpack.c.l.b16 %v1029
        %v2114 = vunpack.c.h.b16 %v1029
        %v2115 = vunpack.c.l.b16 %v1030
        %v2116 = vunpack.c.h.b16 %v1030
        %v2117 = vunpack.c.l.b16 %v1031
        %v2118 = vunpack.c.h.b16 %v1031
        %v2119 = vunpack.c.l.b16 %v1032
        %v2120 = vunpack.c.h.b16 %v1032
        %v2121 = vunpack.c.l.b16 %v1033
        %v2122 = vunpack.c.h.b16 %v1033
        %v2123 = vunpack.c.l.b16 %v1034
        %v2124 = vunpack.c.h.b16 %v1034
        %v2125 = vunpack.c.l.b16 %v1035
        %v2126 = vunpack.c.h.b16 %v1035
        %v2127 = vunpack.c.l.b16 %v1036
        %v2128 = vunpack.c.h.b16 %v1036
        %v2129 = vunpack.c.l.b16 %v1037
        %v2130 = vunpack.c.h.b16 %v1037
        %v2131 = vunpack.c.l.b16 %v1038
        %v2132 = vunpack.c.h.b16 %v1038
        %v2133 = vunpack.c.l.b16 %v1039
        %v2134 = vunpack.c.h.b16 %v1039
        %v2135 = vunpack.c.l.b16 %v1040
        %v2136 = vunpack.c.h.b16 %v1040
        %v2137 = vunpack.c.l.b16 %v1041
        %v2138 = vunpack.c.h.b16 %v1041
        %v2139 = vunpack.c.l.b16 %v1042
        %v2140 = vunpack.c.h.b16 %v1042
        %v2141 = vunpack.c.l.b16 %v1043
        %v2142 = vunpack.c.h.b16 %v1043
        %v2143 = vunpack.c.l.b16 %v1044
        %v2144 = vunpack.c.h.b16 %v1044
        %v2145 = vunpack.c.l.b16 %v1045
        %v2146 = vunpack.c.h.b16 %v1045
        %v2147 = vunpack.c.l.b16 %v1046
        %v2148 = vunpack.c.h.b16 %v1046
        %v2149 = vunpack.c.l.b16 %v1047
        %v2150 = vunpack.c.h.b16 %v1047
        %v2151 = vunpack.c.l.b16 %v1048
        %v2152 = vunpack.c.h.b16 %v1048
        %v2153 = vunpack.c.l.b16 %v1049
        %v2154 = vunpack.c.h.b16 %v1049
        %v2155 = vunpack.c.l.b16 %v1050
        %v2156 = vunpack.c.h.b16 %v1050
        %v2157 = vunpack.c.l.b16 %v1051
        %v2158 = vunpack.c.h.b16 %v1051
        %v2159 = vunpack.c.l.b16 %v1052
        %v2160 = vunpack.c.h.b16 %v1052
        %v2161 = vunpack.c.l.b16 %v1053
        %v2162 = vunpack.c.h.b16 %v1053
        %v2163 = vunpack.c.l.b16 %v1054
        %v2164 = vunpack.c.h.b16 %v1054
        %v2165 = vunpack.c.l.b16 %v1055
        %v2166 = vunpack.c.h.b16 %v1055
        %v2167 = vunpack.c.l.b16 %v1056
        %v2168 = vunpack.c.h.b16 %v1056
        %v2169 = vunpack.c.l.b16 %v1057
        %v2170 = vunpack.c.h.b16 %v1057
        %v2171 = vunpack.c.l.b16 %v1058
        %v2172 = vunpack.c.h.b16 %v1058
        %v2173 = vunpack.c.l.b16 %v1059
        %v2174 = vunpack.c.h.b16 %v1059
        %v2175 = vunpack.c.l.b16 %v1060
        %v2176 = vunpack.c.h.b16 %v1060
        %v2177 = vunpack.c.l.b16 %v1061
        %v2178 = vunpack.c.h.b16 %v1061
        %v2179 = vunpack.c.l.b16 %v1062
        %v2180 = vunpack.c.h.b16 %v1062
        %v2181 = vunpack.c.l.b16 %v1063
        %v2182 = vunpack.c.h.b16 %v1063
        %v2183 = vunpack.c.l.b16 %v1064
        %v2184 = vunpack.c.h.b16 %v1064
        %v2185 = vunpack.c.l.b16 %v1065
        %v2186 = vunpack.c.h.b16 %v1065
        %v2187 = vunpack.c.l.b16 %v1066
        %v2188 = vunpack.c.h.b16 %v1066
        %v2189 = vunpack.c.l.b16 %v1067
        %v2190 = vunpack.c.h.b16 %v1067
        %v2191 = vunpack.c.l.b16 %v1068
        %v2192 = vunpack.c.h.b16 %v1068
        %v2193 = vunpack.c.l.b16 %v1069
        %v2194 = vunpack.c.h.b16 %v1069
        %v2195 = vunpack.c.l.b16 %v1070
        %v2196 = vunpack.c.h.b16 %v1070
        %v2197 = vunpack.c.l.b16 %v1071
        %v2198 = vunpack.c.h.b16 %v1071
        %v2199 = vunpack.c.l.b16 %v1072
        %v2200 = vunpack.c.h.b16 %v1072
        %v2201 = vunpack.c.l.b16 %v1073
        %v2202 = vunpack.c.h.b16 %v1073
        %v2203 = vunpack.c.l.b16 %v1074
        %v2204 = vunpack.c.h.b16 %v1074
        %v2205 = vunpack.c.l.b16 %v1075
        %v2206 = vunpack.c.h.b16 %v1075
        %v2207 = vunpack.c.l.b16 %v1076
        %v2208 = vunpack.c.h.b16 %v1076
        %v2209 = vunpack.c.l.b16 %v1077
        %v2210 = vunpack.c.h.b16 %v1077
        %v2211 = vunpack.c.l.b16 %v1078
        %v2212 = vunpack.c.h.b16 %v1078
        %v2213 = vunpack.c.l.b16 %v1079
        %v2214 = vunpack.c.h.b16 %v1079
        %v2215 = vunpack.c.l.b16 %v1080
        %v2216 = vunpack.c.h.b16 %v1080
        %v2217 = vunpack.c.l.b16 %v1081
        %v2218 = vunpack.c.h.b16 %v1081
        %v2219 = vunpack.c.l.b16 %v1082
        %v2220 = vunpack.c.h.b16 %v1082
        %v2221 = vunpack.c.l.b16 %v1083
        %v2222 = vunpack.c.h.b16 %v1083
        %v2223 = vunpack.c.l.b16 %v1084
        %v2224 = vunpack.c.h.b16 %v1084
        %v2225 = vunpack.c.l.b16 %v1085
        %v2226 = vunpack.c.h.b16 %v1085
        %v2227 = vunpack.c.l.b16 %v1086
        %v2228 = vunpack.c.h.b16 %v1086
        %v2229 = vunpack.c.l.b16 %v1087
        %v2230 = vunpack.c.h.b16 %v1087
        %v2231 = vunpack.c.l.b16 %v1088
        %v2232 = vunpack.c.h.b16 %v1088
        %v2233 = vunpack.c.l.b16 %v1089
        %v2234 = vunpack.c.h.b16 %v1089
        %v2235 = vunpack.c.l.b16 %v1090
        %v2236 = vunpack.c.h.b16 %v1090
        %v2237 = vunpack.c.l.b16 %v1091
        %v2238 = vunpack.c.h.b16 %v1091
        %v2239 = vunpack.c.l.b16 %v1092
        %v2240 = vunpack.c.h.b16 %v1092
        %v2241 = vunpack.c.l.b16 %v1093
        %v2242 = vunpack.c.h.b16 %v1093
        %v2243 = vunpack.c.l.b16 %v1094
        %v2244 = vunpack.c.h.b16 %v1094
        %v2245 = vunpack.c.l.b16 %v1095
        %v2246 = vunpack.c.h.b16 %v1095
        %v2247 = vunpack.c.l.b16 %v1096
        %v2248 = vunpack.c.h.b16 %v1096
        %v2249 = vunpack.c.l.b16 %v1097
        %v2250 = vunpack.c.h.b16 %v1097
        %v2251 = vunpack.c.l.b16 %v1098
        %v2252 = vunpack.c.h.b16 %v1098
        %v2253 = vunpack.c.l.b16 %v1099
        %v2254 = vunpack.c.h.b16 %v1099
        %v2255 = vunpack.c.l.b16 %v1100
        %v2256 = vunpack.c.h.b16 %v1100
        %v2257 = vunpack.c.l.b16 %v1101
        %v2258 = vunpack.c.h.b16 %v1101
        %v2259 = vunpack.c.l.b16 %v1102
        %v2260 = vunpack.c.h.b16 %v1102
        %v2261 = vunpack.c.l.b16 %v1103
        %v2262 = vunpack.c.h.b16 %v1103
        %v2263 = vunpack.c.l.b16 %v1104
        %v2264 = vunpack.c.h.b16 %v1104
        %v2265 = vunpack.c.l.b16 %v1105
        %v2266 = vunpack.c.h.b16 %v1105
        %v2267 = vunpack.c.l.b16 %v1106
        %v2268 = vunpack.c.h.b16 %v1106
        %v2269 = vunpack.c.l.b16 %v1107
        %v2270 = vunpack.c.h.b16 %v1107
        %v2271 = vunpack.c.l.b16 %v1108
        %v2272 = vunpack.c.h.b16 %v1108
        %v2273 = vunpack.c.l.b16 %v1109
        %v2274 = vunpack.c.h.b16 %v1109
        %v2275 = vunpack.c.l.b16 %v1110
        %v2276 = vunpack.c.h.b16 %v1110
        %v2277 = vunpack.c.l.b16 %v1111
        %v2278 = vunpack.c.h.b16 %v1111
        %v2279 = vunpack.c.l.b16 %v1112
        %v2280 = vunpack.c.h.b16 %v1112
        %v2281 = vunpack.c.l.b16 %v1113
        %v2282 = vunpack.c.h.b16 %v1113
        %v2283 = vunpack.c.l.b16 %v1114
        %v2284 = vunpack.c.h.b16 %v1114
        %v2285 = vunpack.c.l.b16 %v1115
        %v2286 = vunpack.c.h.b16 %v1115
        %v2287 = vunpack.c.l.b16 %v1116
        %v2288 = vunpack.c.h.b16 %v1116
        %v2289 = vunpack.c.l.b16 %v1117
        %v2290 = vunpack.c.h.b16 %v1117
        %v2291 = vunpack.c.l.b16 %v1118
        %v2292 = vunpack.c.h.b16 %v1118
        %v2293 = vunpack.c.l.b16 %v1119
        %v2294 = vunpack.c.h.b16 %v1119
        %v2295 = vunpack.c.l.b16 %v1120
        %v2296 = vunpack.c.h.b16 %v1120
        %v2297 = vunpack.c.l.b16 %v1121
        %v2298 = vunpack.c.h.b16 %v1121
        %v2299 = vunpack.c.l.b16 %v1122
        %v2300 = vunpack.c.h.b16 %v1122
        %v2301 = vunpack.c.l.b16 %v1123
        %v2302 = vunpack.c.h.b16 %v1123
        %v2303 = vunpack.c.l.b16 %v1124
        %v2304 = vunpack.c.h.b16 %v1124
        %v2305 = vunpack.c.l.b16 %v1125
        %v2306 = vunpack.c.h.b16 %v1125
        %v2307 = vunpack.c.l.b16 %v1126
        %v2308 = vunpack.c.h.b16 %v1126
        %v2309 = vunpack.c.l.b16 %v1127
        %v2310 = vunpack.c.h.b16 %v1127
        %v2311 = vunpack.c.l.b16 %v1128
        %v2312 = vunpack.c.h.b16 %v1128
        %v2313 = vunpack.c.l.b16 %v1129
        %v2314 = vunpack.c.h.b16 %v1129
        %v2315 = vunpack.c.l.b16 %v1130
        %v2316 = vunpack.c.h.b16 %v1130
        %v2317 = vunpack.c.l.b16 %v1131
        %v2318 = vunpack.c.h.b16 %v1131
        %v2319 = vunpack.c.l.b16 %v1132
        %v2320 = vunpack.c.h.b16 %v1132
        %v2321 = vunpack.c.l.b16 %v1133
        %v2322 = vunpack.c.h.b16 %v1133
        %v2323 = vunpack.c.l.b16 %v1134
        %v2324 = vunpack.c.h.b16 %v1134
        %v2325 = vunpack.c.l.b16 %v1135
        %v2326 = vunpack.c.h.b16 %v1135
        %v2327 = vunpack.c.l.b16 %v1136
        %v2328 = vunpack.c.h.b16 %v1136
        %v2329 = vunpack.c.l.b16 %v1137
        %v2330 = vunpack.c.h.b16 %v1137
        %v2331 = vunpack.c.l.b16 %v1138
        %v2332 = vunpack.c.h.b16 %v1138
        %v2333 = vunpack.c.l.b16 %v1139
        %v2334 = vunpack.c.h.b16 %v1139
        %v2335 = vunpack.c.l.b16 %v1140
        %v2336 = vunpack.c.h.b16 %v1140
        %v2337 = vunpack.c.l.b16 %v1141
        %v2338 = vunpack.c.h.b16 %v1141
        %v2339 = vunpack.c.l.b16 %v1142
        %v2340 = vunpack.c.h.b16 %v1142
        %v2341 = vunpack.c.l.b16 %v1143
        %v2342 = vunpack.c.h.b16 %v1143
        %v2343 = vunpack.c.l.b16 %v1144
        %v2344 = vunpack.c.h.b16 %v1144
        %v2345 = vunpack.c.l.b16 %v1145
        %v2346 = vunpack.c.h.b16 %v1145
        %v2347 = vunpack.c.l.b16 %v1146
        %v2348 = vunpack.c.h.b16 %v1146
        %v2349 = vunpack.c.l.b16 %v1147
        %v2350 = vunpack.c.h.b16 %v1147
        %v2351 = vunpack.c.l.b16 %v1148
        %v2352 = vunpack.c.h.b16 %v1148
        %v2353 = vunpack.c.l.b16 %v1149
        %v2354 = vunpack.c.h.b16 %v1149
        %v2355 = vunpack.c.l.b16 %v1150
        %v2356 = vunpack.c.h.b16 %v1150
        %v2357 = vunpack.c.l.b16 %v1151
        %v2358 = vunpack.c.h.b16 %v1151
        %v2359 = vunpack.c.l.b16 %v1152
        %v2360 = vunpack.c.h.b16 %v1152
        %v2361 = vunpack.c.l.b16 %v1153
        %v2362 = vunpack.c.h.b16 %v1153
        %v2363 = vunpack.c.l.b16 %v1154
        %v2364 = vunpack.c.h.b16 %v1154
        %v2365 = vunpack.c.l.b16 %v1155
        %v2366 = vunpack.c.h.b16 %v1155
        %v2367 = vunpack.c.l.b16 %v1156
        %v2368 = vunpack.c.h.b16 %v1156
        %v2369 = vunpack.c.l.b16 %v1157
        %v2370 = vunpack.c.h.b16 %v1157
        %v2371 = vunpack.c.l.b16 %v1158
        %v2372 = vunpack.c.h.b16 %v1158
        %v2373 = vunpack.c.l.b16 %v1159
        %v2374 = vunpack.c.h.b16 %v1159
        %v2375 = vunpack.c.l.b16 %v1160
        %v2376 = vunpack.c.h.b16 %v1160
        %v2377 = vunpack.c.l.b16 %v1161
        %v2378 = vunpack.c.h.b16 %v1161
        %v2379 = vunpack.c.l.b16 %v1162
        %v2380 = vunpack.c.h.b16 %v1162
        %v2381 = vunpack.c.l.b16 %v1163
        %v2382 = vunpack.c.h.b16 %v1163
        %v2383 = vunpack.c.l.b16 %v1164
        %v2384 = vunpack.c.h.b16 %v1164
        %v2385 = vunpack.c.l.b16 %v1165
        %v2386 = vunpack.c.h.b16 %v1165
        %v2387 = vunpack.c.l.b16 %v1166
        %v2388 = vunpack.c.h.b16 %v1166
        %v2389 = vunpack.c.l.b16 %v1167
        %v2390 = vunpack.c.h.b16 %v1167
        %v2391 = vunpack.c.l.b16 %v1168
        %v2392 = vunpack.c.h.b16 %v1168
        %v2393 = vunpack.c.l.b16 %v1169
        %v2394 = vunpack.c.h.b16 %v1169
        %v2395 = vunpack.c.l.b16 %v1170
        %v2396 = vunpack.c.h.b16 %v1170
        %v2397 = vunpack.c.l.b16 %v1171
        %v2398 = vunpack.c.h.b16 %v1171
        %v2399 = vunpack.c.l.b16 %v1172
        %v2400 = vunpack.c.h.b16 %v1172
        %v2401 = vunpack.c.l.b16 %v1173
        %v2402 = vunpack.c.h.b16 %v1173
        %v2403 = vunpack.c.l.b16 %v1174
        %v2404 = vunpack.c.h.b16 %v1174
        %v2405 = vunpack.c.l.b16 %v1175
        %v2406 = vunpack.c.h.b16 %v1175
        %v2407 = vunpack.c.l.b16 %v1176
        %v2408 = vunpack.c.h.b16 %v1176
        %v2409 = vunpack.c.l.b16 %v1177
        %v2410 = vunpack.c.h.b16 %v1177
        %v2411 = vunpack.c.l.b16 %v1178
        %v2412 = vunpack.c.h.b16 %v1178
        %v2413 = vunpack.c.l.b16 %v1179
        %v2414 = vunpack.c.h.b16 %v1179
        %v2415 = vunpack.c.l.b16 %v1180
        %v2416 = vunpack.c.h.b16 %v1180
        %v2417 = vunpack.c.l.b16 %v1181
        %v2418 = vunpack.c.h.b16 %v1181
        %v2419 = vunpack.c.l.b16 %v1182
        %v2420 = vunpack.c.h.b16 %v1182
        %v2421 = vunpack.c.l.b16 %v1183
        %v2422 = vunpack.c.h.b16 %v1183
        %v2423 = vunpack.c.l.b16 %v1184
        %v2424 = vunpack.c.h.b16 %v1184
        %v2425 = vunpack.c.l.b16 %v1185
        %v2426 = vunpack.c.h.b16 %v1185
        %v2427 = vunpack.c.l.b16 %v1186
        %v2428 = vunpack.c.h.b16 %v1186
        %v2429 = vunpack.c.l.b16 %v1187
        %v2430 = vunpack.c.h.b16 %v1187
        %v2431 = vunpack.c.l.b16 %v1188
        %v2432 = vunpack.c.h.b16 %v1188
        %v2433 = vunpack.c.l.b16 %v1189
        %v2434 = vunpack.c.h.b16 %v1189
        %v2435 = vunpack.c.l.b16 %v1190
        %v2436 = vunpack.c.h.b16 %v1190
        %v2437 = vunpack.c.l.b16 %v1191
        %v2438 = vunpack.c.h.b16 %v1191
        %v2439 = vunpack.c.l.b16 %v1192
        %v2440 = vunpack.c.h.b16 %v1192
        %v2441 = vunpack.c.l.b16 %v1193
        %v2442 = vunpack.c.h.b16 %v1193
        %v2443 = vunpack.c.l.b16 %v1194
        %v2444 = vunpack.c.h.b16 %v1194
        %v2445 = vunpack.c.l.b16 %v1195
        %v2446 = vunpack.c.h.b16 %v1195
        %v2447 = vunpack.c.l.b16 %v1196
        %v2448 = vunpack.c.h.b16 %v1196
        %v2449 = vunpack.c.l.b16 %v1197
        %v2450 = vunpack.c.h.b16 %v1197
        %v2451 = vunpack.c.l.b16 %v1198
        %v2452 = vunpack.c.h.b16 %v1198
        %v2453 = vunpack.c.l.b16 %v1199
        %v2454 = vunpack.c.h.b16 %v1199
        %v2455 = vunpack.c.l.b16 %v1200
        %v2456 = vunpack.c.h.b16 %v1200
        %v2457 = vunpack.c.l.b16 %v1201
        %v2458 = vunpack.c.h.b16 %v1201
        %v2459 = vunpack.c.l.b16 %v1202
        %v2460 = vunpack.c.h.b16 %v1202
        %v2461 = vunpack.c.l.b16 %v1203
        %v2462 = vunpack.c.h.b16 %v1203
        %v2463 = vunpack.c.l.b16 %v1204
        %v2464 = vunpack.c.h.b16 %v1204
        %v2465 = vunpack.c.l.b16 %v1205
        %v2466 = vunpack.c.h.b16 %v1205
        %v2467 = vunpack.c.l.b16 %v1206
        %v2468 = vunpack.c.h.b16 %v1206
        %v2469 = vunpack.c.l.b16 %v1207
        %v2470 = vunpack.c.h.b16 %v1207
        %v2471 = vunpack.c.l.b16 %v1208
        %v2472 = vunpack.c.h.b16 %v1208
        %v2473 = vunpack.c.l.b16 %v1209
        %v2474 = vunpack.c.h.b16 %v1209
        %v2475 = vunpack.c.l.b16 %v1210
        %v2476 = vunpack.c.h.b16 %v1210
        %v2477 = vunpack.c.l.b16 %v1211
        %v2478 = vunpack.c.h.b16 %v1211
        %v2479 = vunpack.c.l.b16 %v1212
        %v2480 = vunpack.c.h.b16 %v1212
        %v2481 = vunpack.c.l.b16 %v1213
        %v2482 = vunpack.c.h.b16 %v1213
        %v2483 = vunpack.c.l.b16 %v1214
        %v2484 = vunpack.c.h.b16 %v1214
        %v2485 = vunpack.c.l.b16 %v1215
        %v2486 = vunpack.c.h.b16 %v1215
        %v2487 = vunpack.c.l.b16 %v1216
        %v2488 = vunpack.c.h.b16 %v1216
        %v2489 = vunpack.c.l.b16 %v1217
        %v2490 = vunpack.c.h.b16 %v1217
        %v2491 = vunpack.c.l.b16 %v1218
        %v2492 = vunpack.c.h.b16 %v1218
        %v2493 = vunpack.c.l.b16 %v1219
        %v2494 = vunpack.c.h.b16 %v1219
        %v2495 = vunpack.c.l.b16 %v1220
        %v2496 = vunpack.c.h.b16 %v1220
        %v2497 = vunpack.c.l.b16 %v1221
        %v2498 = vunpack.c.h.b16 %v1221
        %v2499 = vunpack.c.l.b16 %v1222
        %v2500 = vunpack.c.h.b16 %v1222
        %v2501 = vunpack.c.l.b16 %v1223
        %v2502 = vunpack.c.h.b16 %v1223
        %v2503 = vunpack.c.l.b16 %v1224
        %v2504 = vunpack.c.h.b16 %v1224
        %v2505 = vunpack.c.l.b16 %v1225
        %v2506 = vunpack.c.h.b16 %v1225
        %v2507 = vunpack.c.l.b16 %v1226
        %v2508 = vunpack.c.h.b16 %v1226
        %v2509 = vunpack.c.l.b16 %v1227
        %v2510 = vunpack.c.h.b16 %v1227
        %v2511 = vunpack.c.l.b16 %v1228
        %v2512 = vunpack.c.h.b16 %v1228
        %v2513 = vunpack.c.l.b16 %v1229
        %v2514 = vunpack.c.h.b16 %v1229
        %v2515 = vunpack.c.l.b16 %v1230
        %v2516 = vunpack.c.h.b16 %v1230
        %v2517 = vunpack.c.l.b16 %v1231
        %v2518 = vunpack.c.h.b16 %v1231
        %v2519 = vunpack.c.l.b16 %v1232
        %v2520 = vunpack.c.h.b16 %v1232
        %v2521 = vunpack.c.l.b16 %v1233
        %v2522 = vunpack.c.h.b16 %v1233
        %v2523 = vunpack.c.l.b16 %v1234
        %v2524 = vunpack.c.h.b16 %v1234
        %v2525 = vunpack.c.l.b16 %v1235
        %v2526 = vunpack.c.h.b16 %v1235
        %v2527 = vunpack.c.l.b16 %v1236
        %v2528 = vunpack.c.h.b16 %v1236
        %v2529 = vunpack.c.l.b16 %v1237
        %v2530 = vunpack.c.h.b16 %v1237
        %v2531 = vunpack.c.l.b16 %v1238
        %v2532 = vunpack.c.h.b16 %v1238
        %v2533 = vunpack.c.l.b16 %v1239
        %v2534 = vunpack.c.h.b16 %v1239
        %v2535 = vunpack.c.l.b16 %v1240
        %v2536 = vunpack.c.h.b16 %v1240
        %v2537 = vunpack.c.l.b16 %v1241
        %v2538 = vunpack.c.h.b16 %v1241
        %v2539 = vunpack.c.l.b16 %v1242
        %v2540 = vunpack.c.h.b16 %v1242
        %v2541 = vunpack.c.l.b16 %v1243
        %v2542 = vunpack.c.h.b16 %v1243
        %v2543 = vunpack.c.l.b16 %v1244
        %v2544 = vunpack.c.h.b16 %v1244
        %v2545 = vunpack.c.l.b16 %v1245
        %v2546 = vunpack.c.h.b16 %v1245
        %v2547 = vunpack.c.l.b16 %v1246
        %v2548 = vunpack.c.h.b16 %v1246
        %v2549 = vunpack.c.l.b16 %v1247
        %v2550 = vunpack.c.h.b16 %v1247
        %v2551 = vunpack.c.l.b16 %v1248
        %v2552 = vunpack.c.h.b16 %v1248
        %v2553 = vunpack.c.l.b16 %v1249
        %v2554 = vunpack.c.h.b16 %v1249
        %v2555 = vunpack.c.l.b16 %v1250
        %v2556 = vunpack.c.h.b16 %v1250
        %v2557 = vunpack.c.l.b16 %v1251
        %v2558 = vunpack.c.h.b16 %v1251
        %v2559 = vunpack.c.l.b16 %v1252
        %v2560 = vunpack.c.h.b16 %v1252
        %v2561 = vunpack.c.l.b16 %v1253
        %v2562 = vunpack.c.h.b16 %v1253
        %v2563 = vunpack.c.l.b16 %v1254
        %v2564 = vunpack.c.h.b16 %v1254
        %v2565 = vunpack.c.l.b16 %v1255
        %v2566 = vunpack.c.h.b16 %v1255
        %v2567 = vunpack.c.l.b16 %v1256
        %v2568 = vunpack.c.h.b16 %v1256
        %v2569 = vunpack.c.l.b16 %v1257
        %v2570 = vunpack.c.h.b16 %v1257
        %v2571 = vunpack.c.l.b16 %v1258
        %v2572 = vunpack.c.h.b16 %v1258
        %v2573 = vunpack.c.l.b16 %v1259
        %v2574 = vunpack.c.h.b16 %v1259
        %v2575 = vunpack.c.l.b16 %v1260
        %v2576 = vunpack.c.h.b16 %v1260
        %v2577 = vunpack.c.l.b16 %v1261
        %v2578 = vunpack.c.h.b16 %v1261
        %v2579 = vunpack.c.l.b16 %v1262
        %v2580 = vunpack.c.h.b16 %v1262
        %v2581 = vunpack.c.l.b16 %v1263
        %v2582 = vunpack.c.h.b16 %v1263
        %v2583 = vunpack.c.l.b16 %v1264
        %v2584 = vunpack.c.h.b16 %v1264
        %v2585 = vunpack.c.l.b16 %v1265
        %v2586 = vunpack.c.h.b16 %v1265
        %v2587 = vunpack.c.l.b16 %v1266
        %v2588 = vunpack.c.h.b16 %v1266
        %v2589 = vunpack.c.l.b16 %v1267
        %v2590 = vunpack.c.h.b16 %v1267
        %v2591 = vunpack.c.l.b16 %v1268
        %v2592 = vunpack.c.h.b16 %v1268
        %v2593 = vunpack.c.l.b16 %v1269
        %v2594 = vunpack.c.h.b16 %v1269
        %v2595 = vunpack.c.l.b16 %v1270
        %v2596 = vunpack.c.h.b16 %v1270
        %v2597 = vunpack.c.l.b16 %v1271
        %v2598 = vunpack.c.h.b16 %v1271
        %v2599 = vunpack.c.l.b16 %v1272
        %v2600 = vunpack.c.h.b16 %v1272
        %v2601 = vunpack.c.l.b16 %v1273
        %v2602 = vunpack.c.h.b16 %v1273
        %v2603 = vunpack.c.l.b16 %v1274
        %v2604 = vunpack.c.h.b16 %v1274
        %v2605 = vunpack.c.l.b16 %v1275
        %v2606 = vunpack.c.h.b16 %v1275
        %v2607 = vunpack.c.l.b16 %v1276
        %v2608 = vunpack.c.h.b16 %v1276
        %v2609 = vunpack.c.l.b16 %v1277
        %v2610 = vunpack.c.h.b16 %v1277
        %v2611 = vunpack.c.l.b16 %v1278
        %v2612 = vunpack.c.h.b16 %v1278
        %v2613 = vunpack.c.l.b16 %v1279
        %v2614 = vunpack.c.h.b16 %v1279
        %v2615 = vunpack.c.l.b16 %v1280
        %v2616 = vunpack.c.h.b16 %v1280
        %v2617 = vunpack.c.l.b16 %v1281
        %v2618 = vunpack.c.h.b16 %v1281
        %v2619 = vunpack.c.l.b16 %v1282
        %v2620 = vunpack.c.h.b16 %v1282
        %v2621 = vunpack.c.l.b16 %v1283
        %v2622 = vunpack.c.h.b16 %v1283
        %v2623 = vunpack.c.l.b16 %v1284
        %v2624 = vunpack.c.h.b16 %v1284
        %v2625 = vunpack.c.l.b16 %v1285
        %v2626 = vunpack.c.h.b16 %v1285
        %v2627 = vunpack.c.l.b16 %v1286
        %v2628 = vunpack.c.h.b16 %v1286
        %v2629 = vunpack.c.l.b16 %v1287
        %v2630 = vunpack.c.h.b16 %v1287
        %v2631 = vunpack.c.l.b16 %v1288
        %v2632 = vunpack.c.h.b16 %v1288
        %v2633 = vunpack.c.l.b16 %v1289
        %v2634 = vunpack.c.h.b16 %v1289
        %v2635 = vunpack.c.l.b16 %v1290
        %v2636 = vunpack.c.h.b16 %v1290
        %v2637 = vunpack.c.l.b16 %v1291
        %v2638 = vunpack.c.h.b16 %v1291
        %v2639 = vunpack.c.l.b16 %v1292
        %v2640 = vunpack.c.h.b16 %v1292
        %v2641 = vunpack.c.l.b16 %v1293
        %v2642 = vunpack.c.h.b16 %v1293
        %v2643 = vunpack.c.l.b16 %v1294
        %v2644 = vunpack.c.h.b16 %v1294
        %v2645 = vunpack.c.l.b16 %v1295
        %v2646 = vunpack.c.h.b16 %v1295
        %v2647 = vunpack.c.l.b16 %v1296
        %v2648 = vunpack.c.h.b16 %v1296
        %v2649 = vunpack.c.l.b16 %v1297
        %v2650 = vunpack.c.h.b16 %v1297
        %v2651 = vunpack.c.l.b16 %v1298
        %v2652 = vunpack.c.h.b16 %v1298
        %v2653 = vunpack.c.l.b16 %v1299
        %v2654 = vunpack.c.h.b16 %v1299
        %v2655 = vunpack.c.l.b16 %v1300
        %v2656 = vunpack.c.h.b16 %v1300
        %v2657 = vunpack.c.l.b16 %v1301
        %v2658 = vunpack.c.h.b16 %v1301
        %v2659 = vunpack.c.l.b16 %v1302
        %v2660 = vunpack.c.h.b16 %v1302
        %v2661 = vunpack.c.l.b16 %v1303
        %v2662 = vunpack.c.h.b16 %v1303
        %v2663 = vunpack.c.l.b16 %v1304
        %v2664 = vunpack.c.h.b16 %v1304
        %v2665 = vunpack.c.l.b16 %v1305
        %v2666 = vunpack.c.h.b16 %v1305
        %v2667 = vunpack.c.l.b16 %v1306
        %v2668 = vunpack.c.h.b16 %v1306
        %v2669 = vunpack.c.l.b16 %v1307
        %v2670 = vunpack.c.h.b16 %v1307
        %v2671 = vunpack.c.l.b16 %v1308
        %v2672 = vunpack.c.h.b16 %v1308
        %v2673 = vunpack.c.l.b16 %v1309
        %v2674 = vunpack.c.h.b16 %v1309
        %v2675 = vunpack.c.l.b16 %v1310
        %v2676 = vunpack.c.h.b16 %v1310
        %v2677 = vunpack.c.l.b16 %v1311
        %v2678 = vunpack.c.h.b16 %v1311
        %v2679 = vunpack.c.l.b16 %v1312
        %v2680 = vunpack.c.h.b16 %v1312
        %v2681 = vunpack.c.l.b16 %v1313
        %v2682 = vunpack.c.h.b16 %v1313
        %v2683 = vunpack.c.l.b16 %v1314
        %v2684 = vunpack.c.h.b16 %v1314
        %v2685 = vunpack.c.l.b16 %v1315
        %v2686 = vunpack.c.h.b16 %v1315
        %v2687 = vunpack.c.l.b16 %v1316
        %v2688 = vunpack.c.h.b16 %v1316
        %v2689 = vunpack.c.l.b16 %v1317
        %v2690 = vunpack.c.h.b16 %v1317
        %v2691 = vunpack.c.l.b16 %v1318
        %v2692 = vunpack.c.h.b16 %v1318
        %v2693 = vunpack.c.l.b16 %v1319
        %v2694 = vunpack.c.h.b16 %v1319
        %v2695 = vunpack.c.l.b16 %v1320
        %v2696 = vunpack.c.h.b16 %v1320
        %v2697 = vunpack.c.l.b16 %v1321
        %v2698 = vunpack.c.h.b16 %v1321
        %v2699 = vunpack.c.l.b16 %v1322
        %v2700 = vunpack.c.h.b16 %v1322
        %v2701 = vunpack.c.l.b16 %v1323
        %v2702 = vunpack.c.h.b16 %v1323
        %v2703 = vunpack.c.l.b16 %v1324
        %v2704 = vunpack.c.h.b16 %v1324
        %v2705 = vunpack.c.l.b16 %v1325
        %v2706 = vunpack.c.h.b16 %v1325
        %v2707 = vunpack.c.l.b16 %v1326
        %v2708 = vunpack.c.h.b16 %v1326
        %v2709 = vunpack.c.l.b16 %v1327
        %v2710 = vunpack.c.h.b16 %v1327
        %v2711 = vunpack.c.l.b16 %v1328
        %v2712 = vunpack.c.h.b16 %v1328
        %v2713 = vunpack.c.l.b16 %v1329
        %v2714 = vunpack.c.h.b16 %v1329
        %v2715 = vunpack.c.l.b16 %v1330
        %v2716 = vunpack.c.h.b16 %v1330
        %v2717 = vunpack.c.l.b16 %v1331
        %v2718 = vunpack.c.h.b16 %v1331
        %v2719 = vunpack.c.l.b16 %v1332
        %v2720 = vunpack.c.h.b16 %v1332
        %v2721 = vunpack.c.l.b16 %v1333
        %v2722 = vunpack.c.h.b16 %v1333
        %v2723 = vunpack.c.l.b16 %v1334
        %v2724 = vunpack.c.h.b16 %v1334
        %v2725 = vunpack.c.l.b16 %v1335
        %v2726 = vunpack.c.h.b16 %v1335
        %v2727 = vunpack.c.l.b16 %v1336
        %v2728 = vunpack.c.h.b16 %v1336
        %v2729 = vunpack.c.l.b16 %v1337
        %v2730 = vunpack.c.h.b16 %v1337
        %v2731 = vunpack.c.l.b16 %v1338
        %v2732 = vunpack.c.h.b16 %v1338
        %v2733 = vunpack.c.l.b16 %v1339
        %v2734 = vunpack.c.h.b16 %v1339
        %v2735 = vunpack.c.l.b16 %v1340
        %v2736 = vunpack.c.h.b16 %v1340
        %v2737 = vunpack.c.l.b16 %v1341
        %v2738 = vunpack.c.h.b16 %v1341
        %v2739 = vunpack.c.l.b16 %v1342
        %v2740 = vunpack.c.h.b16 %v1342
        %v2741 = vunpack.c.l.b16 %v1343
        %v2742 = vunpack.c.h.b16 %v1343
        %v2743 = vunpack.c.l.b16 %v1344
        %v2744 = vunpack.c.h.b16 %v1344
        %v2745 = vunpack.c.l.b16 %v1345
        %v2746 = vunpack.c.h.b16 %v1345
        %v2747 = vunpack.c.l.b16 %v1346
        %v2748 = vunpack.c.h.b16 %v1346
        %v2749 = vunpack.c.l.b16 %v1347
        %v2750 = vunpack.c.h.b16 %v1347
        %v2751 = vunpack.c.l.b16 %v1348
        %v2752 = vunpack.c.h.b16 %v1348
        %v2753 = vunpack.c.l.b16 %v1349
        %v2754 = vunpack.c.h.b16 %v1349
        %v2755 = vunpack.c.l.b16 %v1350
        %v2756 = vunpack.c.h.b16 %v1350
        %v2757 = vunpack.c.l.b16 %v1351
        %v2758 = vunpack.c.h.b16 %v1351
        %v2759 = vunpack.c.l.b16 %v1352
        %v2760 = vunpack.c.h.b16 %v1352
        %v2761 = vunpack.c.l.b16 %v1353
        %v2762 = vunpack.c.h.b16 %v1353
        %v2763 = vunpack.c.l.b16 %v1354
        %v2764 = vunpack.c.h.b16 %v1354
        %v2765 = vunpack.c.l.b16 %v1355
        %v2766 = vunpack.c.h.b16 %v1355
        %v2767 = vunpack.c.l.b16 %v1356
        %v2768 = vunpack.c.h.b16 %v1356
        %v2769 = vunpack.c.l.b16 %v1357
        %v2770 = vunpack.c.h.b16 %v1357
        %v2771 = vunpack.c.l.b16 %v1358
        %v2772 = vunpack.c.h.b16 %v1358
        %v2773 = vunpack.c.l.b16 %v1359
        %v2774 = vunpack.c.h.b16 %v1359
        %v2775 = vunpack.c.l.b16 %v1360
        %v2776 = vunpack.c.h.b16 %v1360
        %v2777 = vunpack.c.l.b16 %v1361
        %v2778 = vunpack.c.h.b16 %v1361
        %v2779 = vunpack.c.l.b16 %v1362
        %v2780 = vunpack.c.h.b16 %v1362
        %v2781 = vunpack.c.l.b16 %v1363
        %v2782 = vunpack.c.h.b16 %v1363
        %v2783 = vunpack.c.l.b16 %v1364
        %v2784 = vunpack.c.h.b16 %v1364
        %v2785 = vunpack.c.l.b16 %v1365
        %v2786 = vunpack.c.h.b16 %v1365
        %v2787 = vunpack.c.l.b16 %v1366
        %v2788 = vunpack.c.h.b16 %v1366
        %v2789 = vunpack.c.l.b16 %v1367
        %v2790 = vunpack.c.h.b16 %v1367
        %v2791 = vunpack.c.l.b16 %v1368
        %v2792 = vunpack.c.h.b16 %v1368
        %v2793 = vunpack.c.l.b16 %v1369
        %v2794 = vunpack.c.h.b16 %v1369
        %v2795 = vunpack.c.l.b16 %v1370
        %v2796 = vunpack.c.h.b16 %v1370
        %v2797 = vunpack.c.l.b16 %v1371
        %v2798 = vunpack.c.h.b16 %v1371
        %v2799 = vunpack.c.l.b16 %v1372
        %v2800 = vunpack.c.h.b16 %v1372
        %v2801 = vunpack.c.l.b16 %v1373
        %v2802 = vunpack.c.h.b16 %v1373
        %v2803 = vunpack.c.l.b16 %v1374
        %v2804 = vunpack.c.h.b16 %v1374
        %v2805 = vunpack.c.l.b16 %v1375
        %v2806 = vunpack.c.h.b16 %v1375
        %v2807 = vunpack.c.l.b16 %v1376
        %v2808 = vunpack.c.h.b16 %v1376
        %v2809 = vunpack.c.l.b16 %v1377
        %v2810 = vunpack.c.h.b16 %v1377
        %v2811 = vunpack.c.l.b16 %v1378
        %v2812 = vunpack.c.h.b16 %v1378
        %v2813 = vunpack.c.l.b16 %v1379
        %v2814 = vunpack.c.h.b16 %v1379
        %v2815 = vunpack.c.l.b16 %v1380
        %v2816 = vunpack.c.h.b16 %v1380
        %v2817 = vunpack.c.l.b16 %v1381
        %v2818 = vunpack.c.h.b16 %v1381
        %v2819 = vunpack.c.l.b16 %v1382
        %v2820 = vunpack.c.h.b16 %v1382
        %v2821 = vunpack.c.l.b16 %v1383
        %v2822 = vunpack.c.h.b16 %v1383
        %v2823 = vunpack.c.l.b16 %v1384
        %v2824 = vunpack.c.h.b16 %v1384
        %v2825 = vunpack.c.l.b16 %v1385
        %v2826 = vunpack.c.h.b16 %v1385
        %v2827 = vunpack.c.l.b16 %v1386
        %v2828 = vunpack.c.h.b16 %v1386
        %v2829 = vunpack.c.l.b16 %v1387
        %v2830 = vunpack.c.h.b16 %v1387
        %v2831 = vunpack.c.l.b16 %v1388
        %v2832 = vunpack.c.h.b16 %v1388
        %v2833 = vunpack.c.l.b16 %v1389
        %v2834 = vunpack.c.h.b16 %v1389
        %v2835 = vunpack.c.l.b16 %v1390
        %v2836 = vunpack.c.h.b16 %v1390
        %v2837 = vunpack.c.l.b16 %v1391
        %v2838 = vunpack.c.h.b16 %v1391
        %v2839 = vunpack.c.l.b16 %v1392
        %v2840 = vunpack.c.h.b16 %v1392
        %v2841 = vunpack.c.l.b16 %v1393
        %v2842 = vunpack.c.h.b16 %v1393
        %v2843 = vunpack.c.l.b16 %v1394
        %v2844 = vunpack.c.h.b16 %v1394
        %v2845 = vunpack.c.l.b16 %v1395
        %v2846 = vunpack.c.h.b16 %v1395
        %v2847 = vunpack.c.l.b16 %v1396
        %v2848 = vunpack.c.h.b16 %v1396
        %v2849 = vunpack.c.l.b16 %v1397
        %v2850 = vunpack.c.h.b16 %v1397
        %v2851 = vunpack.c.l.b16 %v1398
        %v2852 = vunpack.c.h.b16 %v1398
        %v2853 = vunpack.c.l.b16 %v1399
        %v2854 = vunpack.c.h.b16 %v1399
        %v2855 = vunpack.c.l.b16 %v1400
        %v2856 = vunpack.c.h.b16 %v1400
        %v2857 = vunpack.c.l.b16 %v1401
        %v2858 = vunpack.c.h.b16 %v1401
        %v2859 = vunpack.c.l.b16 %v1402
        %v2860 = vunpack.c.h.b16 %v1402
        %v2861 = vunpack.c.l.b16 %v1403
        %v2862 = vunpack.c.h.b16 %v1403
        %v2863 = vunpack.c.l.b16 %v1404
        %v2864 = vunpack.c.h.b16 %v1404
        %v2865 = vunpack.c.l.b16 %v1405
        %v2866 = vunpack.c.h.b16 %v1405
        %v2867 = vunpack.c.l.b16 %v1406
        %v2868 = vunpack.c.h.b16 %v1406
        %v2869 = vunpack.c.l.b16 %v1407
        %v2870 = vunpack.c.h.b16 %v1407
        %v2871 = vunpack.c.l.b16 %v1408
        %v2872 = vunpack.c.h.b16 %v1408
        %v2873 = vunpack.c.l.b16 %v1409
        %v2874 = vunpack.c.h.b16 %v1409
        %v2875 = vunpack.c.l.b16 %v1410
        %v2876 = vunpack.c.h.b16 %v1410
        %v2877 = vunpack.c.l.b16 %v1411
        %v2878 = vunpack.c.h.b16 %v1411
        %v2879 = vunpack.c.l.b16 %v1412
        %v2880 = vunpack.c.h.b16 %v1412
        %v2881 = vunpack.c.l.b16 %v1413
        %v2882 = vunpack.c.h.b16 %v1413
        %v2883 = vunpack.c.l.b16 %v1414
        %v2884 = vunpack.c.h.b16 %v1414
        %v2885 = vunpack.c.l.b16 %v1415
        %v2886 = vunpack.c.h.b16 %v1415
        %v2887 = vunpack.c.l.b16 %v1416
        %v2888 = vunpack.c.h.b16 %v1416
        %v2889 = vunpack.c.l.b16 %v1417
        %v2890 = vunpack.c.h.b16 %v1417
        %v2891 = vunpack.c.l.b16 %v1418
        %v2892 = vunpack.c.h.b16 %v1418
        %v2893 = vunpack.c.l.b16 %v1419
        %v2894 = vunpack.c.h.b16 %v1419
        %v2895 = vunpack.c.l.b16 %v1420
        %v2896 = vunpack.c.h.b16 %v1420
        %v2897 = vunpack.c.l.b16 %v1421
        %v2898 = vunpack.c.h.b16 %v1421
        %v2899 = vunpack.c.l.b16 %v1422
        %v2900 = vunpack.c.h.b16 %v1422
        %v2901 = vunpack.c.l.b16 %v1423
        %v2902 = vunpack.c.h.b16 %v1423
        %v2903 = vunpack.c.l.b16 %v1424
        %v2904 = vunpack.c.h.b16 %v1424
        %v2905 = vunpack.c.l.b16 %v1425
        %v2906 = vunpack.c.h.b16 %v1425
        %v2907 = vunpack.c.l.b16 %v1426
        %v2908 = vunpack.c.h.b16 %v1426
        %v2909 = vunpack.c.l.b16 %v1427
        %v2910 = vunpack.c.h.b16 %v1427
        %v2911 = vunpack.c.l.b16 %v1428
        %v2912 = vunpack.c.h.b16 %v1428
        %v2913 = vunpack.c.l.b16 %v1429
        %v2914 = vunpack.c.h.b16 %v1429
        %v2915 = vunpack.c.l.b16 %v1430
        %v2916 = vunpack.c.h.b16 %v1430
        %v2917 = vunpack.c.l.b16 %v1431
        %v2918 = vunpack.c.h.b16 %v1431
        %v2919 = vunpack.c.l.b16 %v1432
        %v2920 = vunpack.c.h.b16 %v1432
        %v2921 = vunpack.c.l.b16 %v1433
        %v2922 = vunpack.c.h.b16 %v1433
        %v2923 = vunpack.c.l.b16 %v1434
        %v2924 = vunpack.c.h.b16 %v1434
        %v2925 = vunpack.c.l.b16 %v1435
        %v2926 = vunpack.c.h.b16 %v1435
        %v2927 = vunpack.c.l.b16 %v1436
        %v2928 = vunpack.c.h.b16 %v1436
        %v2929 = vunpack.c.l.b16 %v1437
        %v2930 = vunpack.c.h.b16 %v1437
        %v2931 = vunpack.c.l.b16 %v1438
        %v2932 = vunpack.c.h.b16 %v1438
        %v2933 = vunpack.c.l.b16 %v1439
        %v2934 = vunpack.c.h.b16 %v1439
        %v2935 = vunpack.c.l.b16 %v1440
        %v2936 = vunpack.c.h.b16 %v1440
        %v2937 = vunpack.c.l.b16 %v1441
        %v2938 = vunpack.c.h.b16 %v1441
        %v2939 = vunpack.c.l.b16 %v1442
        %v2940 = vunpack.c.h.b16 %v1442
        %v2941 = vunpack.c.l.b16 %v1443
        %v2942 = vunpack.c.h.b16 %v1443
        %v2943 = vunpack.c.l.b16 %v1444
        %v2944 = vunpack.c.h.b16 %v1444
        %v2945 = vunpack.c.l.b16 %v1445
        %v2946 = vunpack.c.h.b16 %v1445
        %v2947 = vunpack.c.l.b16 %v1446
        %v2948 = vunpack.c.h.b16 %v1446
        %v2949 = vunpack.c.l.b16 %v1447
        %v2950 = vunpack.c.h.b16 %v1447
        %v2951 = vunpack.c.l.b16 %v1448
        %v2952 = vunpack.c.h.b16 %v1448
        %v2953 = vunpack.c.l.b16 %v1449
        %v2954 = vunpack.c.h.b16 %v1449
        %v2955 = vunpack.c.l.b16 %v1450
        %v2956 = vunpack.c.h.b16 %v1450
        %v2957 = vunpack.c.l.b16 %v1451
        %v2958 = vunpack.c.h.b16 %v1451
        %v2959 = vunpack.c.l.b16 %v1452
        %v2960 = vunpack.c.h.b16 %v1452
        %v2961 = vunpack.c.l.b16 %v1453
        %v2962 = vunpack.c.h.b16 %v1453
        %v2963 = vunpack.c.l.b16 %v1454
        %v2964 = vunpack.c.h.b16 %v1454
        %v2965 = vunpack.c.l.b16 %v1455
        %v2966 = vunpack.c.h.b16 %v1455
        %v2967 = vunpack.c.l.b16 %v1456
        %v2968 = vunpack.c.h.b16 %v1456
        %v2969 = vunpack.c.l.b16 %v1457
        %v2970 = vunpack.c.h.b16 %v1457
        %v2971 = vunpack.c.l.b16 %v1458
        %v2972 = vunpack.c.h.b16 %v1458
        %v2973 = vunpack.c.l.b16 %v1459
        %v2974 = vunpack.c.h.b16 %v1459
        %v2975 = vunpack.c.l.b16 %v1460
        %v2976 = vunpack.c.h.b16 %v1460
        %v2977 = vunpack.c.l.b16 %v1461
        %v2978 = vunpack.c.h.b16 %v1461
        %v2979 = vunpack.c.l.b16 %v1462
        %v2980 = vunpack.c.h.b16 %v1462
        %v2981 = vunpack.c.l.b16 %v1463
        %v2982 = vunpack.c.h.b16 %v1463
        %v2983 = vunpack.c.l.b16 %v1464
        %v2984 = vunpack.c.h.b16 %v1464
        %v2985 = vunpack.c.l.b16 %v1465
        %v2986 = vunpack.c.h.b16 %v1465
        %v2987 = vunpack.c.l.b16 %v1466
        %v2988 = vunpack.c.h.b16 %v1466
        %v2989 = vunpack.c.l.b16 %v1467
        %v2990 = vunpack.c.h.b16 %v1467
        %v2991 = vunpack.c.l.b16 %v1468
        %v2992 = vunpack.c.h.b16 %v1468
        %v2993 = vunpack.c.l.b16 %v1469
        %v2994 = vunpack.c.h.b16 %v1469
        %v2995 = vunpack.c.l.b16 %v1470
        %v2996 = vunpack.c.h.b16 %v1470
        %v2997 = vunpack.c.l.b16 %v1471
        %v2998 = vunpack.c.h.b16 %v1471
        %v2999 = vunpack.c.l.b16 %v1472
        %v3000 = vunpack.c.h.b16 %v1472
        %v3001 = vunpack.c.l.b16 %v1473
        %v3002 = vunpack.c.h.b16 %v1473
        %v3003 = vunpack.c.l.b16 %v1474
        %v3004 = vunpack.c.h.b16 %v1474
        %v3005 = vunpack.c.l.b16 %v1475
        %v3006 = vunpack.c.h.b16 %v1475
        %v3007 = vunpack.c.l.b16 %v1476
        %v3008 = vunpack.c.h.b16 %v1476
        %v3009 = vunpack.c.l.b16 %v1477
        %v3010 = vunpack.c.h.b16 %v1477
        %v3011 = vunpack.c.l.b16 %v1478
        %v3012 = vunpack.c.h.b16 %v1478
        %v3013 = vunpack.c.l.b16 %v1479
        %v3014 = vunpack.c.h.b16 %v1479
        %v3015 = vunpack.c.l.b16 %v1480
        %v3016 = vunpack.c.h.b16 %v1480
        %v3017 = vpack.c.b16 %v2001, %v1993
        %v3018 = vpack.c.b16 %v2002, %v1994
        %v3019 = vpack.c.b16 %v2003, %v1995
        %v3020 = vpack.c.b16 %v2004, %v1996
        %v3021 = vpack.c.b16 %v2005, %v1997
        %v3022 = vpack.c.b16 %v2006, %v1998
        %v3023 = vpack.c.b16 %v2007, %v1999
        %v3024 = vpack.c.b16 %v2008, %v2000
        %v3025 = vpack.c.b16 %v2017, %v2009
        %v3026 = vpack.c.b16 %v2018, %v2010
        %v3027 = vpack.c.b16 %v2019, %v2011
        %v3028 = vpack.c.b16 %v2020, %v2012
        %v3029 = vpack.c.b16 %v2021, %v2013
        %v3030 = vpack.c.b16 %v2022, %v2014
        %v3031 = vpack.c.b16 %v2023, %v2015
        %v3032 = vpack.c.b16 %v2024, %v2016
        %v3033 = vpack.c.b16 %v2033, %v2025
        %v3034 = vpack.c.b16 %v2034, %v2026
        %v3035 = vpack.c.b16 %v2035, %v2027
        %v3036 = vpack.c.b16 %v2036, %v2028
        %v3037 = vpack.c.b16 %v2037, %v2029
        %v3038 = vpack.c.b16 %v2038, %v2030
        %v3039 = vpack.c.b16 %v2039, %v2031
        %v3040 = vpack.c.b16 %v2040, %v2032
        %v3041 = vpack.c.b16 %v2049, %v2041
        %v3042 = vpack.c.b16 %v2050, %v2042
        %v3043 = vpack.c.b16 %v2051, %v2043
        %v3044 = vpack.c.b16 %v2052, %v2044
        %v3045 = vpack.c.b16 %v2053, %v2045
        %v3046 = vpack.c.b16 %v2054, %v2046
        %v3047 = vpack.c.b16 %v2055, %v2047
        %v3048 = vpack.c.b16 %v2056, %v2048
        %v3049 = vpack.c.b16 %v2065, %v2057
        %v3050 = vpack.c.b16 %v2066, %v2058
        %v3051 = vpack.c.b16 %v2067, %v2059
        %v3052 = vpack.c.b16 %v2068, %v2060
        %v3053 = vpack.c.b16 %v2069, %v2061
        %v3054 = vpack.c.b16 %v2070, %v2062
        %v3055 = vpack.c.b16 %v2071, %v2063
        %v3056 = vpack.c.b16 %v2072, %v2064
        %v3057 = vpack.c.b16 %v2081, %v2073
        %v3058 = vpack.c.b16 %v2082, %v2074
        %v3059 = vpack.c.b16 %v2083, %v2075
        %v3060 = vpack.c.b16 %v2084, %v2076
        %v3061 = vpack.c.b16 %v2085, %v2077
        %v3062 = vpack.c.b16 %v2086, %v2078
        %v3063 = vpack.c.b16 %v2087, %v2079
        %v3064 = vpack.c.b16 %v2088, %v2080
        %v3065 = vpack.c.b16 %v2097, %v2089
        %v3066 = vpack.c.b16 %v2098, %v2090
        %v3067 = vpack.c.b16 %v2099, %v2091
        %v3068 = vpack.c.b16 %v2100, %v2092
        %v3069 = vpack.c.b16 %v2101, %v2093
        %v3070 = vpack.c.b16 %v2102, %v2094
        %v3071 = vpack.c.b16 %v2103, %v2095
        %v3072 = vpack.c.b16 %v2104, %v2096
        %v3073 = vpack.c.b16 %v2113, %v2105
        %v3074 = vpack.c.b16 %v2114, %v2106
        %v3075 = vpack.c.b16 %v2115, %v2107
        %v3076 = vpack.c.b16 %v2116, %v2108
        %v3077 = vpack.c.b16 %v2117, %v2109
        %v3078 = vpack.c.b16 %v2118, %v2110
        %v3079 = vpack.c.b16 %v2119, %v2111
        %v3080 = vpack.c.b16 %v2120, %v2112
        %v3081 = vpack.c.b16 %v2129, %v2121
        %v3082 = vpack.c.b16 %v2130, %v2122
        %v3083 = vpack.c.b16 %v2131, %v2123
        %v3084 = vpack.c.b16 %v2132, %v2124
        %v3085 = vpack.c.b16 %v2133, %v2125
        %v3086 = vpack.c.b16 %v2134, %v2126
        %v3087 = vpack.c.b16 %v2135, %v2127
        %v3088 = vpack.c.b16 %v2136, %v2128
        %v3089 = vpack.c.b16 %v2145, %v2137
        %v3090 = vpack.c.b16 %v2146, %v2138
        %v3091 = vpack.c.b16 %v2147, %v2139
        %v3092 = vpack.c.b16 %v2148, %v2140
        %v3093 = vpack.c.b16 %v2149, %v2141
        %v3094 = vpack.c.b16 %v2150, %v2142
        %v3095 = vpack.c.b16 %v2151, %v2143
        %v3096 = vpack.c.b16 %v2152, %v2144
        %v3097 = vpack.c.b16 %v2161, %v2153
        %v3098 = vpack.c.b16 %v2162, %v2154
        %v3099 = vpack.c.b16 %v2163, %v2155
        %v3100 = vpack.c.b16 %v2164, %v2156
        %v3101 = vpack.c.b16 %v2165, %v2157
        %v3102 = vpack.c.b16 %v2166, %v2158
        %v3103 = vpack.c.b16 %v2167, %v2159
        %v3104 = vpack.c.b16 %v2168, %v2160
        %v3105 = vpack.c.b16 %v2177, %v2169
        %v3106 = vpack.c.b16 %v2178, %v2170
        %v3107 = vpack.c.b16 %v2179, %v2171
        %v3108 = vpack.c.b16 %v2180, %v2172
        %v3109 = vpack.c.b16 %v2181, %v2173
        %v3110 = vpack.c.b16 %v2182, %v2174
        %v3111 = vpack.c.b16 %v2183, %v2175
        %v3112 = vpack.c.b16 %v2184, %v2176
        %v3113 = vpack.c.b16 %v2193, %v2185
        %v3114 = vpack.c.b16 %v2194, %v2186
        %v3115 = vpack.c.b16 %v2195, %v2187
        %v3116 = vpack.c.b16 %v2196, %v2188
        %v3117 = vpack.c.b16 %v2197, %v2189
        %v3118 = vpack.c.b16 %v2198, %v2190
        %v3119 = vpack.c.b16 %v2199, %v2191
        %v3120 = vpack.c.b16 %v2200, %v2192
        %v3121 = vpack.c.b16 %v2209, %v2201
        %v3122 = vpack.c.b16 %v2210, %v2202
        %v3123 = vpack.c.b16 %v2211, %v2203
        %v3124 = vpack.c.b16 %v2212, %v2204
        %v3125 = vpack.c.b16 %v2213, %v2205
        %v3126 = vpack.c.b16 %v2214, %v2206
        %v3127 = vpack.c.b16 %v2215, %v2207
        %v3128 = vpack.c.b16 %v2216, %v2208
        %v3129 = vpack.c.b16 %v2225, %v2217
        %v3130 = vpack.c.b16 %v2226, %v2218
        %v3131 = vpack.c.b16 %v2227, %v2219
        %v3132 = vpack.c.b16 %v2228, %v2220
        %v3133 = vpack.c.b16 %v2229, %v2221
        %v3134 = vpack.c.b16 %v2230, %v2222
        %v3135 = vpack.c.b16 %v2231, %v2223
        %v3136 = vpack.c.b16 %v2232, %v2224
        %v3137 = vpack.c.b16 %v2241, %v2233
        %v3138 = vpack.c.b16 %v2242, %v2234
        %v3139 = vpack.c.b16 %v2243, %v2235
        %v3140 = vpack.c.b16 %v2244, %v2236
        %v3141 = vpack.c.b16 %v2245, %v2237
        %v3142 = vpack.c.b16 %v2246, %v2238
        %v3143 = vpack.c.b16 %v2247, %v2239
        %v3144 = vpack.c.b16 %v2248, %v2240
        %v3145 = vpack.c.b16 %v2257, %v2249
        %v3146 = vpack.c.b16 %v2258, %v2250
        %v3147 = vpack.c.b16 %v2259, %v2251
        %v3148 = vpack.c.b16 %v2260, %v2252
        %v3149 = vpack.c.b16 %v2261, %v2253
        %v3150 = vpack.c.b16 %v2262, %v2254
        %v3151 = vpack.c.b16 %v2263, %v2255
        %v3152 = vpack.c.b16 %v2264, %v2256
        %v3153 = vpack.c.b16 %v2273, %v2265
        %v3154 = vpack.c.b16 %v2274, %v2266
        %v3155 = vpack.c.b16 %v2275, %v2267
        %v3156 = vpack.c.b16 %v2276, %v2268
        %v3157 = vpack.c.b16 %v2277, %v2269
        %v3158 = vpack.c.b16 %v2278, %v2270
        %v3159 = vpack.c.b16 %v2279, %v2271
        %v3160 = vpack.c.b16 %v2280, %v2272
        %v3161 = vpack.c.b16 %v2289, %v2281
        %v3162 = vpack.c.b16 %v2290, %v2282
        %v3163 = vpack.c.b16 %v2291, %v2283
        %v3164 = vpack.c.b16 %v2292, %v2284
        %v3165 = vpack.c.b16 %v2293, %v2285
        %v3166 = vpack.c.b16 %v2294, %v2286
        %v3167 = vpack.c.b16 %v2295, %v2287
        %v3168 = vpack.c.b16 %v2296, %v2288
        %v3169 = vpack.c.b16 %v2305, %v2297
        %v3170 = vpack.c.b16 %v2306, %v2298
        %v3171 = vpack.c.b16 %v2307, %v2299
        %v3172 = vpack.c.b16 %v2308, %v2300
        %v3173 = vpack.c.b16 %v2309, %v2301
        %v3174 = vpack.c.b16 %v2310, %v2302
        %v3175 = vpack.c.b16 %v2311, %v2303
        %v3176 = vpack.c.b16 %v2312, %v2304
        %v3177 = vpack.c.b16 %v2321, %v2313
        %v3178 = vpack.c.b16 %v2322, %v2314
        %v3179 = vpack.c.b16 %v2323, %v2315
        %v3180 = vpack.c.b16 %v2324, %v2316
        %v3181 = vpack.c.b16 %v2325, %v2317
        %v3182 = vpack.c.b16 %v2326, %v2318
        %v3183 = vpack.c.b16 %v2327, %v2319
        %v3184 = vpack.c.b16 %v2328, %v2320
        %v3185 = vpack.c.b16 %v2337, %v2329
        %v3186 = vpack.c.b16 %v2338, %v2330
        %v3187 = vpack.c.b16 %v2339, %v2331
        %v3188 = vpack.c.b16 %v2340, %v2332
        %v3189 = vpack.c.b16 %v2341, %v2333
        %v3190 = vpack.c.b16 %v2342, %v2334
        %v3191 = vpack.c.b16 %v2343, %v2335
        %v3192 = vpack.c.b16 %v2344, %v2336
        %v3193 = vpack.c.b16 %v2353, %v2345
        %v3194 = vpack.c.b16 %v2354, %v2346
        %v3195 = vpack.c.b16 %v2355, %v2347
        %v3196 = vpack.c.b16 %v2356, %v2348
        %v3197 = vpack.c.b16 %v2357, %v2349
        %v3198 = vpack.c.b16 %v2358, %v2350
        %v3199 = vpack.c.b16 %v2359, %v2351
        %v3200 = vpack.c.b16 %v2360, %v2352
        %v3201 = vpack.c.b16 %v2369, %v2361
        %v3202 = vpack.c.b16 %v2370, %v2362
        %v3203 = vpack.c.b16 %v2371, %v2363
        %v3204 = vpack.c.b16 %v2372, %v2364
        %v3205 = vpack.c.b16 %v2373, %v2365
        %v3206 = vpack.c.b16 %v2374, %v2366
        %v3207 = vpack.c.b16 %v2375, %v2367
        %v3208 = vpack.c.b16 %v2376, %v2368
        %v3209 = vpack.c.b16 %v2385, %v2377
        %v3210 = vpack.c.b16 %v2386, %v2378
        %v3211 = vpack.c.b16 %v2387, %v2379
        %v3212 = vpack.c.b16 %v2388, %v2380
        %v3213 = vpack.c.b16 %v2389, %v2381
        %v3214 = vpack.c.b16 %v2390, %v2382
        %v3215 = vpack.c.b16 %v2391, %v2383
        %v3216 = vpack.c.b16 %v2392, %v2384
        %v3217 = vpack.c.b16 %v2401, %v2393
        %v3218 = vpack.c.b16 %v2402, %v2394
        %v3219 = vpack.c.b16 %v2403, %v2395
        %v3220 = vpack.c.b16 %v2404, %v2396
        %v3221 = vpack.c.b16 %v2405, %v2397
        %v3222 = vpack.c.b16 %v2406, %v2398
        %v3223 = vpack.c.b16 %v2407, %v2399
        %v3224 = vpack.c.b16 %v2408, %v2400
        %v3225 = vpack.c.b16 %v2417, %v2409
        %v3226 = vpack.c.b16 %v2418, %v2410
        %v3227 = vpack.c.b16 %v2419, %v2411
        %v3228 = vpack.c.b16 %v2420, %v2412
        %v3229 = vpack.c.b16 %v2421, %v2413
        %v3230 = vpack.c.b16 %v2422, %v2414
        %v3231 = vpack.c.b16 %v2423, %v2415
        %v3232 = vpack.c.b16 %v2424, %v2416
        %v3233 = vpack.c.b16 %v2433, %v2425
        %v3234 = vpack.c.b16 %v2434, %v2426
        %v3235 = vpack.c.b16 %v2435, %v2427
        %v3236 = vpack.c.b16 %v2436, %v2428
        %v3237 = vpack.c.b16 %v2437, %v2429
        %v3238 = vpack.c.b16 %v2438, %v2430
        %v3239 = vpack.c.b16 %v2439, %v2431
        %v3240 = vpack.c.b16 %v2440, %v2432
        %v3241 = vpack.c.b16 %v2449, %v2441
        %v3242 = vpack.c.b16 %v2450, %v2442
        %v3243 = vpack.c.b16 %v2451, %v2443
        %v3244 = vpack.c.b16 %v2452, %v2444
        %v3245 = vpack.c.b16 %v2453, %v2445
        %v3246 = vpack.c.b16 %v2454, %v2446
        %v3247 = vpack.c.b16 %v2455, %v2447
        %v3248 = vpack.c.b16 %v2456, %v2448
        %v3249 = vpack.c.b16 %v2465, %v2457
        %v3250 = vpack.c.b16 %v2466, %v2458
        %v3251 = vpack.c.b16 %v2467, %v2459
        %v3252 = vpack.c.b16 %v2468, %v2460
        %v3253 = vpack.c.b16 %v2469, %v2461
        %v3254 = vpack.c.b16 %v2470, %v2462
        %v3255 = vpack.c.b16 %v2471, %v2463
        %v3256 = vpack.c.b16 %v2472, %v2464
        %v3257 = vpack.c.b16 %v2481, %v2473
        %v3258 = vpack.c.b16 %v2482, %v2474
        %v3259 = vpack.c.b16 %v2483, %v2475
        %v3260 = vpack.c.b16 %v2484, %v2476
        %v3261 = vpack.c.b16 %v2485, %v2477
        %v3262 = vpack.c.b16 %v2486, %v2478
        %v3263 = vpack.c.b16 %v2487, %v2479
        %v3264 = vpack.c.b16 %v2488, %v2480
        %v3265 = vpack.c.b16 %v2497, %v2489
        %v3266 = vpack.c.b16 %v2498, %v2490
        %v3267 = vpack.c.b16 %v2499, %v2491
        %v3268 = vpack.c.b16 %v2500, %v2492
        %v3269 = vpack.c.b16 %v2501, %v2493
        %v3270 = vpack.c.b16 %v2502, %v2494
        %v3271 = vpack.c.b16 %v2503, %v2495
        %v3272 = vpack.c.b16 %v2504, %v2496
        %v3273 = vpack.c.b16 %v2513, %v2505
        %v3274 = vpack.c.b16 %v2514, %v2506
        %v3275 = vpack.c.b16 %v2515, %v2507
        %v3276 = vpack.c.b16 %v2516, %v2508
        %v3277 = vpack.c.b16 %v2517, %v2509
        %v3278 = vpack.c.b16 %v2518, %v2510
        %v3279 = vpack.c.b16 %v2519, %v2511
        %v3280 = vpack.c.b16 %v2520, %v2512
        %v3281 = vpack.c.b16 %v2529, %v2521
        %v3282 = vpack.c.b16 %v2530, %v2522
        %v3283 = vpack.c.b16 %v2531, %v2523
        %v3284 = vpack.c.b16 %v2532, %v2524
        %v3285 = vpack.c.b16 %v2533, %v2525
        %v3286 = vpack.c.b16 %v2534, %v2526
        %v3287 = vpack.c.b16 %v2535, %v2527
        %v3288 = vpack.c.b16 %v2536, %v2528
        %v3289 = vpack.c.b16 %v2545, %v2537
        %v3290 = vpack.c.b16 %v2546, %v2538
        %v3291 = vpack.c.b16 %v2547, %v2539
        %v3292 = vpack.c.b16 %v2548, %v2540
        %v3293 = vpack.c.b16 %v2549, %v2541
        %v3294 = vpack.c.b16 %v2550, %v2542
        %v3295 = vpack.c.b16 %v2551, %v2543
        %v3296 = vpack.c.b16 %v2552, %v2544
        %v3297 = vpack.c.b16 %v2561, %v2553
        %v3298 = vpack.c.b16 %v2562, %v2554
        %v3299 = vpack.c.b16 %v2563, %v2555
        %v3300 = vpack.c.b16 %v2564, %v2556
        %v3301 = vpack.c.b16 %v2565, %v2557
        %v3302 = vpack.c.b16 %v2566, %v2558
        %v3303 = vpack.c.b16 %v2567, %v2559
        %v3304 = vpack.c.b16 %v2568, %v2560
        %v3305 = vpack.c.b16 %v2577, %v2569
        %v3306 = vpack.c.b16 %v2578, %v2570
        %v3307 = vpack.c.b16 %v2579, %v2571
        %v3308 = vpack.c.b16 %v2580, %v2572
        %v3309 = vpack.c.b16 %v2581, %v2573
        %v3310 = vpack.c.b16 %v2582, %v2574
        %v3311 = vpack.c.b16 %v2583, %v2575
        %v3312 = vpack.c.b16 %v2584, %v2576
        %v3313 = vpack.c.b16 %v2593, %v2585
        %v3314 = vpack.c.b16 %v2594, %v2586
        %v3315 = vpack.c.b16 %v2595, %v2587
        %v3316 = vpack.c.b16 %v2596, %v2588
        %v3317 = vpack.c.b16 %v2597, %v2589
        %v3318 = vpack.c.b16 %v2598, %v2590
        %v3319 = vpack.c.b16 %v2599, %v2591
        %v3320 = vpack.c.b16 %v2600, %v2592
        %v3321 = vpack.c.b16 %v2609, %v2601
        %v3322 = vpack.c.b16 %v2610, %v2602
        %v3323 = vpack.c.b16 %v2611, %v2603
        %v3324 = vpack.c.b16 %v2612, %v2604
        %v3325 = vpack.c.b16 %v2613, %v2605
        %v3326 = vpack.c.b16 %v2614, %v2606
        %v3327 = vpack.c.b16 %v2615, %v2607
        %v3328 = vpack.c.b16 %v2616, %v2608
        %v3329 = vpack.c.b16 %v2625, %v2617
        %v3330 = vpack.c.b16 %v2626, %v2618
        %v3331 = vpack.c.b16 %v2627, %v2619
        %v3332 = vpack.c.b16 %v2628, %v2620
        %v3333 = vpack.c.b16 %v2629, %v2621
        %v3334 = vpack.c.b16 %v2630, %v2622
        %v3335 = vpack.c.b16 %v2631, %v2623
        %v3336 = vpack.c.b16 %v2632, %v2624
        %v3337 = vpack.c.b16 %v2641, %v2633
        %v3338 = vpack.c.b16 %v2642, %v2634
        %v3339 = vpack.c.b16 %v2643, %v2635
        %v3340 = vpack.c.b16 %v2644, %v2636
        %v3341 = vpack.c.b16 %v2645, %v2637
        %v3342 = vpack.c.b16 %v2646, %v2638
        %v3343 = vpack.c.b16 %v2647, %v2639
        %v3344 = vpack.c.b16 %v2648, %v2640
        %v3345 = vpack.c.b16 %v2657, %v2649
        %v3346 = vpack.c.b16 %v2658, %v2650
        %v3347 = vpack.c.b16 %v2659, %v2651
        %v3348 = vpack.c.b16 %v2660, %v2652
        %v3349 = vpack.c.b16 %v2661, %v2653
        %v3350 = vpack.c.b16 %v2662, %v2654
        %v3351 = vpack.c.b16 %v2663, %v2655
        %v3352 = vpack.c.b16 %v2664, %v2656
        %v3353 = vpack.c.b16 %v2673, %v2665
        %v3354 = vpack.c.b16 %v2674, %v2666
        %v3355 = vpack.c.b16 %v2675, %v2667
        %v3356 = vpack.c.b16 %v2676, %v2668
        %v3357 = vpack.c.b16 %v2677, %v2669
        %v3358 = vpack.c.b16 %v2678, %v2670
        %v3359 = vpack.c.b16 %v2679, %v2671
        %v3360 = vpack.c.b16 %v2680, %v2672
        %v3361 = vpack.c.b16 %v2689, %v2681
        %v3362 = vpack.c.b16 %v2690, %v2682
        %v3363 = vpack.c.b16 %v2691, %v2683
        %v3364 = vpack.c.b16 %v2692, %v2684
        %v3365 = vpack.c.b16 %v2693, %v2685
        %v3366 = vpack.c.b16 %v2694, %v2686
        %v3367 = vpack.c.b16 %v2695, %v2687
        %v3368 = vpack.c.b16 %v2696, %v2688
        %v3369 = vpack.c.b16 %v2705, %v2697
        %v3370 = vpack.c.b16 %v2706, %v2698
        %v3371 = vpack.c.b16 %v2707, %v2699
        %v3372 = vpack.c.b16 %v2708, %v2700
        %v3373 = vpack.c.b16 %v2709, %v2701
        %v3374 = vpack.c.b16 %v2710, %v2702
        %v3375 = vpack.c.b16 %v2711, %v2703
        %v3376 = vpack.c.b16 %v2712, %v2704
        %v3377 = vpack.c.b16 %v2721, %v2713
        %v3378 = vpack.c.b16 %v2722, %v2714
        %v3379 = vpack.c.b16 %v2723, %v2715
        %v3380 = vpack.c.b16 %v2724, %v2716
        %v3381 = vpack.c.b16 %v2725, %v2717
        %v3382 = vpack.c.b16 %v2726, %v2718
        %v3383 = vpack.c.b16 %v2727, %v2719
        %v3384 = vpack.c.b16 %v2728, %v2720
        %v3385 = vpack.c.b16 %v2737, %v2729
        %v3386 = vpack.c.b16 %v2738, %v2730
        %v3387 = vpack.c.b16 %v2739, %v2731
        %v3388 = vpack.c.b16 %v2740, %v2732
        %v3389 = vpack.c.b16 %v2741, %v2733
        %v3390 = vpack.c.b16 %v2742, %v2734
        %v3391 = vpack.c.b16 %v2743, %v2735
        %v3392 = vpack.c.b16 %v2744, %v2736
        %v3393 = vpack.c.b16 %v2753, %v2745
        %v3394 = vpack.c.b16 %v2754, %v2746
        %v3395 = vpack.c.b16 %v2755, %v2747
        %v3396 = vpack.c.b16 %v2756, %v2748
        %v3397 = vpack.c.b16 %v2757, %v2749
        %v3398 = vpack.c.b16 %v2758, %v2750
        %v3399 = vpack.c.b16 %v2759, %v2751
        %v3400 = vpack.c.b16 %v2760, %v2752
        %v3401 = vpack.c.b16 %v2769, %v2761
        %v3402 = vpack.c.b16 %v2770, %v2762
        %v3403 = vpack.c.b16 %v2771, %v2763
        %v3404 = vpack.c.b16 %v2772, %v2764
        %v3405 = vpack.c.b16 %v2773, %v2765
        %v3406 = vpack.c.b16 %v2774, %v2766
        %v3407 = vpack.c.b16 %v2775, %v2767
        %v3408 = vpack.c.b16 %v2776, %v2768
        %v3409 = vpack.c.b16 %v2785, %v2777
        %v3410 = vpack.c.b16 %v2786, %v2778
        %v3411 = vpack.c.b16 %v2787, %v2779
        %v3412 = vpack.c.b16 %v2788, %v2780
        %v3413 = vpack.c.b16 %v2789, %v2781
        %v3414 = vpack.c.b16 %v2790, %v2782
        %v3415 = vpack.c.b16 %v2791, %v2783
        %v3416 = vpack.c.b16 %v2792, %v2784
        %v3417 = vpack.c.b16 %v2801, %v2793
        %v3418 = vpack.c.b16 %v2802, %v2794
        %v3419 = vpack.c.b16 %v2803, %v2795
        %v3420 = vpack.c.b16 %v2804, %v2796
        %v3421 = vpack.c.b16 %v2805, %v2797
        %v3422 = vpack.c.b16 %v2806, %v2798
        %v3423 = vpack.c.b16 %v2807, %v2799
        %v3424 = vpack.c.b16 %v2808, %v2800
        %v3425 = vpack.c.b16 %v2817, %v2809
        %v3426 = vpack.c.b16 %v2818, %v2810
        %v3427 = vpack.c.b16 %v2819, %v2811
        %v3428 = vpack.c.b16 %v2820, %v2812
        %v3429 = vpack.c.b16 %v2821, %v2813
        %v3430 = vpack.c.b16 %v2822, %v2814
        %v3431 = vpack.c.b16 %v2823, %v2815
        %v3432 = vpack.c.b16 %v2824, %v2816
        %v3433 = vpack.c.b16 %v2833, %v2825
        %v3434 = vpack.c.b16 %v2834, %v2826
        %v3435 = vpack.c.b16 %v2835, %v2827
        %v3436 = vpack.c.b16 %v2836, %v2828
        %v3437 = vpack.c.b16 %v2837, %v2829
        %v3438 = vpack.c.b16 %v2838, %v2830
        %v3439 = vpack.c.b16 %v2839, %v2831
        %v3440 = vpack.c.b16 %v2840, %v2832
        %v3441 = vpack.c.b16 %v2849, %v2841
        %v3442 = vpack.c.b16 %v2850, %v2842
        %v3443 = vpack.c.b16 %v2851, %v2843
        %v3444 = vpack.c.b16 %v2852, %v2844
        %v3445 = vpack.c.b16 %v2853, %v2845
        %v3446 = vpack.c.b16 %v2854, %v2846
        %v3447 = vpack.c.b16 %v2855, %v2847
        %v3448 = vpack.c.b16 %v2856, %v2848
        %v3449 = vpack.c.b16 %v2865, %v2857
        %v3450 = vpack.c.b16 %v2866, %v2858
        %v3451 = vpack.c.b16 %v2867, %v2859
        %v3452 = vpack.c.b16 %v2868, %v2860
        %v3453 = vpack.c.b16 %v2869, %v2861
        %v3454 = vpack.c.b16 %v2870, %v2862
        %v3455 = vpack.c.b16 %v2871, %v2863
        %v3456 = vpack.c.b16 %v2872, %v2864
        %v3457 = vpack.c.b16 %v2881, %v2873
        %v3458 = vpack.c.b16 %v2882, %v2874
        %v3459 = vpack.c.b16 %v2883, %v2875
        %v3460 = vpack.c.b16 %v2884, %v2876
        %v3461 = vpack.c.b16 %v2885, %v2877
        %v3462 = vpack.c.b16 %v2886, %v2878
        %v3463 = vpack.c.b16 %v2887, %v2879
        %v3464 = vpack.c.b16 %v2888, %v2880
        %v3465 = vpack.c.b16 %v2897, %v2889
        %v3466 = vpack.c.b16 %v2898, %v2890
        %v3467 = vpack.c.b16 %v2899, %v2891
        %v3468 = vpack.c.b16 %v2900, %v2892
        %v3469 = vpack.c.b16 %v2901, %v2893
        %v3470 = vpack.c.b16 %v2902, %v2894
        %v3471 = vpack.c.b16 %v2903, %v2895
        %v3472 = vpack.c.b16 %v2904, %v2896
        %v3473 = vpack.c.b16 %v2913, %v2905
        %v3474 = vpack.c.b16 %v2914, %v2906
        %v3475 = vpack.c.b16 %v2915, %v2907
        %v3476 = vpack.c.b16 %v2916, %v2908
        %v3477 = vpack.c.b16 %v2917, %v2909
        %v3478 = vpack.c.b16 %v2918, %v2910
        %v3479 = vpack.c.b16 %v2919, %v2911
        %v3480 = vpack.c.b16 %v2920, %v2912
        %v3481 = vpack.c.b16 %v2929, %v2921
        %v3482 = vpack.c.b16 %v2930, %v2922
        %v3483 = vpack.c.b16 %v2931, %v2923
        %v3484 = vpack.c.b16 %v2932, %v2924
        %v3485 = vpack.c.b16 %v2933, %v2925
        %v3486 = vpack.c.b16 %v2934, %v2926
        %v3487 = vpack.c.b16 %v2935, %v2927
        %v3488 = vpack.c.b16 %v2936, %v2928
        %v3489 = vpack.c.b16 %v2945, %v2937
        %v3490 = vpack.c.b16 %v2946, %v2938
        %v3491 = vpack.c.b16 %v2947, %v2939
        %v3492 = vpack.c.b16 %v2948, %v2940
        %v3493 = vpack.c.b16 %v2949, %v2941
        %v3494 = vpack.c.b16 %v2950, %v2942
        %v3495 = vpack.c.b16 %v2951, %v2943
        %v3496 = vpack.c.b16 %v2952, %v2944
        %v3497 = vpack.c.b16 %v2961, %v2953
        %v3498 = vpack.c.b16 %v2962, %v2954
        %v3499 = vpack.c.b16 %v2963, %v2955
        %v3500 = vpack.c.b16 %v2964, %v2956
        %v3501 = vpack.c.b16 %v2965, %v2957
        %v3502 = vpack.c.b16 %v2966, %v2958
        %v3503 = vpack.c.b16 %v2967, %v2959
        %v3504 = vpack.c.b16 %v2968, %v2960
        %v3505 = vpack.c.b16 %v2977, %v2969
        %v3506 = vpack.c.b16 %v2978, %v2970
        %v3507 = vpack.c.b16 %v2979, %v2971
        %v3508 = vpack.c.b16 %v2980, %v2972
        %v3509 = vpack.c.b16 %v2981, %v2973
        %v3510 = vpack.c.b16 %v2982, %v2974
        %v3511 = vpack.c.b16 %v2983, %v2975
        %v3512 = vpack.c.b16 %v2984, %v2976
        %v3513 = vpack.c.b16 %v2993, %v2985
        %v3514 = vpack.c.b16 %v2994, %v2986
        %v3515 = vpack.c.b16 %v2995, %v2987
        %v3516 = vpack.c.b16 %v2996, %v2988
        %v3517 = vpack.c.b16 %v2997, %v2989
        %v3518 = vpack.c.b16 %v2998, %v2990
        %v3519 = vpack.c.b16 %v2999, %v2991
        %v3520 = vpack.c.b16 %v3000, %v2992
        %v3521 = vpack.c.b16 %v3009, %v3001
        %v3522 = vpack.c.b16 %v3010, %v3002
        %v3523 = vpack.c.b16 %v3011, %v3003
        %v3524 = vpack.c.b16 %v3012, %v3004
        %v3525 = vpack.c.b16 %v3013, %v3005
        %v3526 = vpack.c.b16 %v3014, %v3006
        %v3527 = vpack.c.b16 %v3015, %v3007
        %v3528 = vpack.c.b16 %v3016, %v3008
        %4041 = vmatprep.subr.bf16.mxu0 %v3018
        %4042 = vmatpush1.bf16.msra.mxu0 %v3017
        %4043 = vmatprep.subr.bf16.mxu0 %v3026
        %4044 = vmatpush1.bf16.msra.mxu0 %v3025
        %4045 = vmatprep.subr.bf16.mxu0 %v3034
        %4046 = vmatpush1.bf16.msra.mxu0 %v3033
        %4047 = vmatprep.subr.bf16.mxu0 %v3042
        %4048 = vmatpush1.bf16.msra.mxu0 %v3041
        %4049 = vmatprep.subr.bf16.mxu0 %v3050
        %4050 = vmatpush1.bf16.msra.mxu0 %v3049
        %4051 = vmatprep.subr.bf16.mxu0 %v3058
        %4052 = vmatpush1.bf16.msra.mxu0 %v3057
        %4053 = vmatprep.subr.bf16.mxu0 %v3066
        %4054 = vmatpush1.bf16.msra.mxu0 %v3065
        %4055 = vmatprep.subr.bf16.mxu0 %v3074
        %4056 = vmatpush1.bf16.msra.mxu0 %v3073
        %4057 = vmatprep.subr.bf16.mxu0 %v3082
        %4058 = vmatpush1.bf16.msra.mxu0 %v3081
        %4059 = vmatprep.subr.bf16.mxu0 %v3090
        %4060 = vmatpush1.bf16.msra.mxu0 %v3089
        %4061 = vmatprep.subr.bf16.mxu0 %v3098
        %4062 = vmatpush1.bf16.msra.mxu0 %v3097
        %4063 = vmatprep.subr.bf16.mxu0 %v3106
        %4064 = vmatpush1.bf16.msra.mxu0 %v3105
        %4065 = vmatprep.subr.bf16.mxu0 %v3114
        %4066 = vmatpush1.bf16.msra.mxu0 %v3113
        %4067 = vmatprep.subr.bf16.mxu0 %v3122
        %4068 = vmatpush1.bf16.msra.mxu0 %v3121
        %4069 = vmatprep.subr.bf16.mxu0 %v3130
        %4070 = vmatpush1.bf16.msra.mxu0 %v3129
        %4071 = vmatprep.subr.bf16.mxu0 %v3138
        %4072 = vmatpush1.bf16.msra.mxu0 %v3137
        %4073 = vmatprep.mubr.bf16.mxu0 %v962
        %4074 = vmatmul.mubr.bf16.gmra.mrb[0].mxu0 %v961
        %v4075 = vpop.f32.mrb[0].mxu0
        %v4076 = vadd.f32 0.0, %v4075
        %v4077 = vpop.f32.mrb[0].mxu0
        %v4078 = vadd.f32 0.0, %v4077
        %v4079 = vpop.f32.mrb[0].mxu0
        %v4080 = vpop.f32.mrb[0].mxu0
        %4081 = vdwg.mxu0
        %4082 = vmatprep.subr.bf16.mxu0 %v3146
        %4083 = vmatpush1.bf16.msra.mxu0 %v3145
        %4084 = vmatprep.subr.bf16.mxu0 %v3154
        %4085 = vmatpush1.bf16.msra.mxu0 %v3153
        %4086 = vmatprep.subr.bf16.mxu0 %v3162
        %4087 = vmatpush1.bf16.msra.mxu0 %v3161
        %4088 = vmatprep.subr.bf16.mxu0 %v3170
        %4089 = vmatpush1.bf16.msra.mxu0 %v3169
        %4090 = vmatprep.subr.bf16.mxu0 %v3178
        %4091 = vmatpush1.bf16.msra.mxu0 %v3177
        %4092 = vmatprep.subr.bf16.mxu0 %v3186
        %4093 = vmatpush1.bf16.msra.mxu0 %v3185
        %4094 = vmatprep.subr.bf16.mxu0 %v3194
        %4095 = vmatpush1.bf16.msra.mxu0 %v3193
        %4096 = vmatprep.subr.bf16.mxu0 %v3202
        %4097 = vmatpush1.bf16.msra.mxu0 %v3201
        %4098 = vmatprep.subr.bf16.mxu0 %v3210
        %4099 = vmatpush1.bf16.msra.mxu0 %v3209
        %4100 = vmatprep.subr.bf16.mxu0 %v3218
        %4101 = vmatpush1.bf16.msra.mxu0 %v3217
        %4102 = vmatprep.subr.bf16.mxu0 %v3226
        %4103 = vmatpush1.bf16.msra.mxu0 %v3225
        %4104 = vmatprep.subr.bf16.mxu0 %v3234
        %4105 = vmatpush1.bf16.msra.mxu0 %v3233
        %4106 = vmatprep.subr.bf16.mxu0 %v3242
        %4107 = vmatpush1.bf16.msra.mxu0 %v3241
        %4108 = vmatprep.subr.bf16.mxu0 %v3250
        %4109 = vmatpush1.bf16.msra.mxu0 %v3249
        %4110 = vmatprep.subr.bf16.mxu0 %v3258
        %4111 = vmatpush1.bf16.msra.mxu0 %v3257
        %4112 = vmatprep.subr.bf16.mxu0 %v3266
        %4113 = vmatpush1.bf16.msra.mxu0 %v3265
        %4114 = vmatprep.mubr.bf16.mxu0 %v964
        %4115 = vmatmul.mubr.bf16.gmra.mrb[0].mxu0 %v963
        %v4116 = vpop.f32.mrb[0].mxu0
        %v4117 = vadd.f32 %v4076, %v4116
        %v4118 = vpop.f32.mrb[0].mxu0
        %v4119 = vadd.f32 %v4078, %v4118
        %v4120 = vpop.f32.mrb[0].mxu0
        %v4121 = vpop.f32.mrb[0].mxu0
        %4122 = vdwg.mxu0
        %4123 = vmatprep.subr.bf16.mxu0 %v3274
        %4124 = vmatpush1.bf16.msra.mxu0 %v3273
        %4125 = vmatprep.subr.bf16.mxu0 %v3282
        %4126 = vmatpush1.bf16.msra.mxu0 %v3281
        %4127 = vmatprep.subr.bf16.mxu0 %v3290
        %4128 = vmatpush1.bf16.msra.mxu0 %v3289
        %4129 = vmatprep.subr.bf16.mxu0 %v3298
        %4130 = vmatpush1.bf16.msra.mxu0 %v3297
        %4131 = vmatprep.subr.bf16.mxu0 %v3306
        %4132 = vmatpush1.bf16.msra.mxu0 %v3305
        %4133 = vmatprep.subr.bf16.mxu0 %v3314
        %4134 = vmatpush1.bf16.msra.mxu0 %v3313
        %4135 = vmatprep.subr.bf16.mxu0 %v3322
        %4136 = vmatpush1.bf16.msra.mxu0 %v3321
        %4137 = vmatprep.subr.bf16.mxu0 %v3330
        %4138 = vmatpush1.bf16.msra.mxu0 %v3329
        %4139 = vmatprep.subr.bf16.mxu0 %v3338
        %4140 = vmatpush1.bf16.msra.mxu0 %v3337
        %4141 = vmatprep.subr.bf16.mxu0 %v3346
        %4142 = vmatpush1.bf16.msra.mxu0 %v3345
        %4143 = vmatprep.subr.bf16.mxu0 %v3354
        %4144 = vmatpush1.bf16.msra.mxu0 %v3353
        %4145 = vmatprep.subr.bf16.mxu0 %v3362
        %4146 = vmatpush1.bf16.msra.mxu0 %v3361
        %4147 = vmatprep.subr.bf16.mxu0 %v3370
        %4148 = vmatpush1.bf16.msra.mxu0 %v3369
        %4149 = vmatprep.subr.bf16.mxu0 %v3378
        %4150 = vmatpush1.bf16.msra.mxu0 %v3377
        %4151 = vmatprep.subr.bf16.mxu0 %v3386
        %4152 = vmatpush1.bf16.msra.mxu0 %v3385
        %4153 = vmatprep.subr.bf16.mxu0 %v3394
        %4154 = vmatpush1.bf16.msra.mxu0 %v3393
        %4155 = vmatprep.mubr.bf16.mxu0 %v966
        %4156 = vmatmul.mubr.bf16.gmra.mrb[0].mxu0 %v965
        %v4157 = vpop.f32.mrb[0].mxu0
        %v4158 = vadd.f32 %v4117, %v4157
        %v4159 = vpop.f32.mrb[0].mxu0
        %v4160 = vadd.f32 %v4119, %v4159
        %v4161 = vpop.f32.mrb[0].mxu0
        %v4162 = vpop.f32.mrb[0].mxu0
        %4163 = vdwg.mxu0
        %4164 = vmatprep.subr.bf16.mxu0 %v3402
        %4165 = vmatpush1.bf16.msra.mxu0 %v3401
        %4166 = vmatprep.subr.bf16.mxu0 %v3410
        %4167 = vmatpush1.bf16.msra.mxu0 %v3409
        %4168 = vmatprep.subr.bf16.mxu0 %v3418
        %4169 = vmatpush1.bf16.msra.mxu0 %v3417
        %4170 = vmatprep.subr.bf16.mxu0 %v3426
        %4171 = vmatpush1.bf16.msra.mxu0 %v3425
        %4172 = vmatprep.subr.bf16.mxu0 %v3434
        %4173 = vmatpush1.bf16.msra.mxu0 %v3433
        %4174 = vmatprep.subr.bf16.mxu0 %v3442
        %4175 = vmatpush1.bf16.msra.mxu0 %v3441
        %4176 = vmatprep.subr.bf16.mxu0 %v3450
        %4177 = vmatpush1.bf16.msra.mxu0 %v3449
        %4178 = vmatprep.subr.bf16.mxu0 %v3458
        %4179 = vmatpush1.bf16.msra.mxu0 %v3457
        %4180 = vmatprep.subr.bf16.mxu0 %v3466
        %4181 = vmatpush1.bf16.msra.mxu0 %v3465
        %4182 = vmatprep.subr.bf16.mxu0 %v3474
        %4183 = vmatpush1.bf16.msra.mxu0 %v3473
        %4184 = vmatprep.subr.bf16.mxu0 %v3482
        %4185 = vmatpush1.bf16.msra.mxu0 %v3481
        %4186 = vmatprep.subr.bf16.mxu0 %v3490
        %4187 = vmatpush1.bf16.msra.mxu0 %v3489
        %4188 = vmatprep.subr.bf16.mxu0 %v3498
        %4189 = vmatpush1.bf16.msra.mxu0 %v3497
        %4190 = vmatprep.subr.bf16.mxu0 %v3506
        %4191 = vmatpush1.bf16.msra.mxu0 %v3505
        %4192 = vmatprep.subr.bf16.mxu0 %v3514
        %4193 = vmatpush1.bf16.msra.mxu0 %v3513
        %4194 = vmatprep.subr.bf16.mxu0 %v3522
        %4195 = vmatpush1.bf16.msra.mxu0 %v3521
        %4196 = vmatprep.mubr.bf16.mxu0 %v968
        %4197 = vmatmul.mubr.bf16.gmra.mrb[0].mxu0 %v967
        %v4198 = vpop.f32.mrb[0].mxu0
        %v4199 = vadd.f32 %v4158, %v4198
        %v4200 = vpop.f32.mrb[0].mxu0
        %v4201 = vadd.f32 %v4160, %v4200
        %v4202 = vpop.f32.mrb[0].mxu0
        %v4203 = vpop.f32.mrb[0].mxu0
        %4204 = vdwg.mxu0
        %4205 = vmatprep.subr.bf16.mxu0 %v3020
        %4206 = vmatpush1.bf16.msra.mxu0 %v3019
        %4207 = vmatprep.subr.bf16.mxu0 %v3028
        %4208 = vmatpush1.bf16.msra.mxu0 %v3027
        %4209 = vmatprep.subr.bf16.mxu0 %v3036
        %4210 = vmatpush1.bf16.msra.mxu0 %v3035
        %4211 = vmatprep.subr.bf16.mxu0 %v3044
        %4212 = vmatpush1.bf16.msra.mxu0 %v3043
        %4213 = vmatprep.subr.bf16.mxu0 %v3052
        %4214 = vmatpush1.bf16.msra.mxu0 %v3051
        %4215 = vmatprep.subr.bf16.mxu0 %v3060
        %4216 = vmatpush1.bf16.msra.mxu0 %v3059
        %4217 = vmatprep.subr.bf16.mxu0 %v3068
        %4218 = vmatpush1.bf16.msra.mxu0 %v3067
        %4219 = vmatprep.subr.bf16.mxu0 %v3076
        %4220 = vmatpush1.bf16.msra.mxu0 %v3075
        %4221 = vmatprep.subr.bf16.mxu0 %v3084
        %4222 = vmatpush1.bf16.msra.mxu0 %v3083
        %4223 = vmatprep.subr.bf16.mxu0 %v3092
        %4224 = vmatpush1.bf16.msra.mxu0 %v3091
        %4225 = vmatprep.subr.bf16.mxu0 %v3100
        %4226 = vmatpush1.bf16.msra.mxu0 %v3099
        %4227 = vmatprep.subr.bf16.mxu0 %v3108
        %4228 = vmatpush1.bf16.msra.mxu0 %v3107
        %4229 = vmatprep.subr.bf16.mxu0 %v3116
        %4230 = vmatpush1.bf16.msra.mxu0 %v3115
        %4231 = vmatprep.subr.bf16.mxu0 %v3124
        %4232 = vmatpush1.bf16.msra.mxu0 %v3123
        %4233 = vmatprep.subr.bf16.mxu0 %v3132
        %4234 = vmatpush1.bf16.msra.mxu0 %v3131
        %4235 = vmatprep.subr.bf16.mxu0 %v3140
        %4236 = vmatpush1.bf16.msra.mxu0 %v3139
        %4237 = vmatprep.mubr.bf16.mxu0 %v962
        %4238 = vmatmul.mubr.bf16.gmra.mrb[0].mxu0 %v961
        %v4239 = vpop.f32.mrb[0].mxu0
        %v4240 = vadd.f32 0.0, %v4239
        %v4241 = vpop.f32.mrb[0].mxu0
        %v4242 = vadd.f32 0.0, %v4241
        %v4243 = vpop.f32.mrb[0].mxu0
        %v4244 = vpop.f32.mrb[0].mxu0
        %4245 = vdwg.mxu0
        %4246 = vmatprep.subr.bf16.mxu0 %v3148
        %4247 = vmatpush1.bf16.msra.mxu0 %v3147
        %4248 = vmatprep.subr.bf16.mxu0 %v3156
        %4249 = vmatpush1.bf16.msra.mxu0 %v3155
        %4250 = vmatprep.subr.bf16.mxu0 %v3164
        %4251 = vmatpush1.bf16.msra.mxu0 %v3163
        %4252 = vmatprep.subr.bf16.mxu0 %v3172
        %4253 = vmatpush1.bf16.msra.mxu0 %v3171
        %4254 = vmatprep.subr.bf16.mxu0 %v3180
        %4255 = vmatpush1.bf16.msra.mxu0 %v3179
        %4256 = vmatprep.subr.bf16.mxu0 %v3188
        %4257 = vmatpush1.bf16.msra.mxu0 %v3187
        %4258 = vmatprep.subr.bf16.mxu0 %v3196
        %4259 = vmatpush1.bf16.msra.mxu0 %v3195
        %4260 = vmatprep.subr.bf16.mxu0 %v3204
        %4261 = vmatpush1.bf16.msra.mxu0 %v3203
        %4262 = vmatprep.subr.bf16.mxu0 %v3212
        %4263 = vmatpush1.bf16.msra.mxu0 %v3211
        %4264 = vmatprep.subr.bf16.mxu0 %v3220
        %4265 = vmatpush1.bf16.msra.mxu0 %v3219
        %4266 = vmatprep.subr.bf16.mxu0 %v3228
        %4267 = vmatpush1.bf16.msra.mxu0 %v3227
        %4268 = vmatprep.subr.bf16.mxu0 %v3236
        %4269 = vmatpush1.bf16.msra.mxu0 %v3235
        %4270 = vmatprep.subr.bf16.mxu0 %v3244
        %4271 = vmatpush1.bf16.msra.mxu0 %v3243
        %4272 = vmatprep.subr.bf16.mxu0 %v3252
        %4273 = vmatpush1.bf16.msra.mxu0 %v3251
        %4274 = vmatprep.subr.bf16.mxu0 %v3260
        %4275 = vmatpush1.bf16.msra.mxu0 %v3259
        %4276 = vmatprep.subr.bf16.mxu0 %v3268
        %4277 = vmatpush1.bf16.msra.mxu0 %v3267
        %4278 = vmatprep.mubr.bf16.mxu0 %v964
        %4279 = vmatmul.mubr.bf16.gmra.mrb[0].mxu0 %v963
        %v4280 = vpop.f32.mrb[0].mxu0
        %v4281 = vadd.f32 %v4240, %v4280
        %v4282 = vpop.f32.mrb[0].mxu0
        %v4283 = vadd.f32 %v4242, %v4282
        %v4284 = vpop.f32.mrb[0].mxu0
        %v4285 = vpop.f32.mrb[0].mxu0
        %4286 = vdwg.mxu0
        %4287 = vmatprep.subr.bf16.mxu0 %v3276
        %4288 = vmatpush1.bf16.msra.mxu0 %v3275
        %4289 = vmatprep.subr.bf16.mxu0 %v3284
        %4290 = vmatpush1.bf16.msra.mxu0 %v3283
        %4291 = vmatprep.subr.bf16.mxu0 %v3292
        %4292 = vmatpush1.bf16.msra.mxu0 %v3291
        %4293 = vmatprep.subr.bf16.mxu0 %v3300
        %4294 = vmatpush1.bf16.msra.mxu0 %v3299
        %4295 = vmatprep.subr.bf16.mxu0 %v3308
        %4296 = vmatpush1.bf16.msra.mxu0 %v3307
        %4297 = vmatprep.subr.bf16.mxu0 %v3316
        %4298 = vmatpush1.bf16.msra.mxu0 %v3315
        %4299 = vmatprep.subr.bf16.mxu0 %v3324
        %4300 = vmatpush1.bf16.msra.mxu0 %v3323
        %4301 = vmatprep.subr.bf16.mxu0 %v3332
        %4302 = vmatpush1.bf16.msra.mxu0 %v3331
        %4303 = vmatprep.subr.bf16.mxu0 %v3340
        %4304 = vmatpush1.bf16.msra.mxu0 %v3339
        %4305 = vmatprep.subr.bf16.mxu0 %v3348
        %4306 = vmatpush1.bf16.msra.mxu0 %v3347
        %4307 = vmatprep.subr.bf16.mxu0 %v3356
        %4308 = vmatpush1.bf16.msra.mxu0 %v3355
        %4309 = vmatprep.subr.bf16.mxu0 %v3364
        %4310 = vmatpush1.bf16.msra.mxu0 %v3363
        %4311 = vmatprep.subr.bf16.mxu0 %v3372
        %4312 = vmatpush1.bf16.msra.mxu0 %v3371
        %4313 = vmatprep.subr.bf16.mxu0 %v3380
        %4314 = vmatpush1.bf16.msra.mxu0 %v3379
        %4315 = vmatprep.subr.bf16.mxu0 %v3388
        %4316 = vmatpush1.bf16.msra.mxu0 %v3387
        %4317 = vmatprep.subr.bf16.mxu0 %v3396
        %4318 = vmatpush1.bf16.msra.mxu0 %v3395
        %4319 = vmatprep.mubr.bf16.mxu0 %v966
        %4320 = vmatmul.mubr.bf16.gmra.mrb[0].mxu0 %v965
        %v4321 = vpop.f32.mrb[0].mxu0
        %v4322 = vadd.f32 %v4281, %v4321
        %v4323 = vpop.f32.mrb[0].mxu0
        %v4324 = vadd.f32 %v4283, %v4323
        %v4325 = vpop.f32.mrb[0].mxu0
        %v4326 = vpop.f32.mrb[0].mxu0
        %4327 = vdwg.mxu0
        %4328 = vmatprep.subr.bf16.mxu0 %v3404
        %4329 = vmatpush1.bf16.msra.mxu0 %v3403
        %4330 = vmatprep.subr.bf16.mxu0 %v3412
        %4331 = vmatpush1.bf16.msra.mxu0 %v3411
        %4332 = vmatprep.subr.bf16.mxu0 %v3420
        %4333 = vmatpush1.bf16.msra.mxu0 %v3419
        %4334 = vmatprep.subr.bf16.mxu0 %v3428
        %4335 = vmatpush1.bf16.msra.mxu0 %v3427
        %4336 = vmatprep.subr.bf16.mxu0 %v3436
        %4337 = vmatpush1.bf16.msra.mxu0 %v3435
        %4338 = vmatprep.subr.bf16.mxu0 %v3444
        %4339 = vmatpush1.bf16.msra.mxu0 %v3443
        %4340 = vmatprep.subr.bf16.mxu0 %v3452
        %4341 = vmatpush1.bf16.msra.mxu0 %v3451
        %4342 = vmatprep.subr.bf16.mxu0 %v3460
        %4343 = vmatpush1.bf16.msra.mxu0 %v3459
        %4344 = vmatprep.subr.bf16.mxu0 %v3468
        %4345 = vmatpush1.bf16.msra.mxu0 %v3467
        %4346 = vmatprep.subr.bf16.mxu0 %v3476
        %4347 = vmatpush1.bf16.msra.mxu0 %v3475
        %4348 = vmatprep.subr.bf16.mxu0 %v3484
        %4349 = vmatpush1.bf16.msra.mxu0 %v3483
        %4350 = vmatprep.subr.bf16.mxu0 %v3492
        %4351 = vmatpush1.bf16.msra.mxu0 %v3491
        %4352 = vmatprep.subr.bf16.mxu0 %v3500
        %4353 = vmatpush1.bf16.msra.mxu0 %v3499
        %4354 = vmatprep.subr.bf16.mxu0 %v3508
        %4355 = vmatpush1.bf16.msra.mxu0 %v3507
        %4356 = vmatprep.subr.bf16.mxu0 %v3516
        %4357 = vmatpush1.bf16.msra.mxu0 %v3515
        %4358 = vmatprep.subr.bf16.mxu0 %v3524
        %4359 = vmatpush1.bf16.msra.mxu0 %v3523
        %4360 = vmatprep.mubr.bf16.mxu0 %v968
        %4361 = vmatmul.mubr.bf16.gmra.mrb[0].mxu0 %v967
        %v4362 = vpop.f32.mrb[0].mxu0
        %v4363 = vadd.f32 %v4322, %v4362
        %v4364 = vpop.f32.mrb[0].mxu0
        %v4365 = vadd.f32 %v4324, %v4364
        %v4366 = vpop.f32.mrb[0].mxu0
        %v4367 = vpop.f32.mrb[0].mxu0
        %4368 = vdwg.mxu0
        %4369 = vmatprep.subr.bf16.mxu0 %v3022
        %4370 = vmatpush1.bf16.msra.mxu0 %v3021
        %4371 = vmatprep.subr.bf16.mxu0 %v3030
        %4372 = vmatpush1.bf16.msra.mxu0 %v3029
        %4373 = vmatprep.subr.bf16.mxu0 %v3038
        %4374 = vmatpush1.bf16.msra.mxu0 %v3037
        %4375 = vmatprep.subr.bf16.mxu0 %v3046
        %4376 = vmatpush1.bf16.msra.mxu0 %v3045
        %4377 = vmatprep.subr.bf16.mxu0 %v3054
        %4378 = vmatpush1.bf16.msra.mxu0 %v3053
        %4379 = vmatprep.subr.bf16.mxu0 %v3062
        %4380 = vmatpush1.bf16.msra.mxu0 %v3061
        %4381 = vmatprep.subr.bf16.mxu0 %v3070
        %4382 = vmatpush1.bf16.msra.mxu0 %v3069
        %4383 = vmatprep.subr.bf16.mxu0 %v3078
        %4384 = vmatpush1.bf16.msra.mxu0 %v3077
        %4385 = vmatprep.subr.bf16.mxu0 %v3086
        %4386 = vmatpush1.bf16.msra.mxu0 %v3085
        %4387 = vmatprep.subr.bf16.mxu0 %v3094
        %4388 = vmatpush1.bf16.msra.mxu0 %v3093
        %4389 = vmatprep.subr.bf16.mxu0 %v3102
        %4390 = vmatpush1.bf16.msra.mxu0 %v3101
        %4391 = vmatprep.subr.bf16.mxu0 %v3110
        %4392 = vmatpush1.bf16.msra.mxu0 %v3109
        %4393 = vmatprep.subr.bf16.mxu0 %v3118
        %4394 = vmatpush1.bf16.msra.mxu0 %v3117
        %4395 = vmatprep.subr.bf16.mxu0 %v3126
        %4396 = vmatpush1.bf16.msra.mxu0 %v3125
        %4397 = vmatprep.subr.bf16.mxu0 %v3134
        %4398 = vmatpush1.bf16.msra.mxu0 %v3133
        %4399 = vmatprep.subr.bf16.mxu0 %v3142
        %4400 = vmatpush1.bf16.msra.mxu0 %v3141
        %4401 = vmatprep.mubr.bf16.mxu0 %v962
        %4402 = vmatmul.mubr.bf16.gmra.mrb[0].mxu0 %v961
        %v4403 = vpop.f32.mrb[0].mxu0
        %v4404 = vadd.f32 0.0, %v4403
        %v4405 = vpop.f32.mrb[0].mxu0
        %v4406 = vadd.f32 0.0, %v4405
        %v4407 = vpop.f32.mrb[0].mxu0
        %v4408 = vpop.f32.mrb[0].mxu0
        %4409 = vdwg.mxu0
        %4410 = vmatprep.subr.bf16.mxu0 %v3150
        %4411 = vmatpush1.bf16.msra.mxu0 %v3149
        %4412 = vmatprep.subr.bf16.mxu0 %v3158
        %4413 = vmatpush1.bf16.msra.mxu0 %v3157
        %4414 = vmatprep.subr.bf16.mxu0 %v3166
        %4415 = vmatpush1.bf16.msra.mxu0 %v3165
        %4416 = vmatprep.subr.bf16.mxu0 %v3174
        %4417 = vmatpush1.bf16.msra.mxu0 %v3173
        %4418 = vmatprep.subr.bf16.mxu0 %v3182
        %4419 = vmatpush1.bf16.msra.mxu0 %v3181
        %4420 = vmatprep.subr.bf16.mxu0 %v3190
        %4421 = vmatpush1.bf16.msra.mxu0 %v3189
        %4422 = vmatprep.subr.bf16.mxu0 %v3198
        %4423 = vmatpush1.bf16.msra.mxu0 %v3197
        %4424 = vmatprep.subr.bf16.mxu0 %v3206
        %4425 = vmatpush1.bf16.msra.mxu0 %v3205
        %4426 = vmatprep.subr.bf16.mxu0 %v3214
        %4427 = vmatpush1.bf16.msra.mxu0 %v3213
        %4428 = vmatprep.subr.bf16.mxu0 %v3222
        %4429 = vmatpush1.bf16.msra.mxu0 %v3221
        %4430 = vmatprep.subr.bf16.mxu0 %v3230
        %4431 = vmatpush1.bf16.msra.mxu0 %v3229
        %4432 = vmatprep.subr.bf16.mxu0 %v3238
        %4433 = vmatpush1.bf16.msra.mxu0 %v3237
        %4434 = vmatprep.subr.bf16.mxu0 %v3246
        %4435 = vmatpush1.bf16.msra.mxu0 %v3245
        %4436 = vmatprep.subr.bf16.mxu0 %v3254
        %4437 = vmatpush1.bf16.msra.mxu0 %v3253
        %4438 = vmatprep.subr.bf16.mxu0 %v3262
        %4439 = vmatpush1.bf16.msra.mxu0 %v3261
        %4440 = vmatprep.subr.bf16.mxu0 %v3270
        %4441 = vmatpush1.bf16.msra.mxu0 %v3269
        %4442 = vmatprep.mubr.bf16.mxu0 %v964
        %4443 = vmatmul.mubr.bf16.gmra.mrb[0].mxu0 %v963
        %v4444 = vpop.f32.mrb[0].mxu0
        %v4445 = vadd.f32 %v4404, %v4444
        %v4446 = vpop.f32.mrb[0].mxu0
        %v4447 = vadd.f32 %v4406, %v4446
        %v4448 = vpop.f32.mrb[0].mxu0
        %v4449 = vpop.f32.mrb[0].mxu0
        %4450 = vdwg.mxu0
        %4451 = vmatprep.subr.bf16.mxu0 %v3278
        %4452 = vmatpush1.bf16.msra.mxu0 %v3277
        %4453 = vmatprep.subr.bf16.mxu0 %v3286
        %4454 = vmatpush1.bf16.msra.mxu0 %v3285
        %4455 = vmatprep.subr.bf16.mxu0 %v3294
        %4456 = vmatpush1.bf16.msra.mxu0 %v3293
        %4457 = vmatprep.subr.bf16.mxu0 %v3302
        %4458 = vmatpush1.bf16.msra.mxu0 %v3301
        %4459 = vmatprep.subr.bf16.mxu0 %v3310
        %4460 = vmatpush1.bf16.msra.mxu0 %v3309
        %4461 = vmatprep.subr.bf16.mxu0 %v3318
        %4462 = vmatpush1.bf16.msra.mxu0 %v3317
        %4463 = vmatprep.subr.bf16.mxu0 %v3326
        %4464 = vmatpush1.bf16.msra.mxu0 %v3325
        %4465 = vmatprep.subr.bf16.mxu0 %v3334
        %4466 = vmatpush1.bf16.msra.mxu0 %v3333
        %4467 = vmatprep.subr.bf16.mxu0 %v3342
        %4468 = vmatpush1.bf16.msra.mxu0 %v3341
        %4469 = vmatprep.subr.bf16.mxu0 %v3350
        %4470 = vmatpush1.bf16.msra.mxu0 %v3349
        %4471 = vmatprep.subr.bf16.mxu0 %v3358
        %4472 = vmatpush1.bf16.msra.mxu0 %v3357
        %4473 = vmatprep.subr.bf16.mxu0 %v3366
        %4474 = vmatpush1.bf16.msra.mxu0 %v3365
        %4475 = vmatprep.subr.bf16.mxu0 %v3374
        %4476 = vmatpush1.bf16.msra.mxu0 %v3373
        %4477 = vmatprep.subr.bf16.mxu0 %v3382
        %4478 = vmatpush1.bf16.msra.mxu0 %v3381
        %4479 = vmatprep.subr.bf16.mxu0 %v3390
        %4480 = vmatpush1.bf16.msra.mxu0 %v3389
        %4481 = vmatprep.subr.bf16.mxu0 %v3398
        %4482 = vmatpush1.bf16.msra.mxu0 %v3397
        %4483 = vmatprep.mubr.bf16.mxu0 %v966
        %4484 = vmatmul.mubr.bf16.gmra.mrb[0].mxu0 %v965
        %v4485 = vpop.f32.mrb[0].mxu0
        %v4486 = vadd.f32 %v4445, %v4485
        %v4487 = vpop.f32.mrb[0].mxu0
        %v4488 = vadd.f32 %v4447, %v4487
        %v4489 = vpop.f32.mrb[0].mxu0
        %v4490 = vpop.f32.mrb[0].mxu0
        %4491 = vdwg.mxu0
        %4492 = vmatprep.subr.bf16.mxu0 %v3406
        %4493 = vmatpush1.bf16.msra.mxu0 %v3405
        %4494 = vmatprep.subr.bf16.mxu0 %v3414
        %4495 = vmatpush1.bf16.msra.mxu0 %v3413
        %4496 = vmatprep.subr.bf16.mxu0 %v3422
        %4497 = vmatpush1.bf16.msra.mxu0 %v3421
        %4498 = vmatprep.subr.bf16.mxu0 %v3430
        %4499 = vmatpush1.bf16.msra.mxu0 %v3429
        %4500 = vmatprep.subr.bf16.mxu0 %v3438
        %4501 = vmatpush1.bf16.msra.mxu0 %v3437
        %4502 = vmatprep.subr.bf16.mxu0 %v3446
        %4503 = vmatpush1.bf16.msra.mxu0 %v3445
        %4504 = vmatprep.subr.bf16.mxu0 %v3454
        %4505 = vmatpush1.bf16.msra.mxu0 %v3453
        %4506 = vmatprep.subr.bf16.mxu0 %v3462
        %4507 = vmatpush1.bf16.msra.mxu0 %v3461
        %4508 = vmatprep.subr.bf16.mxu0 %v3470
        %4509 = vmatpush1.bf16.msra.mxu0 %v3469
        %4510 = vmatprep.subr.bf16.mxu0 %v3478
        %4511 = vmatpush1.bf16.msra.mxu0 %v3477
        %4512 = vmatprep.subr.bf16.mxu0 %v3486
        %4513 = vmatpush1.bf16.msra.mxu0 %v3485
        %4514 = vmatprep.subr.bf16.mxu0 %v3494
        %4515 = vmatpush1.bf16.msra.mxu0 %v3493
        %4516 = vmatprep.subr.bf16.mxu0 %v3502
        %4517 = vmatpush1.bf16.msra.mxu0 %v3501
        %4518 = vmatprep.subr.bf16.mxu0 %v3510
        %4519 = vmatpush1.bf16.msra.mxu0 %v3509
        %4520 = vmatprep.subr.bf16.mxu0 %v3518
        %4521 = vmatpush1.bf16.msra.mxu0 %v3517
        %4522 = vmatprep.subr.bf16.mxu0 %v3526
        %4523 = vmatpush1.bf16.msra.mxu0 %v3525
        %4524 = vmatprep.mubr.bf16.mxu0 %v968
        %4525 = vmatmul.mubr.bf16.gmra.mrb[0].mxu0 %v967
        %v4526 = vpop.f32.mrb[0].mxu0
        %v4527 = vadd.f32 %v4486, %v4526
        %v4528 = vpop.f32.mrb[0].mxu0
        %v4529 = vadd.f32 %v4488, %v4528
        %v4530 = vpop.f32.mrb[0].mxu0
        %v4531 = vpop.f32.mrb[0].mxu0
        %4532 = vdwg.mxu0
        %4533 = vmatprep.subr.bf16.mxu0 %v3024
        %4534 = vmatpush1.bf16.msra.mxu0 %v3023
        %4535 = vmatprep.subr.bf16.mxu0 %v3032
        %4536 = vmatpush1.bf16.msra.mxu0 %v3031
        %4537 = vmatprep.subr.bf16.mxu0 %v3040
        %4538 = vmatpush1.bf16.msra.mxu0 %v3039
        %4539 = vmatprep.subr.bf16.mxu0 %v3048
        %4540 = vmatpush1.bf16.msra.mxu0 %v3047
        %4541 = vmatprep.subr.bf16.mxu0 %v3056
        %4542 = vmatpush1.bf16.msra.mxu0 %v3055
        %4543 = vmatprep.subr.bf16.mxu0 %v3064
        %4544 = vmatpush1.bf16.msra.mxu0 %v3063
        %4545 = vmatprep.subr.bf16.mxu0 %v3072
        %4546 = vmatpush1.bf16.msra.mxu0 %v3071
        %4547 = vmatprep.subr.bf16.mxu0 %v3080
        %4548 = vmatpush1.bf16.msra.mxu0 %v3079
        %4549 = vmatprep.subr.bf16.mxu0 %v3088
        %4550 = vmatpush1.bf16.msra.mxu0 %v3087
        %4551 = vmatprep.subr.bf16.mxu0 %v3096
        %4552 = vmatpush1.bf16.msra.mxu0 %v3095
        %4553 = vmatprep.subr.bf16.mxu0 %v3104
        %4554 = vmatpush1.bf16.msra.mxu0 %v3103
        %4555 = vmatprep.subr.bf16.mxu0 %v3112
        %4556 = vmatpush1.bf16.msra.mxu0 %v3111
        %4557 = vmatprep.subr.bf16.mxu0 %v3120
        %4558 = vmatpush1.bf16.msra.mxu0 %v3119
        %4559 = vmatprep.subr.bf16.mxu0 %v3128
        %4560 = vmatpush1.bf16.msra.mxu0 %v3127
        %4561 = vmatprep.subr.bf16.mxu0 %v3136
        %4562 = vmatpush1.bf16.msra.mxu0 %v3135
        %4563 = vmatprep.subr.bf16.mxu0 %v3144
        %4564 = vmatpush1.bf16.msra.mxu0 %v3143
        %4565 = vmatprep.mubr.bf16.mxu0 %v962
        %4566 = vmatmul.mubr.bf16.gmra.mrb[0].mxu0 %v961
        %v4567 = vpop.f32.mrb[0].mxu0
        %v4568 = vadd.f32 0.0, %v4567
        %v4569 = vpop.f32.mrb[0].mxu0
        %v4570 = vadd.f32 0.0, %v4569
        %v4571 = vpop.f32.mrb[0].mxu0
        %v4572 = vpop.f32.mrb[0].mxu0
        %4573 = vdwg.mxu0
        %4574 = vmatprep.subr.bf16.mxu0 %v3152
        %4575 = vmatpush1.bf16.msra.mxu0 %v3151
        %4576 = vmatprep.subr.bf16.mxu0 %v3160
        %4577 = vmatpush1.bf16.msra.mxu0 %v3159
        %4578 = vmatprep.subr.bf16.mxu0 %v3168
        %4579 = vmatpush1.bf16.msra.mxu0 %v3167
        %4580 = vmatprep.subr.bf16.mxu0 %v3176
        %4581 = vmatpush1.bf16.msra.mxu0 %v3175
        %4582 = vmatprep.subr.bf16.mxu0 %v3184
        %4583 = vmatpush1.bf16.msra.mxu0 %v3183
        %4584 = vmatprep.subr.bf16.mxu0 %v3192
        %4585 = vmatpush1.bf16.msra.mxu0 %v3191
        %4586 = vmatprep.subr.bf16.mxu0 %v3200
        %4587 = vmatpush1.bf16.msra.mxu0 %v3199
        %4588 = vmatprep.subr.bf16.mxu0 %v3208
        %4589 = vmatpush1.bf16.msra.mxu0 %v3207
        %4590 = vmatprep.subr.bf16.mxu0 %v3216
        %4591 = vmatpush1.bf16.msra.mxu0 %v3215
        %4592 = vmatprep.subr.bf16.mxu0 %v3224
        %4593 = vmatpush1.bf16.msra.mxu0 %v3223
        %4594 = vmatprep.subr.bf16.mxu0 %v3232
        %4595 = vmatpush1.bf16.msra.mxu0 %v3231
        %4596 = vmatprep.subr.bf16.mxu0 %v3240
        %4597 = vmatpush1.bf16.msra.mxu0 %v3239
        %4598 = vmatprep.subr.bf16.mxu0 %v3248
        %4599 = vmatpush1.bf16.msra.mxu0 %v3247
        %4600 = vmatprep.subr.bf16.mxu0 %v3256
        %4601 = vmatpush1.bf16.msra.mxu0 %v3255
        %4602 = vmatprep.subr.bf16.mxu0 %v3264
        %4603 = vmatpush1.bf16.msra.mxu0 %v3263
        %4604 = vmatprep.subr.bf16.mxu0 %v3272
        %4605 = vmatpush1.bf16.msra.mxu0 %v3271
        %4606 = vmatprep.mubr.bf16.mxu0 %v964
        %4607 = vmatmul.mubr.bf16.gmra.mrb[0].mxu0 %v963
        %v4608 = vpop.f32.mrb[0].mxu0
        %v4609 = vadd.f32 %v4568, %v4608
        %v4610 = vpop.f32.mrb[0].mxu0
        %v4611 = vadd.f32 %v4570, %v4610
        %v4612 = vpop.f32.mrb[0].mxu0
        %v4613 = vpop.f32.mrb[0].mxu0
        %4614 = vdwg.mxu0
        %4615 = vmatprep.subr.bf16.mxu0 %v3280
        %4616 = vmatpush1.bf16.msra.mxu0 %v3279
        %4617 = vmatprep.subr.bf16.mxu0 %v3288
        %4618 = vmatpush1.bf16.msra.mxu0 %v3287
        %4619 = vmatprep.subr.bf16.mxu0 %v3296
        %4620 = vmatpush1.bf16.msra.mxu0 %v3295
        %4621 = vmatprep.subr.bf16.mxu0 %v3304
        %4622 = vmatpush1.bf16.msra.mxu0 %v3303
        %4623 = vmatprep.subr.bf16.mxu0 %v3312
        %4624 = vmatpush1.bf16.msra.mxu0 %v3311
        %4625 = vmatprep.subr.bf16.mxu0 %v3320
        %4626 = vmatpush1.bf16.msra.mxu0 %v3319
        %4627 = vmatprep.subr.bf16.mxu0 %v3328
        %4628 = vmatpush1.bf16.msra.mxu0 %v3327
        %4629 = vmatprep.subr.bf16.mxu0 %v3336
        %4630 = vmatpush1.bf16.msra.mxu0 %v3335
        %4631 = vmatprep.subr.bf16.mxu0 %v3344
        %4632 = vmatpush1.bf16.msra.mxu0 %v3343
        %4633 = vmatprep.subr.bf16.mxu0 %v3352
        %4634 = vmatpush1.bf16.msra.mxu0 %v3351
        %4635 = vmatprep.subr.bf16.mxu0 %v3360
        %4636 = vmatpush1.bf16.msra.mxu0 %v3359
        %4637 = vmatprep.subr.bf16.mxu0 %v3368
        %4638 = vmatpush1.bf16.msra.mxu0 %v3367
        %4639 = vmatprep.subr.bf16.mxu0 %v3376
        %4640 = vmatpush1.bf16.msra.mxu0 %v3375
        %4641 = vmatprep.subr.bf16.mxu0 %v3384
        %4642 = vmatpush1.bf16.msra.mxu0 %v3383
        %4643 = vmatprep.subr.bf16.mxu0 %v3392
        %4644 = vmatpush1.bf16.msra.mxu0 %v3391
        %4645 = vmatprep.subr.bf16.mxu0 %v3400
        %4646 = vmatpush1.bf16.msra.mxu0 %v3399
        %4647 = vmatprep.mubr.bf16.mxu0 %v966
        %4648 = vmatmul.mubr.bf16.gmra.mrb[0].mxu0 %v965
        %v4649 = vpop.f32.mrb[0].mxu0
        %v4650 = vadd.f32 %v4609, %v4649
        %v4651 = vpop.f32.mrb[0].mxu0
        %v4652 = vadd.f32 %v4611, %v4651
        %v4653 = vpop.f32.mrb[0].mxu0
        %v4654 = vpop.f32.mrb[0].mxu0
        %4655 = vdwg.mxu0
        %4656 = vmatprep.subr.bf16.mxu0 %v3408
        %4657 = vmatpush1.bf16.msra.mxu0 %v3407
        %4658 = vmatprep.subr.bf16.mxu0 %v3416
        %4659 = vmatpush1.bf16.msra.mxu0 %v3415
        %4660 = vmatprep.subr.bf16.mxu0 %v3424
        %4661 = vmatpush1.bf16.msra.mxu0 %v3423
        %4662 = vmatprep.subr.bf16.mxu0 %v3432
        %4663 = vmatpush1.bf16.msra.mxu0 %v3431
        %4664 = vmatprep.subr.bf16.mxu0 %v3440
        %4665 = vmatpush1.bf16.msra.mxu0 %v3439
        %4666 = vmatprep.subr.bf16.mxu0 %v3448
        %4667 = vmatpush1.bf16.msra.mxu0 %v3447
        %4668 = vmatprep.subr.bf16.mxu0 %v3456
        %4669 = vmatpush1.bf16.msra.mxu0 %v3455
        %4670 = vmatprep.subr.bf16.mxu0 %v3464
        %4671 = vmatpush1.bf16.msra.mxu0 %v3463
        %4672 = vmatprep.subr.bf16.mxu0 %v3472
        %4673 = vmatpush1.bf16.msra.mxu0 %v3471
        %4674 = vmatprep.subr.bf16.mxu0 %v3480
        %4675 = vmatpush1.bf16.msra.mxu0 %v3479
        %4676 = vmatprep.subr.bf16.mxu0 %v3488
        %4677 = vmatpush1.bf16.msra.mxu0 %v3487
        %4678 = vmatprep.subr.bf16.mxu0 %v3496
        %4679 = vmatpush1.bf16.msra.mxu0 %v3495
        %4680 = vmatprep.subr.bf16.mxu0 %v3504
        %4681 = vmatpush1.bf16.msra.mxu0 %v3503
        %4682 = vmatprep.subr.bf16.mxu0 %v3512
        %4683 = vmatpush1.bf16.msra.mxu0 %v3511
        %4684 = vmatprep.subr.bf16.mxu0 %v3520
        %4685 = vmatpush1.bf16.msra.mxu0 %v3519
        %4686 = vmatprep.subr.bf16.mxu0 %v3528
        %4687 = vmatpush1.bf16.msra.mxu0 %v3527
        %4688 = vmatprep.mubr.bf16.mxu0 %v968
        %4689 = vmatmul.mubr.bf16.gmra.mrb[0].mxu0 %v967
        %v4690 = vpop.f32.mrb[0].mxu0
        %v4691 = vadd.f32 %v4650, %v4690
        %v4692 = vpop.f32.mrb[0].mxu0
        %v4693 = vadd.f32 %v4652, %v4692
        %v4694 = vpop.f32.mrb[0].mxu0
        %v4695 = vpop.f32.mrb[0].mxu0
        %4696 = vdwg.mxu0
        %v4697 = vadd.f32 %v953, %v4199
        %v4698 = vadd.f32 %v954, %v4201
        %v4699 = vadd.f32 %v955, %v4363
        %v4700 = vadd.f32 %v956, %v4365
        %v4701 = vadd.f32 %v957, %v4527
        %v4702 = vadd.f32 %v958, %v4529
        %v4703 = vadd.f32 %v959, %v4691
        %v4704 = vadd.f32 %v960, %v4693
        %4705 = vst [vmem:[#allocation2] sm:$0xff] %v4697
        %4706 = vst [vmem:[#allocation2 + $0x8] sm:$0xff] %v4698
        %4707 = vst [vmem:[#allocation2 + $0x10] sm:$0xff] %v4699
        %4708 = vst [vmem:[#allocation2 + $0x18] sm:$0xff] %v4700
        %4709 = vst [vmem:[#allocation2 + $0x20] sm:$0xff] %v4701
        %4710 = vst [vmem:[#allocation2 + $0x28] sm:$0xff] %v4702
        %4711 = vst [vmem:[#allocation2 + $0x30] sm:$0xff] %v4703
        %4712 = vst [vmem:[#allocation2 + $0x38] sm:$0xff] %v4704
        %p4713 = scmp.eq.s32.totalorder %s35, 3
        // Predicated region
        $region89: #{discriminator_forward.1} parent=55 // pred_check
          %p4714 = pneg %p4713
        $region90: #{discriminator_forward.1} parent=55 // pred_check_branch
          %4716 = sbr.rel (%p4714) target = $region92
        $region91: #{discriminator_forward.1} parent=55 // pred_region
          %v4717 = vld [vmem:[#allocation2] sm:$0xff]
          %v4718 = vld [vmem:[#allocation2 + $0x8] sm:$0xff]
          %v4719 = vld [vmem:[#allocation2 + $0x10] sm:$0xff]
          %v4720 = vld [vmem:[#allocation2 + $0x18] sm:$0xff]
          %v4721 = vld [vmem:[#allocation2 + $0x20] sm:$0xff]
          %v4722 = vld [vmem:[#allocation2 + $0x28] sm:$0xff]
          %v4723 = vld [vmem:[#allocation2 + $0x30] sm:$0xff]
          %v4724 = vld [vmem:[#allocation2 + $0x38] sm:$0xff]
          %v4725 = vld [vmem:[#allocation9] sm:$0xff]
          %v4727 = vlaneseq
          %v4728 = vshrl.u32 %v4727, 7
          %v4729 = vsub.s32 0, %v4728
          %v4730 = vrot.slane %v4725, %v4729
          %v4731 = vlaneseq
          %v4732 = vshrl.u32 %v4731, 7
          %v4733 = vsub.s32 1, %v4732
          %v4734 = vrot.slane %v4725, %v4733
          %v4735 = vlaneseq
          %v4736 = vshrl.u32 %v4735, 7
          %v4737 = vsub.s32 2, %v4736
          %v4738 = vrot.slane %v4725, %v4737
          %v4739 = vlaneseq
          %v4740 = vshrl.u32 %v4739, 7
          %v4741 = vsub.s32 3, %v4740
          %v4742 = vrot.slane %v4725, %v4741
          %v4743 = vlaneseq
          %v4744 = vshrl.u32 %v4743, 7
          %v4745 = vsub.s32 4, %v4744
          %v4746 = vrot.slane %v4725, %v4745
          %v4747 = vlaneseq
          %v4748 = vshrl.u32 %v4747, 7
          %v4749 = vsub.s32 5, %v4748
          %v4750 = vrot.slane %v4725, %v4749
          %v4751 = vlaneseq
          %v4752 = vshrl.u32 %v4751, 7
          %v4753 = vsub.s32 6, %v4752
          %v4754 = vrot.slane %v4725, %v4753
          %v4755 = vlaneseq
          %v4756 = vshrl.u32 %v4755, 7
          %v4757 = vsub.s32 7, %v4756
          %v4758 = vrot.slane %v4725, %v4757
          %v4767 = vadd.f32 %v4717, %v4730
          %v4768 = vadd.f32 %v4718, %v4734
          %v4769 = vadd.f32 %v4719, %v4738
          %v4770 = vadd.f32 %v4720, %v4742
          %v4771 = vadd.f32 %v4721, %v4746
          %v4772 = vadd.f32 %v4722, %v4750
          %v4773 = vadd.f32 %v4723, %v4754
          %v4774 = vadd.f32 %v4724, %v4758
          %vm4775 = vcmp.gt.f32.partialorder %v4767, 0.0
          %vm4776 = vcmp.gt.f32.partialorder %v4768, 0.0
          %vm4777 = vcmp.gt.f32.partialorder %v4769, 0.0
          %vm4778 = vcmp.gt.f32.partialorder %v4770, 0.0
          %vm4779 = vcmp.gt.f32.partialorder %v4771, 0.0
          %vm4780 = vcmp.gt.f32.partialorder %v4772, 0.0
          %vm4781 = vcmp.gt.f32.partialorder %v4773, 0.0
          %vm4782 = vcmp.gt.f32.partialorder %v4774, 0.0
          %v4783 = vmul.f32 %v4767, 0.2
          %v4784 = vmul.f32 %v4768, 0.2
          %v4785 = vmul.f32 %v4769, 0.2
          %v4786 = vmul.f32 %v4770, 0.2
          %v4787 = vmul.f32 %v4771, 0.2
          %v4788 = vmul.f32 %v4772, 0.2
          %v4789 = vmul.f32 %v4773, 0.2
          %v4790 = vmul.f32 %v4774, 0.2
          %v4791 = vsel %vm4775, %v4767, %v4783
          %v4792 = vsel %vm4776, %v4768, %v4784
          %v4793 = vsel %vm4777, %v4769, %v4785
          %v4794 = vsel %vm4778, %v4770, %v4786
          %v4795 = vsel %vm4779, %v4771, %v4787
          %v4796 = vsel %vm4780, %v4772, %v4788
          %v4797 = vsel %vm4781, %v4773, %v4789
          %v4798 = vsel %vm4782, %v4774, %v4790
          %v4799 = vpack.c.bf16 %v4791, %v4791
          %v4800 = vpack.c.bf16 %v4792, %v4792
          %v4801 = vpack.c.bf16 %v4793, %v4793
          %v4802 = vpack.c.bf16 %v4794, %v4794
          %v4803 = vpack.c.bf16 %v4795, %v4795
          %v4804 = vpack.c.bf16 %v4796, %v4796
          %v4805 = vpack.c.bf16 %v4797, %v4797
          %v4806 = vpack.c.bf16 %v4798, %v4798
          %v4807 = vld [vmem:[#allocation11] sm:$0xff]
          %v4808 = vld [vmem:[#allocation11 + $0x8] sm:$0xff]
          %v4809 = vld [vmem:[#allocation11 + $0x10] sm:$0xff]
          %v4810 = vld [vmem:[#allocation11 + $0x18] sm:$0xff]
          %v4811 = vld [vmem:[#allocation11 + $0x20] sm:$0xff]
          %v4812 = vld [vmem:[#allocation11 + $0x28] sm:$0xff]
          %v4813 = vld [vmem:[#allocation11 + $0x30] sm:$0xff]
          %v4814 = vld [vmem:[#allocation11 + $0x38] sm:$0xff]
          %v4815 = vld [vmem:[#allocation11 + $0x40] sm:$0xff]
          %v4816 = vld [vmem:[#allocation11 + $0x48] sm:$0xff]
          %v4817 = vld [vmem:[#allocation11 + $0x50] sm:$0xff]
          %v4818 = vld [vmem:[#allocation11 + $0x58] sm:$0xff]
          %v4819 = vld [vmem:[#allocation11 + $0x60] sm:$0xff]
          %v4820 = vld [vmem:[#allocation11 + $0x68] sm:$0xff]
          %v4821 = vld [vmem:[#allocation11 + $0x70] sm:$0xff]
          %v4822 = vld [vmem:[#allocation11 + $0x78] sm:$0xff]
          %v4823 = vld [vmem:[#allocation11 + $0x80] sm:$0xff]
          %v4824 = vld [vmem:[#allocation11 + $0x88] sm:$0xff]
          %v4825 = vld [vmem:[#allocation11 + $0x90] sm:$0xff]
          %v4826 = vld [vmem:[#allocation11 + $0x98] sm:$0xff]
          %v4827 = vld [vmem:[#allocation11 + $0xa0] sm:$0xff]
          %v4828 = vld [vmem:[#allocation11 + $0xa8] sm:$0xff]
          %v4829 = vld [vmem:[#allocation11 + $0xb0] sm:$0xff]
          %v4830 = vld [vmem:[#allocation11 + $0xb8] sm:$0xff]
          %v4831 = vld [vmem:[#allocation11 + $0xc0] sm:$0xff]
          %v4832 = vld [vmem:[#allocation11 + $0xc8] sm:$0xff]
          %v4833 = vld [vmem:[#allocation11 + $0xd0] sm:$0xff]
          %v4834 = vld [vmem:[#allocation11 + $0xd8] sm:$0xff]
          %v4835 = vld [vmem:[#allocation11 + $0xe0] sm:$0xff]
          %v4836 = vld [vmem:[#allocation11 + $0xe8] sm:$0xff]
          %v4837 = vld [vmem:[#allocation11 + $0xf0] sm:$0xff]
          %v4838 = vld [vmem:[#allocation11 + $0xf8] sm:$0xff]
          %v4839 = vld [vmem:[#allocation11 + $0x100] sm:$0xff]
          %v4840 = vld [vmem:[#allocation11 + $0x108] sm:$0xff]
          %v4841 = vld [vmem:[#allocation11 + $0x110] sm:$0xff]
          %v4842 = vld [vmem:[#allocation11 + $0x118] sm:$0xff]
          %v4843 = vld [vmem:[#allocation11 + $0x120] sm:$0xff]
          %v4844 = vld [vmem:[#allocation11 + $0x128] sm:$0xff]
          %v4845 = vld [vmem:[#allocation11 + $0x130] sm:$0xff]
          %v4846 = vld [vmem:[#allocation11 + $0x138] sm:$0xff]
          %v4847 = vld [vmem:[#allocation11 + $0x140] sm:$0xff]
          %v4848 = vld [vmem:[#allocation11 + $0x148] sm:$0xff]
          %v4849 = vld [vmem:[#allocation11 + $0x150] sm:$0xff]
          %v4850 = vld [vmem:[#allocation11 + $0x158] sm:$0xff]
          %v4851 = vld [vmem:[#allocation11 + $0x160] sm:$0xff]
          %v4852 = vld [vmem:[#allocation11 + $0x168] sm:$0xff]
          %v4853 = vld [vmem:[#allocation11 + $0x170] sm:$0xff]
          %v4854 = vld [vmem:[#allocation11 + $0x178] sm:$0xff]
          %v4855 = vld [vmem:[#allocation11 + $0x180] sm:$0xff]
          %v4856 = vld [vmem:[#allocation11 + $0x188] sm:$0xff]
          %v4857 = vld [vmem:[#allocation11 + $0x190] sm:$0xff]
          %v4858 = vld [vmem:[#allocation11 + $0x198] sm:$0xff]
          %v4859 = vld [vmem:[#allocation11 + $0x1a0] sm:$0xff]
          %v4860 = vld [vmem:[#allocation11 + $0x1a8] sm:$0xff]
          %v4861 = vld [vmem:[#allocation11 + $0x1b0] sm:$0xff]
          %v4862 = vld [vmem:[#allocation11 + $0x1b8] sm:$0xff]
          %v4863 = vld [vmem:[#allocation11 + $0x1c0] sm:$0xff]
          %v4864 = vld [vmem:[#allocation11 + $0x1c8] sm:$0xff]
          %v4865 = vld [vmem:[#allocation11 + $0x1d0] sm:$0xff]
          %v4866 = vld [vmem:[#allocation11 + $0x1d8] sm:$0xff]
          %v4867 = vld [vmem:[#allocation11 + $0x1e0] sm:$0xff]
          %v4868 = vld [vmem:[#allocation11 + $0x1e8] sm:$0xff]
          %v4869 = vld [vmem:[#allocation11 + $0x1f0] sm:$0xff]
          %v4870 = vld [vmem:[#allocation11 + $0x1f8] sm:$0xff]
          %v4871 = vld [vmem:[#allocation11 + $0x200] sm:$0xff]
          %v4872 = vld [vmem:[#allocation11 + $0x208] sm:$0xff]
          %v4873 = vld [vmem:[#allocation11 + $0x210] sm:$0xff]
          %v4874 = vld [vmem:[#allocation11 + $0x218] sm:$0xff]
          %v4875 = vld [vmem:[#allocation11 + $0x220] sm:$0xff]
          %v4876 = vld [vmem:[#allocation11 + $0x228] sm:$0xff]
          %v4877 = vld [vmem:[#allocation11 + $0x230] sm:$0xff]
          %v4878 = vld [vmem:[#allocation11 + $0x238] sm:$0xff]
          %v4879 = vld [vmem:[#allocation11 + $0x240] sm:$0xff]
          %v4880 = vld [vmem:[#allocation11 + $0x248] sm:$0xff]
          %v4881 = vld [vmem:[#allocation11 + $0x250] sm:$0xff]
          %v4882 = vld [vmem:[#allocation11 + $0x258] sm:$0xff]
          %v4883 = vld [vmem:[#allocation11 + $0x260] sm:$0xff]
          %v4884 = vld [vmem:[#allocation11 + $0x268] sm:$0xff]
          %v4885 = vld [vmem:[#allocation11 + $0x270] sm:$0xff]
          %v4886 = vld [vmem:[#allocation11 + $0x278] sm:$0xff]
          %v4887 = vld [vmem:[#allocation11 + $0x280] sm:$0xff]
          %v4888 = vld [vmem:[#allocation11 + $0x288] sm:$0xff]
          %v4889 = vld [vmem:[#allocation11 + $0x290] sm:$0xff]
          %v4890 = vld [vmem:[#allocation11 + $0x298] sm:$0xff]
          %v4891 = vld [vmem:[#allocation11 + $0x2a0] sm:$0xff]
          %v4892 = vld [vmem:[#allocation11 + $0x2a8] sm:$0xff]
          %v4893 = vld [vmem:[#allocation11 + $0x2b0] sm:$0xff]
          %v4894 = vld [vmem:[#allocation11 + $0x2b8] sm:$0xff]
          %v4895 = vld [vmem:[#allocation11 + $0x2c0] sm:$0xff]
          %v4896 = vld [vmem:[#allocation11 + $0x2c8] sm:$0xff]
          %v4897 = vld [vmem:[#allocation11 + $0x2d0] sm:$0xff]
          %v4898 = vld [vmem:[#allocation11 + $0x2d8] sm:$0xff]
          %v4899 = vld [vmem:[#allocation11 + $0x2e0] sm:$0xff]
          %v4900 = vld [vmem:[#allocation11 + $0x2e8] sm:$0xff]
          %v4901 = vld [vmem:[#allocation11 + $0x2f0] sm:$0xff]
          %v4902 = vld [vmem:[#allocation11 + $0x2f8] sm:$0xff]
          %v4903 = vld [vmem:[#allocation11 + $0x300] sm:$0xff]
          %v4904 = vld [vmem:[#allocation11 + $0x308] sm:$0xff]
          %v4905 = vld [vmem:[#allocation11 + $0x310] sm:$0xff]
          %v4906 = vld [vmem:[#allocation11 + $0x318] sm:$0xff]
          %v4907 = vld [vmem:[#allocation11 + $0x320] sm:$0xff]
          %v4908 = vld [vmem:[#allocation11 + $0x328] sm:$0xff]
          %v4909 = vld [vmem:[#allocation11 + $0x330] sm:$0xff]
          %v4910 = vld [vmem:[#allocation11 + $0x338] sm:$0xff]
          %v4911 = vld [vmem:[#allocation11 + $0x340] sm:$0xff]
          %v4912 = vld [vmem:[#allocation11 + $0x348] sm:$0xff]
          %v4913 = vld [vmem:[#allocation11 + $0x350] sm:$0xff]
          %v4914 = vld [vmem:[#allocation11 + $0x358] sm:$0xff]
          %v4915 = vld [vmem:[#allocation11 + $0x360] sm:$0xff]
          %v4916 = vld [vmem:[#allocation11 + $0x368] sm:$0xff]
          %v4917 = vld [vmem:[#allocation11 + $0x370] sm:$0xff]
          %v4918 = vld [vmem:[#allocation11 + $0x378] sm:$0xff]
          %v4919 = vld [vmem:[#allocation11 + $0x380] sm:$0xff]
          %v4920 = vld [vmem:[#allocation11 + $0x388] sm:$0xff]
          %v4921 = vld [vmem:[#allocation11 + $0x390] sm:$0xff]
          %v4922 = vld [vmem:[#allocation11 + $0x398] sm:$0xff]
          %v4923 = vld [vmem:[#allocation11 + $0x3a0] sm:$0xff]
          %v4924 = vld [vmem:[#allocation11 + $0x3a8] sm:$0xff]
          %v4925 = vld [vmem:[#allocation11 + $0x3b0] sm:$0xff]
          %v4926 = vld [vmem:[#allocation11 + $0x3b8] sm:$0xff]
          %v4927 = vld [vmem:[#allocation11 + $0x3c0] sm:$0xff]
          %v4928 = vld [vmem:[#allocation11 + $0x3c8] sm:$0xff]
          %v4929 = vld [vmem:[#allocation11 + $0x3d0] sm:$0xff]
          %v4930 = vld [vmem:[#allocation11 + $0x3d8] sm:$0xff]
          %v4931 = vld [vmem:[#allocation11 + $0x3e0] sm:$0xff]
          %v4932 = vld [vmem:[#allocation11 + $0x3e8] sm:$0xff]
          %v4933 = vld [vmem:[#allocation11 + $0x3f0] sm:$0xff]
          %v4934 = vld [vmem:[#allocation11 + $0x3f8] sm:$0xff]
          %v4935 = vld [vmem:[#allocation12] sm:$0x3]
          %v4937 = vlaneseq
          %v4938 = vshrl.u32 %v4937, 7
          %v4939 = vsub.s32 0, %v4938
          %v4940 = vrot.slane %v4935, %v4939
          %v4941 = vlaneseq
          %v4942 = vshrl.u32 %v4941, 7
          %v4943 = vsub.s32 1, %v4942
          %v4944 = vrot.slane %v4935, %v4943
          %v5075 = vunpack.c.l.b16 %v4807
          %v5076 = vunpack.c.h.b16 %v4807
          %v5077 = vunpack.c.l.b16 %v4808
          %v5078 = vunpack.c.h.b16 %v4808
          %v5079 = vunpack.c.l.b16 %v4809
          %v5080 = vunpack.c.h.b16 %v4809
          %v5081 = vunpack.c.l.b16 %v4810
          %v5082 = vunpack.c.h.b16 %v4810
          %v5083 = vunpack.c.l.b16 %v4811
          %v5084 = vunpack.c.h.b16 %v4811
          %v5085 = vunpack.c.l.b16 %v4812
          %v5086 = vunpack.c.h.b16 %v4812
          %v5087 = vunpack.c.l.b16 %v4813
          %v5088 = vunpack.c.h.b16 %v4813
          %v5089 = vunpack.c.l.b16 %v4814
          %v5090 = vunpack.c.h.b16 %v4814
          %v5091 = vunpack.c.l.b16 %v4815
          %v5092 = vunpack.c.h.b16 %v4815
          %v5093 = vunpack.c.l.b16 %v4816
          %v5094 = vunpack.c.h.b16 %v4816
          %v5095 = vunpack.c.l.b16 %v4817
          %v5096 = vunpack.c.h.b16 %v4817
          %v5097 = vunpack.c.l.b16 %v4818
          %v5098 = vunpack.c.h.b16 %v4818
          %v5099 = vunpack.c.l.b16 %v4819
          %v5100 = vunpack.c.h.b16 %v4819
          %v5101 = vunpack.c.l.b16 %v4820
          %v5102 = vunpack.c.h.b16 %v4820
          %v5103 = vunpack.c.l.b16 %v4821
          %v5104 = vunpack.c.h.b16 %v4821
          %v5105 = vunpack.c.l.b16 %v4822
          %v5106 = vunpack.c.h.b16 %v4822
          %v5107 = vunpack.c.l.b16 %v4823
          %v5108 = vunpack.c.h.b16 %v4823
          %v5109 = vunpack.c.l.b16 %v4824
          %v5110 = vunpack.c.h.b16 %v4824
          %v5111 = vunpack.c.l.b16 %v4825
          %v5112 = vunpack.c.h.b16 %v4825
          %v5113 = vunpack.c.l.b16 %v4826
          %v5114 = vunpack.c.h.b16 %v4826
          %v5115 = vunpack.c.l.b16 %v4827
          %v5116 = vunpack.c.h.b16 %v4827
          %v5117 = vunpack.c.l.b16 %v4828
          %v5118 = vunpack.c.h.b16 %v4828
          %v5119 = vunpack.c.l.b16 %v4829
          %v5120 = vunpack.c.h.b16 %v4829
          %v5121 = vunpack.c.l.b16 %v4830
          %v5122 = vunpack.c.h.b16 %v4830
          %v5123 = vunpack.c.l.b16 %v4831
          %v5124 = vunpack.c.h.b16 %v4831
          %v5125 = vunpack.c.l.b16 %v4832
          %v5126 = vunpack.c.h.b16 %v4832
          %v5127 = vunpack.c.l.b16 %v4833
          %v5128 = vunpack.c.h.b16 %v4833
          %v5129 = vunpack.c.l.b16 %v4834
          %v5130 = vunpack.c.h.b16 %v4834
          %v5131 = vunpack.c.l.b16 %v4835
          %v5132 = vunpack.c.h.b16 %v4835
          %v5133 = vunpack.c.l.b16 %v4836
          %v5134 = vunpack.c.h.b16 %v4836
          %v5135 = vunpack.c.l.b16 %v4837
          %v5136 = vunpack.c.h.b16 %v4837
          %v5137 = vunpack.c.l.b16 %v4838
          %v5138 = vunpack.c.h.b16 %v4838
          %v5139 = vunpack.c.l.b16 %v4839
          %v5140 = vunpack.c.h.b16 %v4839
          %v5141 = vunpack.c.l.b16 %v4840
          %v5142 = vunpack.c.h.b16 %v4840
          %v5143 = vunpack.c.l.b16 %v4841
          %v5144 = vunpack.c.h.b16 %v4841
          %v5145 = vunpack.c.l.b16 %v4842
          %v5146 = vunpack.c.h.b16 %v4842
          %v5147 = vunpack.c.l.b16 %v4843
          %v5148 = vunpack.c.h.b16 %v4843
          %v5149 = vunpack.c.l.b16 %v4844
          %v5150 = vunpack.c.h.b16 %v4844
          %v5151 = vunpack.c.l.b16 %v4845
          %v5152 = vunpack.c.h.b16 %v4845
          %v5153 = vunpack.c.l.b16 %v4846
          %v5154 = vunpack.c.h.b16 %v4846
          %v5155 = vunpack.c.l.b16 %v4847
          %v5156 = vunpack.c.h.b16 %v4847
          %v5157 = vunpack.c.l.b16 %v4848
          %v5158 = vunpack.c.h.b16 %v4848
          %v5159 = vunpack.c.l.b16 %v4849
          %v5160 = vunpack.c.h.b16 %v4849
          %v5161 = vunpack.c.l.b16 %v4850
          %v5162 = vunpack.c.h.b16 %v4850
          %v5163 = vunpack.c.l.b16 %v4851
          %v5164 = vunpack.c.h.b16 %v4851
          %v5165 = vunpack.c.l.b16 %v4852
          %v5166 = vunpack.c.h.b16 %v4852
          %v5167 = vunpack.c.l.b16 %v4853
          %v5168 = vunpack.c.h.b16 %v4853
          %v5169 = vunpack.c.l.b16 %v4854
          %v5170 = vunpack.c.h.b16 %v4854
          %v5171 = vunpack.c.l.b16 %v4855
          %v5172 = vunpack.c.h.b16 %v4855
          %v5173 = vunpack.c.l.b16 %v4856
          %v5174 = vunpack.c.h.b16 %v4856
          %v5175 = vunpack.c.l.b16 %v4857
          %v5176 = vunpack.c.h.b16 %v4857
          %v5177 = vunpack.c.l.b16 %v4858
          %v5178 = vunpack.c.h.b16 %v4858
          %v5179 = vunpack.c.l.b16 %v4859
          %v5180 = vunpack.c.h.b16 %v4859
          %v5181 = vunpack.c.l.b16 %v4860
          %v5182 = vunpack.c.h.b16 %v4860
          %v5183 = vunpack.c.l.b16 %v4861
          %v5184 = vunpack.c.h.b16 %v4861
          %v5185 = vunpack.c.l.b16 %v4862
          %v5186 = vunpack.c.h.b16 %v4862
          %v5187 = vunpack.c.l.b16 %v4863
          %v5188 = vunpack.c.h.b16 %v4863
          %v5189 = vunpack.c.l.b16 %v4864
          %v5190 = vunpack.c.h.b16 %v4864
          %v5191 = vunpack.c.l.b16 %v4865
          %v5192 = vunpack.c.h.b16 %v4865
          %v5193 = vunpack.c.l.b16 %v4866
          %v5194 = vunpack.c.h.b16 %v4866
          %v5195 = vunpack.c.l.b16 %v4867
          %v5196 = vunpack.c.h.b16 %v4867
          %v5197 = vunpack.c.l.b16 %v4868
          %v5198 = vunpack.c.h.b16 %v4868
          %v5199 = vunpack.c.l.b16 %v4869
          %v5200 = vunpack.c.h.b16 %v4869
          %v5201 = vunpack.c.l.b16 %v4870
          %v5202 = vunpack.c.h.b16 %v4870
          %v5203 = vunpack.c.l.b16 %v4871
          %v5204 = vunpack.c.h.b16 %v4871
          %v5205 = vunpack.c.l.b16 %v4872
          %v5206 = vunpack.c.h.b16 %v4872
          %v5207 = vunpack.c.l.b16 %v4873
          %v5208 = vunpack.c.h.b16 %v4873
          %v5209 = vunpack.c.l.b16 %v4874
          %v5210 = vunpack.c.h.b16 %v4874
          %v5211 = vunpack.c.l.b16 %v4875
          %v5212 = vunpack.c.h.b16 %v4875
          %v5213 = vunpack.c.l.b16 %v4876
          %v5214 = vunpack.c.h.b16 %v4876
          %v5215 = vunpack.c.l.b16 %v4877
          %v5216 = vunpack.c.h.b16 %v4877
          %v5217 = vunpack.c.l.b16 %v4878
          %v5218 = vunpack.c.h.b16 %v4878
          %v5219 = vunpack.c.l.b16 %v4879
          %v5220 = vunpack.c.h.b16 %v4879
          %v5221 = vunpack.c.l.b16 %v4880
          %v5222 = vunpack.c.h.b16 %v4880
          %v5223 = vunpack.c.l.b16 %v4881
          %v5224 = vunpack.c.h.b16 %v4881
          %v5225 = vunpack.c.l.b16 %v4882
          %v5226 = vunpack.c.h.b16 %v4882
          %v5227 = vunpack.c.l.b16 %v4883
          %v5228 = vunpack.c.h.b16 %v4883
          %v5229 = vunpack.c.l.b16 %v4884
          %v5230 = vunpack.c.h.b16 %v4884
          %v5231 = vunpack.c.l.b16 %v4885
          %v5232 = vunpack.c.h.b16 %v4885
          %v5233 = vunpack.c.l.b16 %v4886
          %v5234 = vunpack.c.h.b16 %v4886
          %v5235 = vunpack.c.l.b16 %v4887
          %v5236 = vunpack.c.h.b16 %v4887
          %v5237 = vunpack.c.l.b16 %v4888
          %v5238 = vunpack.c.h.b16 %v4888
          %v5239 = vunpack.c.l.b16 %v4889
          %v5240 = vunpack.c.h.b16 %v4889
          %v5241 = vunpack.c.l.b16 %v4890
          %v5242 = vunpack.c.h.b16 %v4890
          %v5243 = vunpack.c.l.b16 %v4891
          %v5244 = vunpack.c.h.b16 %v4891
          %v5245 = vunpack.c.l.b16 %v4892
          %v5246 = vunpack.c.h.b16 %v4892
          %v5247 = vunpack.c.l.b16 %v4893
          %v5248 = vunpack.c.h.b16 %v4893
          %v5249 = vunpack.c.l.b16 %v4894
          %v5250 = vunpack.c.h.b16 %v4894
          %v5251 = vunpack.c.l.b16 %v4895
          %v5252 = vunpack.c.h.b16 %v4895
          %v5253 = vunpack.c.l.b16 %v4896
          %v5254 = vunpack.c.h.b16 %v4896
          %v5255 = vunpack.c.l.b16 %v4897
          %v5256 = vunpack.c.h.b16 %v4897
          %v5257 = vunpack.c.l.b16 %v4898
          %v5258 = vunpack.c.h.b16 %v4898
          %v5259 = vunpack.c.l.b16 %v4899
          %v5260 = vunpack.c.h.b16 %v4899
          %v5261 = vunpack.c.l.b16 %v4900
          %v5262 = vunpack.c.h.b16 %v4900
          %v5263 = vunpack.c.l.b16 %v4901
          %v5264 = vunpack.c.h.b16 %v4901
          %v5265 = vunpack.c.l.b16 %v4902
          %v5266 = vunpack.c.h.b16 %v4902
          %v5267 = vunpack.c.l.b16 %v4903
          %v5268 = vunpack.c.h.b16 %v4903
          %v5269 = vunpack.c.l.b16 %v4904
          %v5270 = vunpack.c.h.b16 %v4904
          %v5271 = vunpack.c.l.b16 %v4905
          %v5272 = vunpack.c.h.b16 %v4905
          %v5273 = vunpack.c.l.b16 %v4906
          %v5274 = vunpack.c.h.b16 %v4906
          %v5275 = vunpack.c.l.b16 %v4907
          %v5276 = vunpack.c.h.b16 %v4907
          %v5277 = vunpack.c.l.b16 %v4908
          %v5278 = vunpack.c.h.b16 %v4908
          %v5279 = vunpack.c.l.b16 %v4909
          %v5280 = vunpack.c.h.b16 %v4909
          %v5281 = vunpack.c.l.b16 %v4910
          %v5282 = vunpack.c.h.b16 %v4910
          %v5283 = vunpack.c.l.b16 %v4911
          %v5284 = vunpack.c.h.b16 %v4911
          %v5285 = vunpack.c.l.b16 %v4912
          %v5286 = vunpack.c.h.b16 %v4912
          %v5287 = vunpack.c.l.b16 %v4913
          %v5288 = vunpack.c.h.b16 %v4913
          %v5289 = vunpack.c.l.b16 %v4914
          %v5290 = vunpack.c.h.b16 %v4914
          %v5291 = vunpack.c.l.b16 %v4915
          %v5292 = vunpack.c.h.b16 %v4915
          %v5293 = vunpack.c.l.b16 %v4916
          %v5294 = vunpack.c.h.b16 %v4916
          %v5295 = vunpack.c.l.b16 %v4917
          %v5296 = vunpack.c.h.b16 %v4917
          %v5297 = vunpack.c.l.b16 %v4918
          %v5298 = vunpack.c.h.b16 %v4918
          %v5299 = vunpack.c.l.b16 %v4919
          %v5300 = vunpack.c.h.b16 %v4919
          %v5301 = vunpack.c.l.b16 %v4920
          %v5302 = vunpack.c.h.b16 %v4920
          %v5303 = vunpack.c.l.b16 %v4921
          %v5304 = vunpack.c.h.b16 %v4921
          %v5305 = vunpack.c.l.b16 %v4922
          %v5306 = vunpack.c.h.b16 %v4922
          %v5307 = vunpack.c.l.b16 %v4923
          %v5308 = vunpack.c.h.b16 %v4923
          %v5309 = vunpack.c.l.b16 %v4924
          %v5310 = vunpack.c.h.b16 %v4924
          %v5311 = vunpack.c.l.b16 %v4925
          %v5312 = vunpack.c.h.b16 %v4925
          %v5313 = vunpack.c.l.b16 %v4926
          %v5314 = vunpack.c.h.b16 %v4926
          %v5315 = vunpack.c.l.b16 %v4927
          %v5316 = vunpack.c.h.b16 %v4927
          %v5317 = vunpack.c.l.b16 %v4928
          %v5318 = vunpack.c.h.b16 %v4928
          %v5319 = vunpack.c.l.b16 %v4929
          %v5320 = vunpack.c.h.b16 %v4929
          %v5321 = vunpack.c.l.b16 %v4930
          %v5322 = vunpack.c.h.b16 %v4930
          %v5323 = vunpack.c.l.b16 %v4931
          %v5324 = vunpack.c.h.b16 %v4931
          %v5325 = vunpack.c.l.b16 %v4932
          %v5326 = vunpack.c.h.b16 %v4932
          %v5327 = vunpack.c.l.b16 %v4933
          %v5328 = vunpack.c.h.b16 %v4933
          %v5329 = vunpack.c.l.b16 %v4934
          %v5330 = vunpack.c.h.b16 %v4934
          %v5331 = vpack.c.b16 %v5077, %v5075
          %v5332 = vpack.c.b16 %v5078, %v5076
          %v5333 = vpack.c.b16 %v5081, %v5079
          %v5334 = vpack.c.b16 %v5082, %v5080
          %v5335 = vpack.c.b16 %v5085, %v5083
          %v5336 = vpack.c.b16 %v5086, %v5084
          %v5337 = vpack.c.b16 %v5089, %v5087
          %v5338 = vpack.c.b16 %v5090, %v5088
          %v5339 = vpack.c.b16 %v5093, %v5091
          %v5340 = vpack.c.b16 %v5094, %v5092
          %v5341 = vpack.c.b16 %v5097, %v5095
          %v5342 = vpack.c.b16 %v5098, %v5096
          %v5343 = vpack.c.b16 %v5101, %v5099
          %v5344 = vpack.c.b16 %v5102, %v5100
          %v5345 = vpack.c.b16 %v5105, %v5103
          %v5346 = vpack.c.b16 %v5106, %v5104
          %v5347 = vpack.c.b16 %v5109, %v5107
          %v5348 = vpack.c.b16 %v5110, %v5108
          %v5349 = vpack.c.b16 %v5113, %v5111
          %v5350 = vpack.c.b16 %v5114, %v5112
          %v5351 = vpack.c.b16 %v5117, %v5115
          %v5352 = vpack.c.b16 %v5118, %v5116
          %v5353 = vpack.c.b16 %v5121, %v5119
          %v5354 = vpack.c.b16 %v5122, %v5120
          %v5355 = vpack.c.b16 %v5125, %v5123
          %v5356 = vpack.c.b16 %v5126, %v5124
          %v5357 = vpack.c.b16 %v5129, %v5127
          %v5358 = vpack.c.b16 %v5130, %v5128
          %v5359 = vpack.c.b16 %v5133, %v5131
          %v5360 = vpack.c.b16 %v5134, %v5132
          %v5361 = vpack.c.b16 %v5137, %v5135
          %v5362 = vpack.c.b16 %v5138, %v5136
          %v5363 = vpack.c.b16 %v5141, %v5139
          %v5364 = vpack.c.b16 %v5142, %v5140
          %v5365 = vpack.c.b16 %v5145, %v5143
          %v5366 = vpack.c.b16 %v5146, %v5144
          %v5367 = vpack.c.b16 %v5149, %v5147
          %v5368 = vpack.c.b16 %v5150, %v5148
          %v5369 = vpack.c.b16 %v5153, %v5151
          %v5370 = vpack.c.b16 %v5154, %v5152
          %v5371 = vpack.c.b16 %v5157, %v5155
          %v5372 = vpack.c.b16 %v5158, %v5156
          %v5373 = vpack.c.b16 %v5161, %v5159
          %v5374 = vpack.c.b16 %v5162, %v5160
          %v5375 = vpack.c.b16 %v5165, %v5163
          %v5376 = vpack.c.b16 %v5166, %v5164
          %v5377 = vpack.c.b16 %v5169, %v5167
          %v5378 = vpack.c.b16 %v5170, %v5168
          %v5379 = vpack.c.b16 %v5173, %v5171
          %v5380 = vpack.c.b16 %v5174, %v5172
          %v5381 = vpack.c.b16 %v5177, %v5175
          %v5382 = vpack.c.b16 %v5178, %v5176
          %v5383 = vpack.c.b16 %v5181, %v5179
          %v5384 = vpack.c.b16 %v5182, %v5180
          %v5385 = vpack.c.b16 %v5185, %v5183
          %v5386 = vpack.c.b16 %v5186, %v5184
          %v5387 = vpack.c.b16 %v5189, %v5187
          %v5388 = vpack.c.b16 %v5190, %v5188
          %v5389 = vpack.c.b16 %v5193, %v5191
          %v5390 = vpack.c.b16 %v5194, %v5192
          %v5391 = vpack.c.b16 %v5197, %v5195
          %v5392 = vpack.c.b16 %v5198, %v5196
          %v5393 = vpack.c.b16 %v5201, %v5199
          %v5394 = vpack.c.b16 %v5202, %v5200
          %v5395 = vpack.c.b16 %v5205, %v5203
          %v5396 = vpack.c.b16 %v5206, %v5204
          %v5397 = vpack.c.b16 %v5209, %v5207
          %v5398 = vpack.c.b16 %v5210, %v5208
          %v5399 = vpack.c.b16 %v5213, %v5211
          %v5400 = vpack.c.b16 %v5214, %v5212
          %v5401 = vpack.c.b16 %v5217, %v5215
          %v5402 = vpack.c.b16 %v5218, %v5216
          %v5403 = vpack.c.b16 %v5221, %v5219
          %v5404 = vpack.c.b16 %v5222, %v5220
          %v5405 = vpack.c.b16 %v5225, %v5223
          %v5406 = vpack.c.b16 %v5226, %v5224
          %v5407 = vpack.c.b16 %v5229, %v5227
          %v5408 = vpack.c.b16 %v5230, %v5228
          %v5409 = vpack.c.b16 %v5233, %v5231
          %v5410 = vpack.c.b16 %v5234, %v5232
          %v5411 = vpack.c.b16 %v5237, %v5235
          %v5412 = vpack.c.b16 %v5238, %v5236
          %v5413 = vpack.c.b16 %v5241, %v5239
          %v5414 = vpack.c.b16 %v5242, %v5240
          %v5415 = vpack.c.b16 %v5245, %v5243
          %v5416 = vpack.c.b16 %v5246, %v5244
          %v5417 = vpack.c.b16 %v5249, %v5247
          %v5418 = vpack.c.b16 %v5250, %v5248
          %v5419 = vpack.c.b16 %v5253, %v5251
          %v5420 = vpack.c.b16 %v5254, %v5252
          %v5421 = vpack.c.b16 %v5257, %v5255
          %v5422 = vpack.c.b16 %v5258, %v5256
          %v5423 = vpack.c.b16 %v5261, %v5259
          %v5424 = vpack.c.b16 %v5262, %v5260
          %v5425 = vpack.c.b16 %v5265, %v5263
          %v5426 = vpack.c.b16 %v5266, %v5264
          %v5427 = vpack.c.b16 %v5269, %v5267
          %v5428 = vpack.c.b16 %v5270, %v5268
          %v5429 = vpack.c.b16 %v5273, %v5271
          %v5430 = vpack.c.b16 %v5274, %v5272
          %v5431 = vpack.c.b16 %v5277, %v5275
          %v5432 = vpack.c.b16 %v5278, %v5276
          %v5433 = vpack.c.b16 %v5281, %v5279
          %v5434 = vpack.c.b16 %v5282, %v5280
          %v5435 = vpack.c.b16 %v5285, %v5283
          %v5436 = vpack.c.b16 %v5286, %v5284
          %v5437 = vpack.c.b16 %v5289, %v5287
          %v5438 = vpack.c.b16 %v5290, %v5288
          %v5439 = vpack.c.b16 %v5293, %v5291
          %v5440 = vpack.c.b16 %v5294, %v5292
          %v5441 = vpack.c.b16 %v5297, %v5295
          %v5442 = vpack.c.b16 %v5298, %v5296
          %v5443 = vpack.c.b16 %v5301, %v5299
          %v5444 = vpack.c.b16 %v5302, %v5300
          %v5445 = vpack.c.b16 %v5305, %v5303
          %v5446 = vpack.c.b16 %v5306, %v5304
          %v5447 = vpack.c.b16 %v5309, %v5307
          %v5448 = vpack.c.b16 %v5310, %v5308
          %v5449 = vpack.c.b16 %v5313, %v5311
          %v5450 = vpack.c.b16 %v5314, %v5312
          %v5451 = vpack.c.b16 %v5317, %v5315
          %v5452 = vpack.c.b16 %v5318, %v5316
          %v5453 = vpack.c.b16 %v5321, %v5319
          %v5454 = vpack.c.b16 %v5322, %v5320
          %v5455 = vpack.c.b16 %v5325, %v5323
          %v5456 = vpack.c.b16 %v5326, %v5324
          %v5457 = vpack.c.b16 %v5329, %v5327
          %v5458 = vpack.c.b16 %v5330, %v5328
          %5587 = vmatprep.subr.bf16.mxu0 %v5332
          %5588 = vmatpush1.bf16.msra.mxu0 %v5331
          %5589 = vmatprep.subr.bf16.mxu0 %v5334
          %5590 = vmatpush1.bf16.msra.mxu0 %v5333
          %5591 = vmatprep.subr.bf16.mxu0 %v5336
          %5592 = vmatpush1.bf16.msra.mxu0 %v5335
          %5593 = vmatprep.subr.bf16.mxu0 %v5338
          %5594 = vmatpush1.bf16.msra.mxu0 %v5337
          %5595 = vmatprep.subr.bf16.mxu0 %v5340
          %5596 = vmatpush1.bf16.msra.mxu0 %v5339
          %5597 = vmatprep.subr.bf16.mxu0 %v5342
          %5598 = vmatpush1.bf16.msra.mxu0 %v5341
          %5599 = vmatprep.subr.bf16.mxu0 %v5344
          %5600 = vmatpush1.bf16.msra.mxu0 %v5343
          %5601 = vmatprep.subr.bf16.mxu0 %v5346
          %5602 = vmatpush1.bf16.msra.mxu0 %v5345
          %5603 = vmatprep.subr.bf16.mxu0 %v5348
          %5604 = vmatpush1.bf16.msra.mxu0 %v5347
          %5605 = vmatprep.subr.bf16.mxu0 %v5350
          %5606 = vmatpush1.bf16.msra.mxu0 %v5349
          %5607 = vmatprep.subr.bf16.mxu0 %v5352
          %5608 = vmatpush1.bf16.msra.mxu0 %v5351
          %5609 = vmatprep.subr.bf16.mxu0 %v5354
          %5610 = vmatpush1.bf16.msra.mxu0 %v5353
          %5611 = vmatprep.subr.bf16.mxu0 %v5356
          %5612 = vmatpush1.bf16.msra.mxu0 %v5355
          %5613 = vmatprep.subr.bf16.mxu0 %v5358
          %5614 = vmatpush1.bf16.msra.mxu0 %v5357
          %5615 = vmatprep.subr.bf16.mxu0 %v5360
          %5616 = vmatpush1.bf16.msra.mxu0 %v5359
          %5617 = vmatprep.subr.bf16.mxu0 %v5362
          %5618 = vmatpush1.bf16.msra.mxu0 %v5361
          %5619 = vmatprep.mubr.bf16.mxu0 %v4800
          %5620 = vmatmul.mubr.bf16.gmra.mrb[0].mxu0 %v4799
          %v5621 = vpop.f32.mrb[0].mxu0
          %v5622 = vadd.f32 %v4940, %v5621
          %v5623 = vpop.f32.mrb[0].mxu0
          %v5624 = vadd.f32 %v4944, %v5623
          %v5625 = vpop.f32.mrb[0].mxu0
          %v5626 = vpop.f32.mrb[0].mxu0
          %5627 = vdwg.mxu0
          %5628 = vmatprep.subr.bf16.mxu0 %v5364
          %5629 = vmatpush1.bf16.msra.mxu0 %v5363
          %5630 = vmatprep.subr.bf16.mxu0 %v5366
          %5631 = vmatpush1.bf16.msra.mxu0 %v5365
          %5632 = vmatprep.subr.bf16.mxu0 %v5368
          %5633 = vmatpush1.bf16.msra.mxu0 %v5367
          %5634 = vmatprep.subr.bf16.mxu0 %v5370
          %5635 = vmatpush1.bf16.msra.mxu0 %v5369
          %5636 = vmatprep.subr.bf16.mxu0 %v5372
          %5637 = vmatpush1.bf16.msra.mxu0 %v5371
          %5638 = vmatprep.subr.bf16.mxu0 %v5374
          %5639 = vmatpush1.bf16.msra.mxu0 %v5373
          %5640 = vmatprep.subr.bf16.mxu0 %v5376
          %5641 = vmatpush1.bf16.msra.mxu0 %v5375
          %5642 = vmatprep.subr.bf16.mxu0 %v5378
          %5643 = vmatpush1.bf16.msra.mxu0 %v5377
          %5644 = vmatprep.subr.bf16.mxu0 %v5380
          %5645 = vmatpush1.bf16.msra.mxu0 %v5379
          %5646 = vmatprep.subr.bf16.mxu0 %v5382
          %5647 = vmatpush1.bf16.msra.mxu0 %v5381
          %5648 = vmatprep.subr.bf16.mxu0 %v5384
          %5649 = vmatpush1.bf16.msra.mxu0 %v5383
          %5650 = vmatprep.subr.bf16.mxu0 %v5386
          %5651 = vmatpush1.bf16.msra.mxu0 %v5385
          %5652 = vmatprep.subr.bf16.mxu0 %v5388
          %5653 = vmatpush1.bf16.msra.mxu0 %v5387
          %5654 = vmatprep.subr.bf16.mxu0 %v5390
          %5655 = vmatpush1.bf16.msra.mxu0 %v5389
          %5656 = vmatprep.subr.bf16.mxu0 %v5392
          %5657 = vmatpush1.bf16.msra.mxu0 %v5391
          %5658 = vmatprep.subr.bf16.mxu0 %v5394
          %5659 = vmatpush1.bf16.msra.mxu0 %v5393
          %5660 = vmatprep.mubr.bf16.mxu0 %v4802
          %5661 = vmatmul.mubr.bf16.gmra.mrb[0].mxu0 %v4801
          %v5662 = vpop.f32.mrb[0].mxu0
          %v5663 = vadd.f32 %v5622, %v5662
          %v5664 = vpop.f32.mrb[0].mxu0
          %v5665 = vadd.f32 %v5624, %v5664
          %v5666 = vpop.f32.mrb[0].mxu0
          %v5667 = vpop.f32.mrb[0].mxu0
          %5668 = vdwg.mxu0
          %5669 = vmatprep.subr.bf16.mxu0 %v5396
          %5670 = vmatpush1.bf16.msra.mxu0 %v5395
          %5671 = vmatprep.subr.bf16.mxu0 %v5398
          %5672 = vmatpush1.bf16.msra.mxu0 %v5397
          %5673 = vmatprep.subr.bf16.mxu0 %v5400
          %5674 = vmatpush1.bf16.msra.mxu0 %v5399
          %5675 = vmatprep.subr.bf16.mxu0 %v5402
          %5676 = vmatpush1.bf16.msra.mxu0 %v5401
          %5677 = vmatprep.subr.bf16.mxu0 %v5404
          %5678 = vmatpush1.bf16.msra.mxu0 %v5403
          %5679 = vmatprep.subr.bf16.mxu0 %v5406
          %5680 = vmatpush1.bf16.msra.mxu0 %v5405
          %5681 = vmatprep.subr.bf16.mxu0 %v5408
          %5682 = vmatpush1.bf16.msra.mxu0 %v5407
          %5683 = vmatprep.subr.bf16.mxu0 %v5410
          %5684 = vmatpush1.bf16.msra.mxu0 %v5409
          %5685 = vmatprep.subr.bf16.mxu0 %v5412
          %5686 = vmatpush1.bf16.msra.mxu0 %v5411
          %5687 = vmatprep.subr.bf16.mxu0 %v5414
          %5688 = vmatpush1.bf16.msra.mxu0 %v5413
          %5689 = vmatprep.subr.bf16.mxu0 %v5416
          %5690 = vmatpush1.bf16.msra.mxu0 %v5415
          %5691 = vmatprep.subr.bf16.mxu0 %v5418
          %5692 = vmatpush1.bf16.msra.mxu0 %v5417
          %5693 = vmatprep.subr.bf16.mxu0 %v5420
          %5694 = vmatpush1.bf16.msra.mxu0 %v5419
          %5695 = vmatprep.subr.bf16.mxu0 %v5422
          %5696 = vmatpush1.bf16.msra.mxu0 %v5421
          %5697 = vmatprep.subr.bf16.mxu0 %v5424
          %5698 = vmatpush1.bf16.msra.mxu0 %v5423
          %5699 = vmatprep.subr.bf16.mxu0 %v5426
          %5700 = vmatpush1.bf16.msra.mxu0 %v5425
          %5701 = vmatprep.mubr.bf16.mxu0 %v4804
          %5702 = vmatmul.mubr.bf16.gmra.mrb[0].mxu0 %v4803
          %v5703 = vpop.f32.mrb[0].mxu0
          %v5704 = vadd.f32 %v5663, %v5703
          %v5705 = vpop.f32.mrb[0].mxu0
          %v5706 = vadd.f32 %v5665, %v5705
          %v5707 = vpop.f32.mrb[0].mxu0
          %v5708 = vpop.f32.mrb[0].mxu0
          %5709 = vdwg.mxu0
          %5710 = vmatprep.subr.bf16.mxu0 %v5428
          %5711 = vmatpush1.bf16.msra.mxu0 %v5427
          %5712 = vmatprep.subr.bf16.mxu0 %v5430
          %5713 = vmatpush1.bf16.msra.mxu0 %v5429
          %5714 = vmatprep.subr.bf16.mxu0 %v5432
          %5715 = vmatpush1.bf16.msra.mxu0 %v5431
          %5716 = vmatprep.subr.bf16.mxu0 %v5434
          %5717 = vmatpush1.bf16.msra.mxu0 %v5433
          %5718 = vmatprep.subr.bf16.mxu0 %v5436
          %5719 = vmatpush1.bf16.msra.mxu0 %v5435
          %5720 = vmatprep.subr.bf16.mxu0 %v5438
          %5721 = vmatpush1.bf16.msra.mxu0 %v5437
          %5722 = vmatprep.subr.bf16.mxu0 %v5440
          %5723 = vmatpush1.bf16.msra.mxu0 %v5439
          %5724 = vmatprep.subr.bf16.mxu0 %v5442
          %5725 = vmatpush1.bf16.msra.mxu0 %v5441
          %5726 = vmatprep.subr.bf16.mxu0 %v5444
          %5727 = vmatpush1.bf16.msra.mxu0 %v5443
          %5728 = vmatprep.subr.bf16.mxu0 %v5446
          %5729 = vmatpush1.bf16.msra.mxu0 %v5445
          %5730 = vmatprep.subr.bf16.mxu0 %v5448
          %5731 = vmatpush1.bf16.msra.mxu0 %v5447
          %5732 = vmatprep.subr.bf16.mxu0 %v5450
          %5733 = vmatpush1.bf16.msra.mxu0 %v5449
          %5734 = vmatprep.subr.bf16.mxu0 %v5452
          %5735 = vmatpush1.bf16.msra.mxu0 %v5451
          %5736 = vmatprep.subr.bf16.mxu0 %v5454
          %5737 = vmatpush1.bf16.msra.mxu0 %v5453
          %5738 = vmatprep.subr.bf16.mxu0 %v5456
          %5739 = vmatpush1.bf16.msra.mxu0 %v5455
          %5740 = vmatprep.subr.bf16.mxu0 %v5458
          %5741 = vmatpush1.bf16.msra.mxu0 %v5457
          %5742 = vmatprep.mubr.bf16.mxu0 %v4806
          %5743 = vmatmul.mubr.bf16.gmra.mrb[0].mxu0 %v4805
          %v5744 = vpop.f32.mrb[0].mxu0
          %v5745 = vadd.f32 %v5704, %v5744
          %v5746 = vpop.f32.mrb[0].mxu0
          %v5747 = vadd.f32 %v5706, %v5746
          %v5748 = vpop.f32.mrb[0].mxu0
          %v5749 = vpop.f32.mrb[0].mxu0
          %5750 = vdwg.mxu0
          %vm5751 = vcmp.gt.f32.partialorder %v5745, 0.0
          %vm5752 = vcmp.gt.f32.partialorder %v5747, 0.0
          %v5753 = vmul.f32 %v5745, 0.2
          %v5754 = vmul.f32 %v5747, 0.2
          %v5755 = vsel %vm5751, %v5745, %v5753
          %v5756 = vsel %vm5752, %v5747, %v5754
          %v5757 = vld [vmem:[#allocation14] sm:$0x3]
          %v5759 = vlaneseq
          %v5760 = vshrl.u32 %v5759, 7
          %v5761 = vsub.s32 0, %v5760
          %v5762 = vrot.slane %v5757, %v5761
          %v5763 = vlaneseq
          %v5764 = vshrl.u32 %v5763, 7
          %v5765 = vsub.s32 1, %v5764
          %v5766 = vrot.slane %v5757, %v5765
          %v5769 = vmul.f32 %v5755, %v5762
          %v5770 = vmul.f32 %v5756, %v5766
          %v5771 = vadd.f32 %v5769, %v5770
          %5772 = vadd.xlane.f32.xlu0 %v5771
          %v5773 = vpop.xlane.xlu0 %5772
          %v5774 = vld [vmem:[#allocation3] sm:$0x1]
          %v5776 = vlaneseq
          %v5777 = vshrl.u32 %v5776, 7
          %v5778 = vsub.s32 0, %v5777
          %v5779 = vrot.slane %v5774, %v5778
          %v5781 = vadd.f32 %v5773, %v5779
          %vm5782 = vcmask 7168
          %5783 = vst.msk [vmem:[%s512] sm:$0xff] %vm5782, %v5781
        $region92: #{discriminator_forward.1} parent=55 // pred_fallthru
          _
        %p5784 = scmp.lt.s32.totalorder %s34, 0
        %s5785 = scalar_select %p5784, %s34, 0
        %s5786 = smul.addr %s5785, 8
        %s5787 = scalar_lea.vmem %s9, %s5786
        // Predicated region
        $region93: #{discriminator_forward.1} parent=55 // pred_check
          %p5788 = pneg %p269
        $region94: #{discriminator_forward.1} parent=55 // pred_check_branch
          %5790 = sbr.rel (%p5788) target = $region96
        $region95: #{discriminator_forward.1} parent=55 // pred_region
          _
        $region96: #{discriminator_forward.1} parent=55 // pred_fallthru
          _
        // Predicated region
        $region97: #{discriminator_forward.1} parent=55 // pred_check
          %p5791 = pneg %p269
        $region98: #{discriminator_forward.1} parent=55 // pred_check_branch
          %5793 = sbr.rel (%p5791) target = $region100
        $region99: #{discriminator_forward.1} parent=55 // pred_region
          %p5794 = scmp.lt.s32.totalorder %s34, 0
          %s5795 = scalar_select %p5794, %s34, 0
          %s5796 = smul.addr %s5795, 8
          %s5797 = scalar_lea.vmem %s9, %s5796
        $region100: #{discriminator_forward.1} parent=55 // pred_fallthru
          _
      $region56: #{discriminator_forward.1} parent=5 // pred_fallthru
        _
      %p5798 = scmp.le.s32.totalorder 2, %s25
      // Predicated region
      $region101: #{discriminator_forward.1} parent=5 // pred_check
        %p5799 = pneg %p5798
      $region102: #{discriminator_forward.1} parent=5 // pred_check_branch
        %5801 = sbr.rel (%p5799) target = $region104
      $region103: #{discriminator_forward.1} parent=5 // pred_region
        %s5802 = ssub.s32 %s25, 2
      $region104: #{discriminator_forward.1} parent=5 // pred_fallthru
        _
    $region6: #{discriminator_forward.1} parent=1 // loop_footer
      %s29 = sadd.s32 1, %s25
    $region7: #{discriminator_forward.1} parent=1 // loop_footer_branch
      %24 = sbr.rel target = $region3
    $region8: #{discriminator_forward.1} parent=1 // loop_exit
      _
    %5803 = vsyncpa [#allocation5], 1
    %s5804 = scalar_lea.sflag [#allocation5], 1
    %5805 = vsyncpa %s5804, 1
    %5806 = vsyncpa [#allocation7], 1
    %s5807 = scalar_lea.sflag [#allocation7], 1
    %5808 = vsyncpa %s5807, 1
    %5809 = vsyncpa [#allocation10], 1
    %5810 = vsyncpa [#allocation13], 1

</llo_original>
